<compile_context>
chip_gen: v7x
topology: tpu7x:2x2x1
jax: 0.10.0
libtpu: 0.0.40
codegen_flags: <defaults>
</compile_context>

<pallas_src>
import jax
import jax.numpy as jnp
from jax import lax
from jax.experimental import pallas as pl
from jax.experimental.pallas import tpu as pltpu


def _round_up(n, m):
    return ((n + m - 1) // m) * m


def _pick_tile_rows(H, W, target_pixels=1024):
    """Largest divisor of H with TH*W <= target_pixels (at least 1)."""
    th = max(1, min(H, max(1, target_pixels // max(W, 1))))
    while H % th:
        th -= 1
    return th


def _vmem_limit_bytes():
    # Generation-aware VMEM request: ~3/4 of physical capacity, capped at 100 MiB
    # (v5e/v6e: 96 of 128 MiB; v7x: 48 of 64 MiB -- rely on row tiling there).
    try:
        cap = int(pltpu.get_tpu_info().vmem_capacity_bytes)
    except Exception:
        cap = 64 * 1024 * 1024
    return min(cap * 3 // 4, 100 * 1024 * 1024)


# ----------------------------- kernels ------------------------------------- #

def _upsample_conv_kernel(x_ref, w_ref, b_ref, o_ref):
    """One (batch, row-tile) step of the fused nearest-2x upsample + 3x3 conv.

    x_ref : (1, 1, TH+2, W+2, Cin_p)   haloed, zero-padded input tile (lane = C)
    w_ref : (2, 2, 2, 2*Cin_p, Cout_p) combined weights [py, px, ri, (rj,cin), cout]
    b_ref : (1, Cout_p) f32            conv bias (zero-padded channels)
    o_ref : (1, TH, 2, 2, W, Cout_p)   output tile, dims (b, i, py, px, j, cout)
    """
    TH = o_ref.shape[1]
    W = o_ref.shape[4]
    Coutp = o_ref.shape[5]
    K = w_ref.shape[3]                       # 2 * Cin_p

    # Column-shifted slabs built ONCE per step with static offsets.
    sh = [x_ref[0, 0, :, pl.ds(c, W), :] for c in range(3)]   # (TH+2, W, Cin_p)
    # Lane-concat adjacent shifts: both column taps of a phase become one matmul.
    lhs = (jnp.concatenate([sh[0], sh[1]], axis=-1),           # phases with px = 0
           jnp.concatenate([sh[1], sh[2]], axis=-1))           # phases with px = 1

    bias = b_ref[0].astype(jnp.float32)                        # (Cout_p,)

    for py in range(2):                 # 4 phases unrolled statically in-kernel
        for px in range(2):
            l = lhs[px]                                        # (TH+2, W, K)
            a0 = l[py:py + TH].reshape(TH * W, K)              # row tap ri = 0
            a1 = l[py + 1:py + 1 + TH].reshape(TH * W, K)      # row tap ri = 1
            acc = jnp.dot(a0, w_ref[py, px, 0],
                          preferred_element_type=jnp.float32)
            acc = acc + jnp.dot(a1, w_ref[py, px, 1],
                                preferred_element_type=jnp.float32)
            acc = acc + bias                                   # bias in epilogue
            o_ref[0, :, py, px] = acc.reshape(TH, W, Coutp).astype(o_ref.dtype)


def _upsample_only_kernel(x_ref, o_ref):
    """Nearest-neighbor 2x upsample (use_conv=False): four copies of the tile.

    x_ref : (1, TH, W, C)
    o_ref : (1, TH, 2, 2, W, C)   dims (b, i, py, px, j, c)
    """
    x = x_ref[0]
    for py in range(2):
        for px in range(2):
            o_ref[0, :, py, px] = x


# ----------------------------- weight fold ---------------------------------- #

def _make_polyphase_weights(w_hwio, cin_p, cout_p, dtype):
    """Fold the 3x3 taps into combined per-(phase, row-tap) 2-column weights.

    w_hwio : (3, 3, Cin, Cout)
    returns: (2, 2, 2, 2*cin_p, cout_p) indexed [py, px, ri, rj*cin_p + cin, cout]
    """
    Cin, Cout = w_hwio.shape[2], w_hwio.shape[3]
    wc = jnp.zeros((2, 2, 2, 2, Cin, Cout), jnp.float32)   # [py, px, ri, rj, ci, co]
    for py in range(2):
        for px in range(2):
            for ky in range(3):
                for kx in range(3):
                    ri = (py + ky - 1) // 2 - py + 1
                    rj = (px + kx - 1) // 2 - px + 1
                    wc = wc.at[py, px, ri, rj].add(w_hwio[ky, kx].astype(jnp.float32))
    wc = jnp.pad(wc, ((0, 0),) * 4 + ((0, cin_p - Cin), (0, cout_p - Cout)))
    return wc.reshape(2, 2, 2, 2 * cin_p, cout_p).astype(dtype)


# ----------------------------- wrapper -------------------------------------- #

def upsample_forward(x_nchw, weight_oihw=None, bias=None, use_conv=True,
                     *, compute_dtype=jnp.bfloat16, tile_rows=None,
                     data_format="NCHW"):
    """Equivalent of Upsample(channels, use_conv, dims=2).forward.

    x_nchw      : (B, C, H, W)
    weight_oihw : (Cout, Cin, 3, 3)   (only if use_conv)
    bias        : (Cout,)             (only if use_conv)
    returns     : (B, Cout, 2H, 2W) NCHW (or (B, 2H, 2W, Cout) for "NHWC"),
                  same dtype as the input.
    """
    B, C, H, W = x_nchw.shape
    out_dtype = x_nchw.dtype
    x = jnp.transpose(x_nchw, (0, 2, 3, 1))                    # NCHW -> NHWC (lane = C)

    TH = tile_rows or _pick_tile_rows(H, W)
    assert H % TH == 0, "tile_rows must divide H"
    nT = H // TH

    if use_conv:
        Cout = weight_oihw.shape[0]
        Cin_p = _round_up(C, 128)
        Cout_p = _round_up(Cout, 128)
        cdt = compute_dtype or out_dtype

        w_hwio = jnp.transpose(weight_oihw, (2, 3, 1, 0))      # (3, 3, Cin, Cout)
        wc = _make_polyphase_weights(w_hwio, Cin_p, Cout_p, cdt)
        b_pad = jnp.pad(bias.astype(jnp.float32),
                        (0, Cout_p - Cout)).reshape(1, Cout_p)

        # 1-px spatial zero pad (conv halo in the original-x domain), lane-dense
        # channel pad, bf16 MXU operands (accumulation stays f32 in-kernel).
        xpad = jnp.pad(x, ((0, 0), (1, 1), (1, 1), (0, Cin_p - C))).astype(cdt)
        # Wrapper-side per-tile halo: tile t holds padded rows [t*TH, t*TH+TH+2).
        if nT == 1:
            xt = xpad[:, None]
        else:
            xt = jnp.stack([xpad[:, t * TH:t * TH + TH + 2] for t in range(nT)],
                           axis=1)

        out = pl.pallas_call(
            _upsample_conv_kernel,
            out_shape=jax.ShapeDtypeStruct((B, H, 2, 2, W, Cout_p), out_dtype),
            grid_spec=pltpu.PrefetchScalarGridSpec(
                num_scalar_prefetch=0,
                grid=(B, nT),                                   # (batch, row tile)
                in_specs=[
                    pl.BlockSpec((1, 1, TH + 2, W + 2, Cin_p),
                                 lambda b, t: (b, t, 0, 0, 0)),
                    pl.BlockSpec((2, 2, 2, 2 * Cin_p, Cout_p),   # VMEM-resident
                                 lambda b, t: (0, 0, 0, 0, 0)),
                    pl.BlockSpec((1, Cout_p), lambda b, t: (0, 0)),
                ],
                out_specs=pl.BlockSpec((1, TH, 2, 2, W, Cout_p),
                                       lambda b, t: (b, t, 0, 0, 0, 0)),
            ),
            compiler_params=pltpu.CompilerParams(
                dimension_semantics=("parallel", "parallel"),
                vmem_limit_bytes=_vmem_limit_bytes()),
        )(xt, wc, b_pad)
        Cfin = Cout
    else:
        out = pl.pallas_call(
            _upsample_only_kernel,
            out_shape=jax.ShapeDtypeStruct((B, H, 2, 2, W, C), out_dtype),
            grid_spec=pltpu.PrefetchScalarGridSpec(
                num_scalar_prefetch=0,
                grid=(B, nT),
                in_specs=[pl.BlockSpec((1, TH, W, C), lambda b, t: (b, t, 0, 0))],
                out_specs=pl.BlockSpec((1, TH, 2, 2, W, C),
                                       lambda b, t: (b, t, 0, 0, 0, 0)),
            ),
            compiler_params=pltpu.CompilerParams(
                dimension_semantics=("parallel", "parallel")),
        )(x)
        Cfin = C

    # out dims: (b, i, py, px, j, c).  One fused XLA transpose does the phase
    # interleave AND the layout conversion; for the NCHW module contract this
    # single pass is unavoidable (channels must leave the lane dim).
    if data_format == "NCHW":
        y = jnp.transpose(out, (0, 5, 1, 2, 4, 3)).reshape(
            B, out.shape[5], 2 * H, 2 * W)
        return y[:, :Cfin]
    else:  # "NHWC"
        y = jnp.transpose(out, (0, 1, 2, 4, 3, 5)).reshape(
            B, 2 * H, 2 * W, out.shape[5])
        return y[..., :Cfin]


# ----------------------------- reference ------------------------------------ #

def _reference(x_nchw, weight_oihw, bias, use_conv):
    u = jnp.repeat(jnp.repeat(x_nchw, 2, axis=2), 2, axis=3)   # nearest 2x
    if not use_conv:
        return u
    y = lax.conv_general_dilated(
        u.astype(jnp.float32), weight_oihw.astype(jnp.float32),
        window_strides=(1, 1), padding=((1, 1), (1, 1)),
        dimension_numbers=("NCHW", "OIHW", "NCHW"))
    return y + bias[None, :, None, None]


# ------------------------------- main ---------------------------------------- #

if __name__ == "__main__":
    key = jax.random.PRNGKey(0)
    kx, kw, kb = jax.random.split(key, 3)

    B, C, H, W = 2, 4, 16, 16
    Cout = C                          # out_channels = channels (default)

    x = jax.random.normal(kx, (B, C, H, W), dtype=jnp.float32)
    weight = 0.1 * jax.random.normal(kw, (Cout, C, 3, 3), dtype=jnp.float32)
    bias = 0.1 * jax.random.normal(kb, (Cout,), dtype=jnp.float32)
    y_ref = _reference(x, weight, bias, use_conv=True)

    # conv path, f32 compute: exact check of the polyphase fold + plumbing.
    y32 = jax.block_until_ready(
        upsample_forward(x, weight, bias, use_conv=True,
                         compute_dtype=jnp.float32))
    assert y32.shape == (B, Cout, 2 * H, 2 * W)
    assert jnp.allclose(y32, y_ref, rtol=1e-4, atol=1e-4)

    # conv path, default bf16 MXU operands (f32 accumulation) -> loose tolerance.
    ybf = jax.block_until_ready(upsample_forward(x, weight, bias, use_conv=True))
    assert ybf.shape == (B, Cout, 2 * H, 2 * W)
    assert jnp.allclose(ybf, y_ref, rtol=5e-2, atol=5e-2)

    # conv path with forced row tiling (nT = 2) to exercise the halo plumbing.
    yt = jax.block_until_ready(
        upsample_forward(x, weight, bias, use_conv=True,
                         compute_dtype=jnp.float32, tile_rows=8))
    assert jnp.allclose(yt, y_ref, rtol=1e-4, atol=1e-4)

    # use_conv=False path.
    y2 = jax.block_until_ready(upsample_forward(x, use_conv=False))
    assert y2.shape == (B, C, 2 * H, 2 * W)
    assert jnp.allclose(y2, _reference(x, None, None, use_conv=False))

    print("KERNEL_OK")
</pallas_src>

<mosaic_0001>
module attributes {stable_mosaic.version = 11 : i64} {
  func.func @_upsample_conv_kernel(%arg0: i32, %arg1: i32, %arg2: memref<1x1x18x18x128xf32, #tpu.memory_space<vmem>>, %arg3: memref<2x2x2x256x128xf32, #tpu.memory_space<vmem>>, %arg4: memref<1x128xf32, #tpu.memory_space<vmem>>, %arg5: memref<1x16x2x2x16x128xf32, #tpu.memory_space<vmem>>) attributes {dimension_semantics = [#tpu.dimension_semantics<parallel>, #tpu.dimension_semantics<parallel>], iteration_bounds = array<i64: 2, 1>, scalar_prefetch = 0 : i64, scratch_operands = 0 : i64, tpu.core_type = #tpu.core_type<tc>, window_params = [{transform_indices = @transform_0, window_bounds = array<i64: 1, 1, 18, 18, 128>}, {pipeline_mode = #tpu.pipeline_mode<synchronous>, transform_indices = @transform_1, window_bounds = array<i64: 2, 2, 2, 256, 128>}, {pipeline_mode = #tpu.pipeline_mode<synchronous>, transform_indices = @transform_2, window_bounds = array<i64: 1, 128>}, {transform_indices = @transform_3, window_bounds = array<i64: 1, 16, 2, 2, 16, 128>}]} {
    %c0 = arith.constant 0 : index
    %c0_0 = arith.constant 0 : index
    %c0_1 = arith.constant 0 : index
    %c0_2 = arith.constant 0 : index
    %c0_3 = arith.constant 0 : index
    %0 = vector.load %arg2[%c0, %c0_0, %c0_1, %c0_2, %c0_3] : memref<1x1x18x18x128xf32, #tpu.memory_space<vmem>>, vector<1x1x18x16x128xf32>
    %1 = vector.shape_cast %0 : vector<1x1x18x16x128xf32> to vector<18x16x128xf32>
    %c0_4 = arith.constant 0 : index
    %c0_5 = arith.constant 0 : index
    %c0_6 = arith.constant 0 : index
    %c1 = arith.constant 1 : index
    %c0_7 = arith.constant 0 : index
    %2 = vector.load %arg2[%c0_4, %c0_5, %c0_6, %c1, %c0_7] : memref<1x1x18x18x128xf32, #tpu.memory_space<vmem>>, vector<1x1x18x16x128xf32>
    %3 = vector.shape_cast %2 : vector<1x1x18x16x128xf32> to vector<18x16x128xf32>
    %c0_8 = arith.constant 0 : index
    %c0_9 = arith.constant 0 : index
    %c0_10 = arith.constant 0 : index
    %c2 = arith.constant 2 : index
    %c0_11 = arith.constant 0 : index
    %4 = vector.load %arg2[%c0_8, %c0_9, %c0_10, %c2, %c0_11] : memref<1x1x18x18x128xf32, #tpu.memory_space<vmem>>, vector<1x1x18x16x128xf32>
    %5 = vector.shape_cast %4 : vector<1x1x18x16x128xf32> to vector<18x16x128xf32>
    %6 = tpu.concatenate %1, %3 in 2 : vector<18x16x128xf32>, vector<18x16x128xf32> -> vector<18x16x256xf32>
    %7 = tpu.concatenate %3, %5 in 2 : vector<18x16x128xf32>, vector<18x16x128xf32> -> vector<18x16x256xf32>
    %c0_12 = arith.constant 0 : index
    %c0_13 = arith.constant 0 : index
    %8 = vector.load %arg4[%c0_12, %c0_13] : memref<1x128xf32, #tpu.memory_space<vmem>>, vector<1x128xf32>
    %9 = vector.shape_cast %8 : vector<1x128xf32> to vector<128xf32>
    %10 = vector.extract_strided_slice %6 {offsets = [0, 0, 0], sizes = [16, 16, 256], strides = [1, 1, 1]} : vector<18x16x256xf32> to vector<16x16x256xf32>
    %11 = vector.shape_cast %10 : vector<16x16x256xf32> to vector<256x256xf32>
    %12 = vector.extract_strided_slice %6 {offsets = [1, 0, 0], sizes = [16, 16, 256], strides = [1, 1, 1]} : vector<18x16x256xf32> to vector<16x16x256xf32>
    %13 = vector.shape_cast %12 : vector<16x16x256xf32> to vector<256x256xf32>
    %c0_14 = arith.constant 0 : index
    %c0_15 = arith.constant 0 : index
    %c0_16 = arith.constant 0 : index
    %c0_17 = arith.constant 0 : index
    %c0_18 = arith.constant 0 : index
    %14 = vector.load %arg3[%c0_14, %c0_15, %c0_16, %c0_17, %c0_18] : memref<2x2x2x256x128xf32, #tpu.memory_space<vmem>>, vector<1x1x1x256x128xf32>
    %15 = vector.shape_cast %14 : vector<1x1x1x256x128xf32> to vector<256x128xf32>
    %cst = arith.constant dense<0.000000e+00> : vector<256x128xf32>
    %16 = tpu.matmul %11, %15, %cst {dimension_numbers = #tpu.dot_dimension_numbers<[1], [0], [0], [1], [0, 0, 1, 1], [], []>} : vector<256x256xf32>, vector<256x128xf32>, vector<256x128xf32> -> vector<256x128xf32>
    %c0_19 = arith.constant 0 : index
    %c0_20 = arith.constant 0 : index
    %c1_21 = arith.constant 1 : index
    %c0_22 = arith.constant 0 : index
    %c0_23 = arith.constant 0 : index
    %17 = vector.load %arg3[%c0_19, %c0_20, %c1_21, %c0_22, %c0_23] : memref<2x2x2x256x128xf32, #tpu.memory_space<vmem>>, vector<1x1x1x256x128xf32>
    %18 = vector.shape_cast %17 : vector<1x1x1x256x128xf32> to vector<256x128xf32>
    %cst_24 = arith.constant dense<0.000000e+00> : vector<256x128xf32>
    %19 = tpu.matmul %13, %18, %cst_24 {dimension_numbers = #tpu.dot_dimension_numbers<[1], [0], [0], [1], [0, 0, 1, 1], [], []>} : vector<256x256xf32>, vector<256x128xf32>, vector<256x128xf32> -> vector<256x128xf32>
    %20 = arith.addf %16, %19 : vector<256x128xf32>
    %21 = vector.shape_cast %9 : vector<128xf32> to vector<1x128xf32>
    %22 = vector.broadcast %21 : vector<1x128xf32> to vector<256x128xf32>
    %23 = arith.addf %20, %22 : vector<256x128xf32>
    %24 = vector.shape_cast %23 : vector<256x128xf32> to vector<16x16x128xf32>
    %c0_25 = arith.constant 0 : index
    %c0_26 = arith.constant 0 : index
    %c0_27 = arith.constant 0 : index
    %c0_28 = arith.constant 0 : index
    %c0_29 = arith.constant 0 : index
    %c0_30 = arith.constant 0 : index
    %25 = vector.load %arg5[%c0_25, %c0_26, %c0_27, %c0_28, %c0_29, %c0_30] : memref<1x16x2x2x16x128xf32, #tpu.memory_space<vmem>>, vector<1x16x1x1x16x128xf32>
    %26 = vector.shape_cast %25 : vector<1x16x1x1x16x128xf32> to vector<16x16x128xf32>
    %27 = vector.shape_cast %24 : vector<16x16x128xf32> to vector<1x16x1x1x16x128xf32>
    tpu.vector_store %arg5[%c0_25, %c0_26, %c0_27, %c0_28, %c0_29, %c0_30], %27 {strides = array<i32>} : memref<1x16x2x2x16x128xf32, #tpu.memory_space<vmem>>, vector<1x16x1x1x16x128xf32>,
    %28 = vector.extract_strided_slice %7 {offsets = [0, 0, 0], sizes = [16, 16, 256], strides = [1, 1, 1]} : vector<18x16x256xf32> to vector<16x16x256xf32>
    %29 = vector.shape_cast %28 : vector<16x16x256xf32> to vector<256x256xf32>
    %30 = vector.extract_strided_slice %7 {offsets = [1, 0, 0], sizes = [16, 16, 256], strides = [1, 1, 1]} : vector<18x16x256xf32> to vector<16x16x256xf32>
    %31 = vector.shape_cast %30 : vector<16x16x256xf32> to vector<256x256xf32>
    %c0_31 = arith.constant 0 : index
    %c1_32 = arith.constant 1 : index
    %c0_33 = arith.constant 0 : index
    %c0_34 = arith.constant 0 : index
    %c0_35 = arith.constant 0 : index
    %32 = vector.load %arg3[%c0_31, %c1_32, %c0_33, %c0_34, %c0_35] : memref<2x2x2x256x128xf32, #tpu.memory_space<vmem>>, vector<1x1x1x256x128xf32>
    %33 = vector.shape_cast %32 : vector<1x1x1x256x128xf32> to vector<256x128xf32>
    %cst_36 = arith.constant dense<0.000000e+00> : vector<256x128xf32>
    %34 = tpu.matmul %29, %33, %cst_36 {dimension_numbers = #tpu.dot_dimension_numbers<[1], [0], [0], [1], [0, 0, 1, 1], [], []>} : vector<256x256xf32>, vector<256x128xf32>, vector<256x128xf32> -> vector<256x128xf32>
    %c0_37 = arith.constant 0 : index
    %c1_38 = arith.constant 1 : index
    %c1_39 = arith.constant 1 : index
    %c0_40 = arith.constant 0 : index
    %c0_41 = arith.constant 0 : index
    %35 = vector.load %arg3[%c0_37, %c1_38, %c1_39, %c0_40, %c0_41] : memref<2x2x2x256x128xf32, #tpu.memory_space<vmem>>, vector<1x1x1x256x128xf32>
    %36 = vector.shape_cast %35 : vector<1x1x1x256x128xf32> to vector<256x128xf32>
    %cst_42 = arith.constant dense<0.000000e+00> : vector<256x128xf32>
    %37 = tpu.matmul %31, %36, %cst_42 {dimension_numbers = #tpu.dot_dimension_numbers<[1], [0], [0], [1], [0, 0, 1, 1], [], []>} : vector<256x256xf32>, vector<256x128xf32>, vector<256x128xf32> -> vector<256x128xf32>
    %38 = arith.addf %34, %37 : vector<256x128xf32>
    %39 = vector.shape_cast %9 : vector<128xf32> to vector<1x128xf32>
    %40 = vector.broadcast %39 : vector<1x128xf32> to vector<256x128xf32>
    %41 = arith.addf %38, %40 : vector<256x128xf32>
    %42 = vector.shape_cast %41 : vector<256x128xf32> to vector<16x16x128xf32>
    %c0_43 = arith.constant 0 : index
    %c0_44 = arith.constant 0 : index
    %c0_45 = arith.constant 0 : index
    %c1_46 = arith.constant 1 : index
    %c0_47 = arith.constant 0 : index
    %c0_48 = arith.constant 0 : index
    %43 = vector.load %arg5[%c0_43, %c0_44, %c0_45, %c1_46, %c0_47, %c0_48] : memref<1x16x2x2x16x128xf32, #tpu.memory_space<vmem>>, vector<1x16x1x1x16x128xf32>
    %44 = vector.shape_cast %43 : vector<1x16x1x1x16x128xf32> to vector<16x16x128xf32>
    %45 = vector.shape_cast %42 : vector<16x16x128xf32> to vector<1x16x1x1x16x128xf32>
    tpu.vector_store %arg5[%c0_43, %c0_44, %c0_45, %c1_46, %c0_47, %c0_48], %45 {strides = array<i32>} : memref<1x16x2x2x16x128xf32, #tpu.memory_space<vmem>>, vector<1x16x1x1x16x128xf32>,
    %46 = vector.extract_strided_slice %6 {offsets = [1, 0, 0], sizes = [16, 16, 256], strides = [1, 1, 1]} : vector<18x16x256xf32> to vector<16x16x256xf32>
    %47 = vector.shape_cast %46 : vector<16x16x256xf32> to vector<256x256xf32>
    %48 = vector.extract_strided_slice %6 {offsets = [2, 0, 0], sizes = [16, 16, 256], strides = [1, 1, 1]} : vector<18x16x256xf32> to vector<16x16x256xf32>
    %49 = vector.shape_cast %48 : vector<16x16x256xf32> to vector<256x256xf32>
    %c1_49 = arith.constant 1 : index
    %c0_50 = arith.constant 0 : index
    %c0_51 = arith.constant 0 : index
    %c0_52 = arith.constant 0 : index
    %c0_53 = arith.constant 0 : index
    %50 = vector.load %arg3[%c1_49, %c0_50, %c0_51, %c0_52, %c0_53] : memref<2x2x2x256x128xf32, #tpu.memory_space<vmem>>, vector<1x1x1x256x128xf32>
    %51 = vector.shape_cast %50 : vector<1x1x1x256x128xf32> to vector<256x128xf32>
    %cst_54 = arith.constant dense<0.000000e+00> : vector<256x128xf32>
    %52 = tpu.matmul %47, %51, %cst_54 {dimension_numbers = #tpu.dot_dimension_numbers<[1], [0], [0], [1], [0, 0, 1, 1], [], []>} : vector<256x256xf32>, vector<256x128xf32>, vector<256x128xf32> -> vector<256x128xf32>
    %c1_55 = arith.constant 1 : index
    %c0_56 = arith.constant 0 : index
    %c1_57 = arith.constant 1 : index
    %c0_58 = arith.constant 0 : index
    %c0_59 = arith.constant 0 : index
    %53 = vector.load %arg3[%c1_55, %c0_56, %c1_57, %c0_58, %c0_59] : memref<2x2x2x256x128xf32, #tpu.memory_space<vmem>>, vector<1x1x1x256x128xf32>
    %54 = vector.shape_cast %53 : vector<1x1x1x256x128xf32> to vector<256x128xf32>
    %cst_60 = arith.constant dense<0.000000e+00> : vector<256x128xf32>
    %55 = tpu.matmul %49, %54, %cst_60 {dimension_numbers = #tpu.dot_dimension_numbers<[1], [0], [0], [1], [0, 0, 1, 1], [], []>} : vector<256x256xf32>, vector<256x128xf32>, vector<256x128xf32> -> vector<256x128xf32>
    %56 = arith.addf %52, %55 : vector<256x128xf32>
    %57 = vector.shape_cast %9 : vector<128xf32> to vector<1x128xf32>
    %58 = vector.broadcast %57 : vector<1x128xf32> to vector<256x128xf32>
    %59 = arith.addf %56, %58 : vector<256x128xf32>
    %60 = vector.shape_cast %59 : vector<256x128xf32> to vector<16x16x128xf32>
    %c0_61 = arith.constant 0 : index
    %c0_62 = arith.constant 0 : index
    %c1_63 = arith.constant 1 : index
    %c0_64 = arith.constant 0 : index
    %c0_65 = arith.constant 0 : index
    %c0_66 = arith.constant 0 : index
    %61 = vector.load %arg5[%c0_61, %c0_62, %c1_63, %c0_64, %c0_65, %c0_66] : memref<1x16x2x2x16x128xf32, #tpu.memory_space<vmem>>, vector<1x16x1x1x16x128xf32>
    %62 = vector.shape_cast %61 : vector<1x16x1x1x16x128xf32> to vector<16x16x128xf32>
    %63 = vector.shape_cast %60 : vector<16x16x128xf32> to vector<1x16x1x1x16x128xf32>
    tpu.vector_store %arg5[%c0_61, %c0_62, %c1_63, %c0_64, %c0_65, %c0_66], %63 {strides = array<i32>} : memref<1x16x2x2x16x128xf32, #tpu.memory_space<vmem>>, vector<1x16x1x1x16x128xf32>,
    %64 = vector.extract_strided_slice %7 {offsets = [1, 0, 0], sizes = [16, 16, 256], strides = [1, 1, 1]} : vector<18x16x256xf32> to vector<16x16x256xf32>
    %65 = vector.shape_cast %64 : vector<16x16x256xf32> to vector<256x256xf32>
    %66 = vector.extract_strided_slice %7 {offsets = [2, 0, 0], sizes = [16, 16, 256], strides = [1, 1, 1]} : vector<18x16x256xf32> to vector<16x16x256xf32>
    %67 = vector.shape_cast %66 : vector<16x16x256xf32> to vector<256x256xf32>
    %c1_67 = arith.constant 1 : index
    %c1_68 = arith.constant 1 : index
    %c0_69 = arith.constant 0 : index
    %c0_70 = arith.constant 0 : index
    %c0_71 = arith.constant 0 : index
    %68 = vector.load %arg3[%c1_67, %c1_68, %c0_69, %c0_70, %c0_71] : memref<2x2x2x256x128xf32, #tpu.memory_space<vmem>>, vector<1x1x1x256x128xf32>
    %69 = vector.shape_cast %68 : vector<1x1x1x256x128xf32> to vector<256x128xf32>
    %cst_72 = arith.constant dense<0.000000e+00> : vector<256x128xf32>
    %70 = tpu.matmul %65, %69, %cst_72 {dimension_numbers = #tpu.dot_dimension_numbers<[1], [0], [0], [1], [0, 0, 1, 1], [], []>} : vector<256x256xf32>, vector<256x128xf32>, vector<256x128xf32> -> vector<256x128xf32>
    %c1_73 = arith.constant 1 : index
    %c1_74 = arith.constant 1 : index
    %c1_75 = arith.constant 1 : index
    %c0_76 = arith.constant 0 : index
    %c0_77 = arith.constant 0 : index
    %71 = vector.load %arg3[%c1_73, %c1_74, %c1_75, %c0_76, %c0_77] : memref<2x2x2x256x128xf32, #tpu.memory_space<vmem>>, vector<1x1x1x256x128xf32>
    %72 = vector.shape_cast %71 : vector<1x1x1x256x128xf32> to vector<256x128xf32>
    %cst_78 = arith.constant dense<0.000000e+00> : vector<256x128xf32>
    %73 = tpu.matmul %67, %72, %cst_78 {dimension_numbers = #tpu.dot_dimension_numbers<[1], [0], [0], [1], [0, 0, 1, 1], [], []>} : vector<256x256xf32>, vector<256x128xf32>, vector<256x128xf32> -> vector<256x128xf32>
    %74 = arith.addf %70, %73 : vector<256x128xf32>
    %75 = vector.shape_cast %9 : vector<128xf32> to vector<1x128xf32>
    %76 = vector.broadcast %75 : vector<1x128xf32> to vector<256x128xf32>
    %77 = arith.addf %74, %76 : vector<256x128xf32>
    %78 = vector.shape_cast %77 : vector<256x128xf32> to vector<16x16x128xf32>
    %c0_79 = arith.constant 0 : index
    %c0_80 = arith.constant 0 : index
    %c1_81 = arith.constant 1 : index
    %c1_82 = arith.constant 1 : index
    %c0_83 = arith.constant 0 : index
    %c0_84 = arith.constant 0 : index
    %79 = vector.load %arg5[%c0_79, %c0_80, %c1_81, %c1_82, %c0_83, %c0_84] : memref<1x16x2x2x16x128xf32, #tpu.memory_space<vmem>>, vector<1x16x1x1x16x128xf32>
    %80 = vector.shape_cast %79 : vector<1x16x1x1x16x128xf32> to vector<16x16x128xf32>
    %81 = vector.shape_cast %78 : vector<16x16x128xf32> to vector<1x16x1x1x16x128xf32>
    tpu.vector_store %arg5[%c0_79, %c0_80, %c1_81, %c1_82, %c0_83, %c0_84], %81 {strides = array<i32>} : memref<1x16x2x2x16x128xf32, #tpu.memory_space<vmem>>, vector<1x16x1x1x16x128xf32>,
    return
  }
  func.func @transform_0(%arg0: i32, %arg1: i32) -> (i32, i32, i32, i32, i32) {
    %c0_i32 = arith.constant 0 : i32
    %c0_i32_0 = arith.constant 0 : i32
    %c0_i32_1 = arith.constant 0 : i32
    %c0_i32_2 = arith.constant 0 : i32
    return %arg0, %arg1, %c0_i32, %c0_i32_0, %c0_i32_1 : i32, i32, i32, i32, i32
  }
  func.func @transform_1(%arg0: i32, %arg1: i32) -> (i32, i32, i32, i32, i32) {
    %c0_i32 = arith.constant 0 : i32
    %c0_i32_0 = arith.constant 0 : i32
    %c0_i32_1 = arith.constant 0 : i32
    %c0_i32_2 = arith.constant 0 : i32
    %c0_i32_3 = arith.constant 0 : i32
    %c0_i32_4 = arith.constant 0 : i32
    return %c0_i32, %c0_i32_0, %c0_i32_1, %c0_i32_2, %c0_i32_3 : i32, i32, i32, i32, i32
  }
  func.func @transform_2(%arg0: i32, %arg1: i32) -> (i32, i32) {
    %c0_i32 = arith.constant 0 : i32
    %c0_i32_0 = arith.constant 0 : i32
    %c0_i32_1 = arith.constant 0 : i32
    return %c0_i32, %c0_i32_0 : i32, i32
  }
  func.func @transform_3(%arg0: i32, %arg1: i32) -> (i32, i32, i32, i32, i32, i32) {
    %c0_i32 = arith.constant 0 : i32
    %c0_i32_0 = arith.constant 0 : i32
    %c0_i32_1 = arith.constant 0 : i32
    %c0_i32_2 = arith.constant 0 : i32
    %c0_i32_3 = arith.constant 0 : i32
    return %arg0, %arg1, %c0_i32, %c0_i32_0, %c0_i32_1, %c0_i32_2 : i32, i32, i32, i32, i32, i32
  }
}

</mosaic_0001>

<llo_original>
// kernel: tpu_custom_call.1
$region0: #{tpu_custom_call.1}
  #allocation0 [shape = 'u32[]', space=smem, size = 0x4, offset = 0x4, fixed_abs, tag = 'smem constant byte address 0x4 - core index']
  #allocation1 [shape = 'u32[144,128]{1,0:T(1,128)}', space=vmem, size = 0x12000, scoped, tag = 'internal scratch']
  %s0 = inlined_call_operand.vmem [shape: f32[2,1,18,18,128], index: 0, kind: input, shape index: {}]
  %s1 = inlined_call_operand.hbm [shape: f32[2,2,2,256,128], index: 1, kind: input, shape index: {}]
  %s2 = inlined_call_operand.vmem [shape: f32[1,128], index: 2, kind: input, shape index: {}]
  %s3 = inlined_call_operand.hbm [shape: f32[2,16,2,2,16,128], index: 3, kind: output, shape index: {}]
  %s4 = sld [smem:[#allocation0]]
  $region49: #{tpu_custom_call.1} parent=0
    _
  %s6 = ssub.s32 1, %s4
  %s7 = scalar_select 0, %s6, %s4
  $region1: #{tpu_custom_call.1} parent=0
    #allocation2 [shape = 'u8[1048576]{0}', space=vmem, size = 0x100000, scoped, tag = 'input window, operand 1, single buffered']
    #allocation3 [shape = 's32[2]{0}', space=sflag, size = 0x8, scoped, tag = 'scoped memory for tpu_custom_call.1']
    #allocation4 [shape = 's32[2]{0}', space=sflag, size = 0x8, scoped, tag = 'scoped memory for tpu_custom_call.1']
    #allocation5 [shape = 'u8[1048576]{0}', space=vmem, size = 0x100000, scoped, tag = 'output window, operand 0']
    %8 = vsyncpa [#allocation3], 0
    %9 = vsyncpa [#allocation4], 0
    %s10 = scalar_lea.sflag [#allocation4], 1
    %11 = vsyncpa %s10, 0
    loop: start=0, step=1, limit=4
    $region2: #{tpu_custom_call.1} parent=1 // loop_pre_header
      _
    $region3: #{tpu_custom_call.1} parent=1 // loop_header
      %s13 = sphi 0, %s17
      %p14 = scmp.ge.s32.totalorder %s13, 4
      %s20 = sphi 0, %s32
      %s21 = sphi 0, %s28
      %s22 = sphi 0, %s20
      %s23 = sphi 0, %s21
      %s24 = sphi 0, %s22
      %s25 = sphi 0, %s23
      %s37 = sphi 0, %s39
      %s40 = sphi 0, %s37
      %s41 = sphi 0, %s40
      %s57 = sphi 0, %s41
      %s61 = sphi 0, %s61
      %s63 = sphi 0, %s61
      %s64 = sphi 0, %s63
      %s78 = sphi 0, %s64
      %s82 = sphi 0, %s82
      %s84 = sphi 0, %s82
      %s85 = sphi 0, %s84
      %s99 = sphi 0, %s85
      %s107 = sphi 0, %s109
      %s110 = sphi 0, %s107
      %s111 = sphi 0, %s110
      %s127 = sphi 0, %s111
    $region4: #{tpu_custom_call.1} parent=1 // loop_header_branch
      %16 = sbr.rel (%p14) target = $region8
    $region5: #{tpu_custom_call.1} parent=1 // loop_body
      %s18 = ssub.s32 %s13, 1
      %s19 = ssub.s32 %s13, 2
      %s26 = sadd.s32 1, %s21
      %p27 = scmp.ge.s32.totalorder %s26, 1
      %s28 = scalar_select %p27, 0, %s26
      %s29 = sadd.s32 1, %s20
      %s30 = scalar_select %p27, %s29, %s20
      %p31 = scmp.ge.s32.totalorder %s30, 2
      %s32 = scalar_select %p31, 0, %s30
      %s33 = ssub.s32 %s20, %s32
      %s34 = ssub.s32 %s21, %s28
      %s35 = sor.u32 %s33, %s34
      %p36 = scmp.eq.s32.totalorder %s35, 0
      %s38 = sadd.s32 %s37, 1
      %s39 = scalar_select %p36, %s37, %s38
      %p42 = pneg %p36
      %p43 = scmp.eq.s32.totalorder %s13, 1
      %p44 = por %p42, %p43
      %p45 = scmp.ne.s32.totalorder %s37, %s40
      %p46 = scmp.eq.s32.totalorder %s13, 0
      %p47 = por %p45, %p46
      %p48 = scmp.ne.s32.totalorder %s37, %s40
      %p49 = scmp.eq.s32.totalorder %s18, 1
      %p50 = por %p48, %p49
      %p51 = scmp.ne.s32.totalorder %s40, %s41
      %p52 = scmp.eq.s32.totalorder %s18, 0
      %p53 = por %p51, %p52
      %p54 = scmp.ne.s32.totalorder %s40, %s41
      %p55 = scmp.eq.s32.totalorder %s19, 1
      %p56 = por %p54, %p55
      %p58 = scmp.ne.s32.totalorder %s41, %s57
      %p59 = scmp.eq.s32.totalorder %s19, 0
      %p60 = por %p58, %p59
      %s62 = sadd.s32 %s61, 1
      %p65 = scmp.eq.s32.totalorder %s13, 1
      %p66 = scmp.ne.s32.totalorder %s61, %s63
      %p67 = scmp.eq.s32.totalorder %s13, 0
      %p68 = por %p66, %p67
      %p69 = scmp.ne.s32.totalorder %s61, %s63
      %p70 = scmp.eq.s32.totalorder %s18, 1
      %p71 = por %p69, %p70
      %p72 = scmp.ne.s32.totalorder %s63, %s64
      %p73 = scmp.eq.s32.totalorder %s18, 0
      %p74 = por %p72, %p73
      %p75 = scmp.ne.s32.totalorder %s63, %s64
      %p76 = scmp.eq.s32.totalorder %s19, 1
      %p77 = por %p75, %p76
      %p79 = scmp.ne.s32.totalorder %s64, %s78
      %p80 = scmp.eq.s32.totalorder %s19, 0
      %p81 = por %p79, %p80
      %s83 = sadd.s32 %s82, 1
      %p86 = scmp.eq.s32.totalorder %s13, 1
      %p87 = scmp.ne.s32.totalorder %s82, %s84
      %p88 = scmp.eq.s32.totalorder %s13, 0
      %p89 = por %p87, %p88
      %p90 = scmp.ne.s32.totalorder %s82, %s84
      %p91 = scmp.eq.s32.totalorder %s18, 1
      %p92 = por %p90, %p91
      %p93 = scmp.ne.s32.totalorder %s84, %s85
      %p94 = scmp.eq.s32.totalorder %s18, 0
      %p95 = por %p93, %p94
      %p96 = scmp.ne.s32.totalorder %s84, %s85
      %p97 = scmp.eq.s32.totalorder %s19, 1
      %p98 = por %p96, %p97
      %p100 = scmp.ne.s32.totalorder %s85, %s99
      %p101 = scmp.eq.s32.totalorder %s19, 0
      %p102 = por %p100, %p101
      %s103 = ssub.s32 %s20, %s32
      %s104 = ssub.s32 %s21, %s28
      %s105 = sor.u32 %s103, %s104
      %p106 = scmp.eq.s32.totalorder %s105, 0
      %s108 = sadd.s32 %s107, 1
      %s109 = scalar_select %p106, %s107, %s108
      %p112 = pneg %p106
      %p113 = scmp.eq.s32.totalorder %s13, 1
      %p114 = por %p112, %p113
      %p115 = scmp.ne.s32.totalorder %s107, %s110
      %p116 = scmp.eq.s32.totalorder %s13, 0
      %p117 = por %p115, %p116
      %p118 = scmp.ne.s32.totalorder %s107, %s110
      %p119 = scmp.eq.s32.totalorder %s18, 1
      %p120 = por %p118, %p119
      %p121 = scmp.ne.s32.totalorder %s110, %s111
      %p122 = scmp.eq.s32.totalorder %s18, 0
      %p123 = por %p121, %p122
      %p124 = scmp.ne.s32.totalorder %s110, %s111
      %p125 = scmp.eq.s32.totalorder %s19, 1
      %p126 = por %p124, %p125
      %p128 = scmp.ne.s32.totalorder %s111, %s127
      %p129 = scmp.eq.s32.totalorder %s19, 0
      %p130 = por %p128, %p129
      %p131 = scmp.le.s32.totalorder 1, %s13
      %p132 = scmp.lt.s32.totalorder %s13, 3
      %p133 = pnand %p131, %p132
      %p134 = pneg %p133
      // Predicated region
      $region9: #{tpu_custom_call.1} parent=5 // pred_check
        _
      $region10: #{tpu_custom_call.1} parent=5 // pred_check_branch
        %136 = sbr.rel (%p133) target = $region12
      $region11: #{tpu_custom_call.1} parent=5 // pred_region
        %s137 = ssub.s32 %s13, 1
        // Predicated region
        $region13: #{tpu_custom_call.1} parent=11 // pred_check
          %p138 = pneg %p74
        $region14: #{tpu_custom_call.1} parent=11 // pred_check_branch
          %140 = sbr.rel (%p138) target = $region16
        $region15: #{tpu_custom_call.1} parent=11 // pred_region
          %s142 = ssub.s32 32768, 32768
          %143 = vsyncadd [#allocation3], %s142
          %s144 = sshll.u32 [#allocation2], 4
          %s145 = int_to_ptr.vmem [resolvable:$true] %s144
          %150 = dma.hbm_to_vmem [thread:$0]  %s1, 32768, %s145, [#allocation3], 128, 128, 8
        $region16: #{tpu_custom_call.1} parent=11 // pred_fallthru
          _
        // Predicated region
        $region17: #{tpu_custom_call.1} parent=11 // pred_check
          %p151 = pneg %p95
        $region18: #{tpu_custom_call.1} parent=11 // pred_check_branch
          %153 = sbr.rel (%p151) target = $region20
        $region19: #{tpu_custom_call.1} parent=11 // pred_region
          _
        $region20: #{tpu_custom_call.1} parent=11 // pred_fallthru
          _
      $region12: #{tpu_custom_call.1} parent=5 // pred_fallthru
        _
      %p154 = scmp.lt.s32.totalorder %s13, 2
      // Predicated region
      $region21: #{tpu_custom_call.1} parent=5 // pred_check
        %p155 = pneg %p154
      $region22: #{tpu_custom_call.1} parent=5 // pred_check_branch
        %157 = sbr.rel (%p155) target = $region24
      $region23: #{tpu_custom_call.1} parent=5 // pred_region
        // Predicated region
        $region25: #{tpu_custom_call.1} parent=23 // pred_check
          %p158 = pneg %p47
        $region26: #{tpu_custom_call.1} parent=23 // pred_check_branch
          %160 = sbr.rel (%p158) target = $region28
        $region27: #{tpu_custom_call.1} parent=23 // pred_region
          %p161 = scmp.lt.s32.totalorder %s20, 1
          %s162 = scalar_select %p161, %s20, 1
          %p163 = scmp.lt.s32.totalorder %s21, 0
          %s164 = scalar_select %p163, %s21, 0
          %s165 = smul.addr %s164, 54
          %s166 = smul.addr %s162, 54
          %s167 = sadd.s32 %s165, %s166
          %s168 = smul.addr %s167, 8
          %s169 = scalar_lea.vmem %s0, %s168
        $region28: #{tpu_custom_call.1} parent=23 // pred_fallthru
          _
      $region24: #{tpu_custom_call.1} parent=5 // pred_fallthru
        _
      %p170 = scmp.le.s32.totalorder 1, %s13
      %p171 = scmp.lt.s32.totalorder %s13, 3
      %p172 = pnand %p170, %p171
      %p173 = pneg %p172
      // Predicated region
      $region29: #{tpu_custom_call.1} parent=5 // pred_check
        _
      $region30: #{tpu_custom_call.1} parent=5 // pred_check_branch
        %175 = sbr.rel (%p172) target = $region32
      $region31: #{tpu_custom_call.1} parent=5 // pred_region
        %s176 = ssub.s32 %s13, 1
        // Predicated region
        $region33: #{tpu_custom_call.1} parent=31 // pred_check
          %p177 = pneg %p74
        $region34: #{tpu_custom_call.1} parent=31 // pred_check_branch
          %179 = sbr.rel (%p177) target = $region36
        $region35: #{tpu_custom_call.1} parent=31 // pred_region
          %180 = dma.done [#allocation3], 32768
        $region36: #{tpu_custom_call.1} parent=31 // pred_fallthru
          _
        %p181 = scmp.lt.s32.totalorder %s22, 1
        %s182 = scalar_select %p181, %s22, 1
        %p183 = scmp.lt.s32.totalorder %s23, 0
        %s184 = scalar_select %p183, %s23, 0
        %s185 = smul.addr %s184, 54
        %s186 = smul.addr %s182, 54
        %s187 = sadd.s32 %s185, %s186
        %s188 = smul.addr %s187, 8
        %s189 = scalar_lea.vmem %s0, %s188
        %p190 = pneg %p53
        %p191 = pneg %p50
        %p192 = pneg %p74
        %p193 = pneg %p71
        %p194 = pneg %p95
        %p195 = pneg %p92
        %p196 = pneg %p123
        %p197 = pneg %p120
        %s198 = sand.u32 %s110, 1
        %s199 = scalar_lea.sflag [#allocation4], %s198
        %s200 = sand.u32 %s110, 1
        %s201 = smul.addr %s200, 1024
        %s202 = scalar_lea.vmem [#allocation5], %s201
        %p203 = scmp.lt.s32.totalorder %s22, 1
        %s204 = scalar_select %p203, %s22, 1
        %p205 = scmp.lt.s32.totalorder %s23, 0
        %s206 = scalar_select %p205, %s23, 0
        %s207 = smul.addr %s206, 54
        %s208 = smul.addr %s204, 54
        %s209 = sadd.s32 %s207, %s208
        %s210 = smul.addr %s209, 8
        %s211 = scalar_lea.vmem %s0, %s210
        %s212 = smul.u32 16, %s23
        %v213 = vld [vmem:[%s211] sm:$0xff]
        %v214 = vld [vmem:[%s211 + $0x8] sm:$0xff]
        %v215 = vld [vmem:[%s211 + $0x18] sm:$0xff]
        %v216 = vld [vmem:[%s211 + $0x20] sm:$0xff]
        %v217 = vld [vmem:[%s211 + $0x30] sm:$0xff]
        %v218 = vld [vmem:[%s211 + $0x38] sm:$0xff]
        %v219 = vld [vmem:[%s211 + $0x48] sm:$0xff]
        %v220 = vld [vmem:[%s211 + $0x50] sm:$0xff]
        %v221 = vld [vmem:[%s211 + $0x60] sm:$0xff]
        %v222 = vld [vmem:[%s211 + $0x68] sm:$0xff]
        %v223 = vld [vmem:[%s211 + $0x78] sm:$0xff]
        %v224 = vld [vmem:[%s211 + $0x80] sm:$0xff]
        %v225 = vld [vmem:[%s211 + $0x90] sm:$0xff]
        %v226 = vld [vmem:[%s211 + $0x98] sm:$0xff]
        %v227 = vld [vmem:[%s211 + $0xa8] sm:$0xff]
        %v228 = vld [vmem:[%s211 + $0xb0] sm:$0xff]
        %v229 = vld [vmem:[%s211 + $0xc0] sm:$0xff]
        %v230 = vld [vmem:[%s211 + $0xc8] sm:$0xff]
        %v231 = vld [vmem:[%s211 + $0xd8] sm:$0xff]
        %v232 = vld [vmem:[%s211 + $0xe0] sm:$0xff]
        %v233 = vld [vmem:[%s211 + $0xf0] sm:$0xff]
        %v234 = vld [vmem:[%s211 + $0xf8] sm:$0xff]
        %v235 = vld [vmem:[%s211 + $0x108] sm:$0xff]
        %v236 = vld [vmem:[%s211 + $0x110] sm:$0xff]
        %v237 = vld [vmem:[%s211 + $0x120] sm:$0xff]
        %v238 = vld [vmem:[%s211 + $0x128] sm:$0xff]
        %v239 = vld [vmem:[%s211 + $0x138] sm:$0xff]
        %v240 = vld [vmem:[%s211 + $0x140] sm:$0xff]
        %v241 = vld [vmem:[%s211 + $0x150] sm:$0xff]
        %v242 = vld [vmem:[%s211 + $0x158] sm:$0xff]
        %v243 = vld [vmem:[%s211 + $0x168] sm:$0xff]
        %v244 = vld [vmem:[%s211 + $0x170] sm:$0xff]
        %v245 = vld [vmem:[%s211 + $0x180] sm:$0xff]
        %v246 = vld [vmem:[%s211 + $0x188] sm:$0xff]
        %v247 = vld [vmem:[%s211 + $0x198] sm:$0xff]
        %v248 = vld [vmem:[%s211 + $0x1a0] sm:$0xff]
        %v249 = vld [vmem:[%s211 + $0x1] sm:$0xff]
        %v250 = vld [vmem:[%s211 + $0x9] sm:$0xff]
        %v251 = vld [vmem:[%s211 + $0x19] sm:$0xff]
        %v252 = vld [vmem:[%s211 + $0x21] sm:$0xff]
        %v253 = vld [vmem:[%s211 + $0x31] sm:$0xff]
        %v254 = vld [vmem:[%s211 + $0x39] sm:$0xff]
        %v255 = vld [vmem:[%s211 + $0x49] sm:$0xff]
        %v256 = vld [vmem:[%s211 + $0x51] sm:$0xff]
        %v257 = vld [vmem:[%s211 + $0x61] sm:$0xff]
        %v258 = vld [vmem:[%s211 + $0x69] sm:$0xff]
        %v259 = vld [vmem:[%s211 + $0x79] sm:$0xff]
        %v260 = vld [vmem:[%s211 + $0x81] sm:$0xff]
        %v261 = vld [vmem:[%s211 + $0x91] sm:$0xff]
        %v262 = vld [vmem:[%s211 + $0x99] sm:$0xff]
        %v263 = vld [vmem:[%s211 + $0xa9] sm:$0xff]
        %v264 = vld [vmem:[%s211 + $0xb1] sm:$0xff]
        %v265 = vld [vmem:[%s211 + $0xc1] sm:$0xff]
        %v266 = vld [vmem:[%s211 + $0xc9] sm:$0xff]
        %v267 = vld [vmem:[%s211 + $0xd9] sm:$0xff]
        %v268 = vld [vmem:[%s211 + $0xe1] sm:$0xff]
        %v269 = vld [vmem:[%s211 + $0xf1] sm:$0xff]
        %v270 = vld [vmem:[%s211 + $0xf9] sm:$0xff]
        %v271 = vld [vmem:[%s211 + $0x109] sm:$0xff]
        %v272 = vld [vmem:[%s211 + $0x111] sm:$0xff]
        %v273 = vld [vmem:[%s211 + $0x121] sm:$0xff]
        %v274 = vld [vmem:[%s211 + $0x129] sm:$0xff]
        %v275 = vld [vmem:[%s211 + $0x139] sm:$0xff]
        %v276 = vld [vmem:[%s211 + $0x141] sm:$0xff]
        %v277 = vld [vmem:[%s211 + $0x151] sm:$0xff]
        %v278 = vld [vmem:[%s211 + $0x159] sm:$0xff]
        %v279 = vld [vmem:[%s211 + $0x169] sm:$0xff]
        %v280 = vld [vmem:[%s211 + $0x171] sm:$0xff]
        %v281 = vld [vmem:[%s211 + $0x181] sm:$0xff]
        %v282 = vld [vmem:[%s211 + $0x189] sm:$0xff]
        %v283 = vld [vmem:[%s211 + $0x199] sm:$0xff]
        %v284 = vld [vmem:[%s211 + $0x1a1] sm:$0xff]
        %v285 = vld [vmem:[%s211 + $0x2] sm:$0xff]
        %v286 = vld [vmem:[%s211 + $0xa] sm:$0xff]
        %v287 = vld [vmem:[%s211 + $0x1a] sm:$0xff]
        %v288 = vld [vmem:[%s211 + $0x22] sm:$0xff]
        %v289 = vld [vmem:[%s211 + $0x32] sm:$0xff]
        %v290 = vld [vmem:[%s211 + $0x3a] sm:$0xff]
        %v291 = vld [vmem:[%s211 + $0x4a] sm:$0xff]
        %v292 = vld [vmem:[%s211 + $0x52] sm:$0xff]
        %v293 = vld [vmem:[%s211 + $0x62] sm:$0xff]
        %v294 = vld [vmem:[%s211 + $0x6a] sm:$0xff]
        %v295 = vld [vmem:[%s211 + $0x7a] sm:$0xff]
        %v296 = vld [vmem:[%s211 + $0x82] sm:$0xff]
        %v297 = vld [vmem:[%s211 + $0x92] sm:$0xff]
        %v298 = vld [vmem:[%s211 + $0x9a] sm:$0xff]
        %v299 = vld [vmem:[%s211 + $0xaa] sm:$0xff]
        %v300 = vld [vmem:[%s211 + $0xb2] sm:$0xff]
        %v301 = vld [vmem:[%s211 + $0xc2] sm:$0xff]
        %v302 = vld [vmem:[%s211 + $0xca] sm:$0xff]
        %v303 = vld [vmem:[%s211 + $0xda] sm:$0xff]
        %v304 = vld [vmem:[%s211 + $0xe2] sm:$0xff]
        %v305 = vld [vmem:[%s211 + $0xf2] sm:$0xff]
        %v306 = vld [vmem:[%s211 + $0xfa] sm:$0xff]
        %v307 = vld [vmem:[%s211 + $0x10a] sm:$0xff]
        %v308 = vld [vmem:[%s211 + $0x112] sm:$0xff]
        %v309 = vld [vmem:[%s211 + $0x122] sm:$0xff]
        %v310 = vld [vmem:[%s211 + $0x12a] sm:$0xff]
        %v311 = vld [vmem:[%s211 + $0x13a] sm:$0xff]
        %v312 = vld [vmem:[%s211 + $0x142] sm:$0xff]
        %v313 = vld [vmem:[%s211 + $0x152] sm:$0xff]
        %v314 = vld [vmem:[%s211 + $0x15a] sm:$0xff]
        %v315 = vld [vmem:[%s211 + $0x16a] sm:$0xff]
        %v316 = vld [vmem:[%s211 + $0x172] sm:$0xff]
        %v317 = vld [vmem:[%s211 + $0x182] sm:$0xff]
        %v318 = vld [vmem:[%s211 + $0x18a] sm:$0xff]
        %v319 = vld [vmem:[%s211 + $0x19a] sm:$0xff]
        %v320 = vld [vmem:[%s211 + $0x1a2] sm:$0xff]
        %v321 = vld [vmem:[%s2] sm:$0x1]
        %v322 = vld [vmem:[#allocation2] sm:$0xff]
        %v323 = vld [vmem:[#allocation2 + $0x8] sm:$0xff]
        %v324 = vld [vmem:[#allocation2 + $0x10] sm:$0xff]
        %v325 = vld [vmem:[#allocation2 + $0x18] sm:$0xff]
        %v326 = vld [vmem:[#allocation2 + $0x20] sm:$0xff]
        %v327 = vld [vmem:[#allocation2 + $0x28] sm:$0xff]
        %v328 = vld [vmem:[#allocation2 + $0x30] sm:$0xff]
        %v329 = vld [vmem:[#allocation2 + $0x38] sm:$0xff]
        %v330 = vld [vmem:[#allocation2 + $0x40] sm:$0xff]
        %v331 = vld [vmem:[#allocation2 + $0x48] sm:$0xff]
        %v332 = vld [vmem:[#allocation2 + $0x50] sm:$0xff]
        %v333 = vld [vmem:[#allocation2 + $0x58] sm:$0xff]
        %v334 = vld [vmem:[#allocation2 + $0x60] sm:$0xff]
        %v335 = vld [vmem:[#allocation2 + $0x68] sm:$0xff]
        %v336 = vld [vmem:[#allocation2 + $0x70] sm:$0xff]
        %v337 = vld [vmem:[#allocation2 + $0x78] sm:$0xff]
        %v338 = vld [vmem:[#allocation2 + $0x80] sm:$0xff]
        %v339 = vld [vmem:[#allocation2 + $0x88] sm:$0xff]
        %v340 = vld [vmem:[#allocation2 + $0x90] sm:$0xff]
        %v341 = vld [vmem:[#allocation2 + $0x98] sm:$0xff]
        %v342 = vld [vmem:[#allocation2 + $0xa0] sm:$0xff]
        %v343 = vld [vmem:[#allocation2 + $0xa8] sm:$0xff]
        %v344 = vld [vmem:[#allocation2 + $0xb0] sm:$0xff]
        %v345 = vld [vmem:[#allocation2 + $0xb8] sm:$0xff]
        %v346 = vld [vmem:[#allocation2 + $0xc0] sm:$0xff]
        %v347 = vld [vmem:[#allocation2 + $0xc8] sm:$0xff]
        %v348 = vld [vmem:[#allocation2 + $0xd0] sm:$0xff]
        %v349 = vld [vmem:[#allocation2 + $0xd8] sm:$0xff]
        %v350 = vld [vmem:[#allocation2 + $0xe0] sm:$0xff]
        %v351 = vld [vmem:[#allocation2 + $0xe8] sm:$0xff]
        %v352 = vld [vmem:[#allocation2 + $0xf0] sm:$0xff]
        %v353 = vld [vmem:[#allocation2 + $0xf8] sm:$0xff]
        %s354 = scalar_lea.vmem [#allocation2], 256
        %v355 = vld [vmem:[%s354] sm:$0xff]
        %v356 = vld [vmem:[%s354 + $0x8] sm:$0xff]
        %v357 = vld [vmem:[%s354 + $0x10] sm:$0xff]
        %v358 = vld [vmem:[%s354 + $0x18] sm:$0xff]
        %v359 = vld [vmem:[%s354 + $0x20] sm:$0xff]
        %v360 = vld [vmem:[%s354 + $0x28] sm:$0xff]
        %v361 = vld [vmem:[%s354 + $0x30] sm:$0xff]
        %v362 = vld [vmem:[%s354 + $0x38] sm:$0xff]
        %v363 = vld [vmem:[%s354 + $0x40] sm:$0xff]
        %v364 = vld [vmem:[%s354 + $0x48] sm:$0xff]
        %v365 = vld [vmem:[%s354 + $0x50] sm:$0xff]
        %v366 = vld [vmem:[%s354 + $0x58] sm:$0xff]
        %v367 = vld [vmem:[%s354 + $0x60] sm:$0xff]
        %v368 = vld [vmem:[%s354 + $0x68] sm:$0xff]
        %v369 = vld [vmem:[%s354 + $0x70] sm:$0xff]
        %v370 = vld [vmem:[%s354 + $0x78] sm:$0xff]
        %v371 = vld [vmem:[%s354 + $0x80] sm:$0xff]
        %v372 = vld [vmem:[%s354 + $0x88] sm:$0xff]
        %v373 = vld [vmem:[%s354 + $0x90] sm:$0xff]
        %v374 = vld [vmem:[%s354 + $0x98] sm:$0xff]
        %v375 = vld [vmem:[%s354 + $0xa0] sm:$0xff]
        %v376 = vld [vmem:[%s354 + $0xa8] sm:$0xff]
        %v377 = vld [vmem:[%s354 + $0xb0] sm:$0xff]
        %v378 = vld [vmem:[%s354 + $0xb8] sm:$0xff]
        %v379 = vld [vmem:[%s354 + $0xc0] sm:$0xff]
        %v380 = vld [vmem:[%s354 + $0xc8] sm:$0xff]
        %v381 = vld [vmem:[%s354 + $0xd0] sm:$0xff]
        %v382 = vld [vmem:[%s354 + $0xd8] sm:$0xff]
        %v383 = vld [vmem:[%s354 + $0xe0] sm:$0xff]
        %v384 = vld [vmem:[%s354 + $0xe8] sm:$0xff]
        %v385 = vld [vmem:[%s354 + $0xf0] sm:$0xff]
        %v386 = vld [vmem:[%s354 + $0xf8] sm:$0xff]
        %387 = vmatprep.subr.mxu0 0.0
        %388 = vmatpush1.msra.mxu0 %v355
        %389 = vmatprep.subr.mxu0 0.0
        %390 = vmatpush1.msra.mxu0 %v356
        %391 = vmatprep.subr.mxu0 0.0
        %392 = vmatpush1.msra.mxu0 %v357
        %393 = vmatprep.subr.mxu0 0.0
        %394 = vmatpush1.msra.mxu0 %v358
        %395 = vmatprep.subr.mxu0 0.0
        %396 = vmatpush1.msra.mxu0 %v359
        %397 = vmatprep.subr.mxu0 0.0
        %398 = vmatpush1.msra.mxu0 %v360
        %399 = vmatprep.subr.mxu0 0.0
        %400 = vmatpush1.msra.mxu0 %v361
        %401 = vmatprep.subr.mxu0 0.0
        %402 = vmatpush1.msra.mxu0 %v362
        %403 = vmatprep.subr.mxu0 0.0
        %404 = vmatpush1.msra.mxu0 %v363
        %405 = vmatprep.subr.mxu0 0.0
        %406 = vmatpush1.msra.mxu0 %v364
        %407 = vmatprep.subr.mxu0 0.0
        %408 = vmatpush1.msra.mxu0 %v365
        %409 = vmatprep.subr.mxu0 0.0
        %410 = vmatpush1.msra.mxu0 %v366
        %411 = vmatprep.subr.mxu0 0.0
        %412 = vmatpush1.msra.mxu0 %v367
        %413 = vmatprep.subr.mxu0 0.0
        %414 = vmatpush1.msra.mxu0 %v368
        %415 = vmatprep.subr.mxu0 0.0
        %416 = vmatpush1.msra.mxu0 %v369
        %417 = vmatprep.subr.mxu0 0.0
        %418 = vmatpush1.msra.mxu0 %v370
        %419 = vmatprep.subr.mxu0 0.0
        %420 = vmatpush1.msra.mxu0 %v371
        %421 = vmatprep.subr.mxu0 0.0
        %422 = vmatpush1.msra.mxu0 %v372
        %423 = vmatprep.subr.mxu0 0.0
        %424 = vmatpush1.msra.mxu0 %v373
        %425 = vmatprep.subr.mxu0 0.0
        %426 = vmatpush1.msra.mxu0 %v374
        %427 = vmatprep.subr.mxu0 0.0
        %428 = vmatpush1.msra.mxu0 %v375
        %429 = vmatprep.subr.mxu0 0.0
        %430 = vmatpush1.msra.mxu0 %v376
        %431 = vmatprep.subr.mxu0 0.0
        %432 = vmatpush1.msra.mxu0 %v377
        %433 = vmatprep.subr.mxu0 0.0
        %434 = vmatpush1.msra.mxu0 %v378
        %435 = vmatprep.subr.mxu0 0.0
        %436 = vmatpush1.msra.mxu0 %v379
        %437 = vmatprep.subr.mxu0 0.0
        %438 = vmatpush1.msra.mxu0 %v380
        %439 = vmatprep.subr.mxu0 0.0
        %440 = vmatpush1.msra.mxu0 %v381
        %441 = vmatprep.subr.mxu0 0.0
        %442 = vmatpush1.msra.mxu0 %v382
        %443 = vmatprep.subr.mxu0 0.0
        %444 = vmatpush1.msra.mxu0 %v383
        %445 = vmatprep.subr.mxu0 0.0
        %446 = vmatpush1.msra.mxu0 %v384
        %447 = vmatprep.subr.mxu0 0.0
        %448 = vmatpush1.msra.mxu0 %v385
        %449 = vmatprep.subr.mxu0 0.0
        %450 = vmatpush1.msra.mxu0 %v386
        %451 = vmatprep.mubr.f32.mxu0 %v251
        %452 = vmatmul.mubr.f32.gmra.mrb[0].mxu0 %v215
        %v453 = vpop.f32.mrb[0].mxu0
        %v454 = vadd.f32 0.0, %v453
        %v455 = vpop.f32.mrb[0].mxu0
        %456 = vmatprep.mubr.f32.mxu0 %v252
        %457 = vmatmul.mubr.f32.gmra.mrb[0].mxu0 %v216
        %v458 = vpop.f32.mrb[0].mxu0
        %v459 = vadd.f32 0.0, %v458
        %v460 = vpop.f32.mrb[0].mxu0
        %461 = vmatprep.mubr.f32.mxu0 %v253
        %462 = vmatmul.mubr.f32.gmra.mrb[0].mxu0 %v217
        %v463 = vpop.f32.mrb[0].mxu0
        %v464 = vadd.f32 0.0, %v463
        %v465 = vpop.f32.mrb[0].mxu0
        %466 = vmatprep.mubr.f32.mxu0 %v254
        %467 = vmatmul.mubr.f32.gmra.mrb[0].mxu0 %v218
        %v468 = vpop.f32.mrb[0].mxu0
        %v469 = vadd.f32 0.0, %v468
        %v470 = vpop.f32.mrb[0].mxu0
        %471 = vmatprep.mubr.f32.mxu0 %v255
        %472 = vmatmul.mubr.f32.gmra.mrb[0].mxu0 %v219
        %v473 = vpop.f32.mrb[0].mxu0
        %v474 = vadd.f32 0.0, %v473
        %v475 = vpop.f32.mrb[0].mxu0
        %476 = vmatprep.mubr.f32.mxu0 %v256
        %477 = vmatmul.mubr.f32.gmra.mrb[0].mxu0 %v220
        %v478 = vpop.f32.mrb[0].mxu0
        %v479 = vadd.f32 0.0, %v478
        %v480 = vpop.f32.mrb[0].mxu0
        %481 = vmatprep.mubr.f32.mxu0 %v257
        %482 = vmatmul.mubr.f32.gmra.mrb[0].mxu0 %v221
        %v483 = vpop.f32.mrb[0].mxu0
        %v484 = vadd.f32 0.0, %v483
        %v485 = vpop.f32.mrb[0].mxu0
        %486 = vmatprep.mubr.f32.mxu0 %v258
        %487 = vmatmul.mubr.f32.gmra.mrb[0].mxu0 %v222
        %v488 = vpop.f32.mrb[0].mxu0
        %v489 = vadd.f32 0.0, %v488
        %v490 = vpop.f32.mrb[0].mxu0
        %491 = vmatprep.mubr.f32.mxu0 %v259
        %492 = vmatmul.mubr.f32.gmra.mrb[0].mxu0 %v223
        %v493 = vpop.f32.mrb[0].mxu0
        %v494 = vadd.f32 0.0, %v493
        %v495 = vpop.f32.mrb[0].mxu0
        %496 = vmatprep.mubr.f32.mxu0 %v260
        %497 = vmatmul.mubr.f32.gmra.mrb[0].mxu0 %v224
        %v498 = vpop.f32.mrb[0].mxu0
        %v499 = vadd.f32 0.0, %v498
        %v500 = vpop.f32.mrb[0].mxu0
        %501 = vmatprep.mubr.f32.mxu0 %v261
        %502 = vmatmul.mubr.f32.gmra.mrb[0].mxu0 %v225
        %v503 = vpop.f32.mrb[0].mxu0
        %v504 = vadd.f32 0.0, %v503
        %v505 = vpop.f32.mrb[0].mxu0
        %506 = vmatprep.mubr.f32.mxu0 %v262
        %507 = vmatmul.mubr.f32.gmra.mrb[0].mxu0 %v226
        %v508 = vpop.f32.mrb[0].mxu0
        %v509 = vadd.f32 0.0, %v508
        %v510 = vpop.f32.mrb[0].mxu0
        %511 = vmatprep.mubr.f32.mxu0 %v263
        %512 = vmatmul.mubr.f32.gmra.mrb[0].mxu0 %v227
        %v513 = vpop.f32.mrb[0].mxu0
        %v514 = vadd.f32 0.0, %v513
        %v515 = vpop.f32.mrb[0].mxu0
        %516 = vmatprep.mubr.f32.mxu0 %v264
        %517 = vmatmul.mubr.f32.gmra.mrb[0].mxu0 %v228
        %v518 = vpop.f32.mrb[0].mxu0
        %v519 = vadd.f32 0.0, %v518
        %v520 = vpop.f32.mrb[0].mxu0
        %521 = vmatprep.mubr.f32.mxu0 %v265
        %522 = vmatmul.mubr.f32.gmra.mrb[0].mxu0 %v229
        %v523 = vpop.f32.mrb[0].mxu0
        %v524 = vadd.f32 0.0, %v523
        %v525 = vpop.f32.mrb[0].mxu0
        %526 = vmatprep.mubr.f32.mxu0 %v266
        %527 = vmatmul.mubr.f32.gmra.mrb[0].mxu0 %v230
        %v528 = vpop.f32.mrb[0].mxu0
        %v529 = vadd.f32 0.0, %v528
        %v530 = vpop.f32.mrb[0].mxu0
        %531 = vmatprep.mubr.f32.mxu0 %v267
        %532 = vmatmul.mubr.f32.gmra.mrb[0].mxu0 %v231
        %v533 = vpop.f32.mrb[0].mxu0
        %v534 = vadd.f32 0.0, %v533
        %v535 = vpop.f32.mrb[0].mxu0
        %536 = vmatprep.mubr.f32.mxu0 %v268
        %537 = vmatmul.mubr.f32.gmra.mrb[0].mxu0 %v232
        %v538 = vpop.f32.mrb[0].mxu0
        %v539 = vadd.f32 0.0, %v538
        %v540 = vpop.f32.mrb[0].mxu0
        %541 = vmatprep.mubr.f32.mxu0 %v269
        %542 = vmatmul.mubr.f32.gmra.mrb[0].mxu0 %v233
        %v543 = vpop.f32.mrb[0].mxu0
        %v544 = vadd.f32 0.0, %v543
        %v545 = vpop.f32.mrb[0].mxu0
        %546 = vmatprep.mubr.f32.mxu0 %v270
        %547 = vmatmul.mubr.f32.gmra.mrb[0].mxu0 %v234
        %v548 = vpop.f32.mrb[0].mxu0
        %v549 = vadd.f32 0.0, %v548
        %v550 = vpop.f32.mrb[0].mxu0
        %551 = vmatprep.mubr.f32.mxu0 %v271
        %552 = vmatmul.mubr.f32.gmra.mrb[0].mxu0 %v235
        %v553 = vpop.f32.mrb[0].mxu0
        %v554 = vadd.f32 0.0, %v553
        %v555 = vpop.f32.mrb[0].mxu0
        %556 = vmatprep.mubr.f32.mxu0 %v272
        %557 = vmatmul.mubr.f32.gmra.mrb[0].mxu0 %v236
        %v558 = vpop.f32.mrb[0].mxu0
        %v559 = vadd.f32 0.0, %v558
        %v560 = vpop.f32.mrb[0].mxu0
        %561 = vmatprep.mubr.f32.mxu0 %v273
        %562 = vmatmul.mubr.f32.gmra.mrb[0].mxu0 %v237
        %v563 = vpop.f32.mrb[0].mxu0
        %v564 = vadd.f32 0.0, %v563
        %v565 = vpop.f32.mrb[0].mxu0
        %566 = vmatprep.mubr.f32.mxu0 %v274
        %567 = vmatmul.mubr.f32.gmra.mrb[0].mxu0 %v238
        %v568 = vpop.f32.mrb[0].mxu0
        %v569 = vadd.f32 0.0, %v568
        %v570 = vpop.f32.mrb[0].mxu0
        %571 = vmatprep.mubr.f32.mxu0 %v275
        %572 = vmatmul.mubr.f32.gmra.mrb[0].mxu0 %v239
        %v573 = vpop.f32.mrb[0].mxu0
        %v574 = vadd.f32 0.0, %v573
        %v575 = vpop.f32.mrb[0].mxu0
        %576 = vmatprep.mubr.f32.mxu0 %v276
        %577 = vmatmul.mubr.f32.gmra.mrb[0].mxu0 %v240
        %v578 = vpop.f32.mrb[0].mxu0
        %v579 = vadd.f32 0.0, %v578
        %v580 = vpop.f32.mrb[0].mxu0
        %581 = vmatprep.mubr.f32.mxu0 %v277
        %582 = vmatmul.mubr.f32.gmra.mrb[0].mxu0 %v241
        %v583 = vpop.f32.mrb[0].mxu0
        %v584 = vadd.f32 0.0, %v583
        %v585 = vpop.f32.mrb[0].mxu0
        %586 = vmatprep.mubr.f32.mxu0 %v278
        %587 = vmatmul.mubr.f32.gmra.mrb[0].mxu0 %v242
        %v588 = vpop.f32.mrb[0].mxu0
        %v589 = vadd.f32 0.0, %v588
        %v590 = vpop.f32.mrb[0].mxu0
        %591 = vmatprep.mubr.f32.mxu0 %v279
        %592 = vmatmul.mubr.f32.gmra.mrb[0].mxu0 %v243
        %v593 = vpop.f32.mrb[0].mxu0
        %v594 = vadd.f32 0.0, %v593
        %v595 = vpop.f32.mrb[0].mxu0
        %596 = vmatprep.mubr.f32.mxu0 %v280
        %597 = vmatmul.mubr.f32.gmra.mrb[0].mxu0 %v244
        %v598 = vpop.f32.mrb[0].mxu0
        %v599 = vadd.f32 0.0, %v598
        %v600 = vpop.f32.mrb[0].mxu0
        %601 = vmatprep.mubr.f32.mxu0 %v281
        %602 = vmatmul.mubr.f32.gmra.mrb[0].mxu0 %v245
        %v603 = vpop.f32.mrb[0].mxu0
        %v604 = vadd.f32 0.0, %v603
        %v605 = vpop.f32.mrb[0].mxu0
        %606 = vmatprep.mubr.f32.mxu0 %v282
        %607 = vmatmul.mubr.f32.gmra.mrb[0].mxu0 %v246
        %v608 = vpop.f32.mrb[0].mxu0
        %v609 = vadd.f32 0.0, %v608
        %v610 = vpop.f32.mrb[0].mxu0
        %611 = vdwg.mxu0
        %612 = vmatprep.subr.mxu0 0.0
        %613 = vmatpush1.msra.mxu0 %v322
        %614 = vmatprep.subr.mxu0 0.0
        %615 = vmatpush1.msra.mxu0 %v323
        %616 = vmatprep.subr.mxu0 0.0
        %617 = vmatpush1.msra.mxu0 %v324
        %618 = vmatprep.subr.mxu0 0.0
        %619 = vmatpush1.msra.mxu0 %v325
        %620 = vmatprep.subr.mxu0 0.0
        %621 = vmatpush1.msra.mxu0 %v326
        %622 = vmatprep.subr.mxu0 0.0
        %623 = vmatpush1.msra.mxu0 %v327
        %624 = vmatprep.subr.mxu0 0.0
        %625 = vmatpush1.msra.mxu0 %v328
        %626 = vmatprep.subr.mxu0 0.0
        %627 = vmatpush1.msra.mxu0 %v329
        %628 = vmatprep.subr.mxu0 0.0
        %629 = vmatpush1.msra.mxu0 %v330
        %630 = vmatprep.subr.mxu0 0.0
        %631 = vmatpush1.msra.mxu0 %v331
        %632 = vmatprep.subr.mxu0 0.0
        %633 = vmatpush1.msra.mxu0 %v332
        %634 = vmatprep.subr.mxu0 0.0
        %635 = vmatpush1.msra.mxu0 %v333
        %636 = vmatprep.subr.mxu0 0.0
        %637 = vmatpush1.msra.mxu0 %v334
        %638 = vmatprep.subr.mxu0 0.0
        %639 = vmatpush1.msra.mxu0 %v335
        %640 = vmatprep.subr.mxu0 0.0
        %641 = vmatpush1.msra.mxu0 %v336
        %642 = vmatprep.subr.mxu0 0.0
        %643 = vmatpush1.msra.mxu0 %v337
        %644 = vmatprep.subr.mxu0 0.0
        %645 = vmatpush1.msra.mxu0 %v338
        %646 = vmatprep.subr.mxu0 0.0
        %647 = vmatpush1.msra.mxu0 %v339
        %648 = vmatprep.subr.mxu0 0.0
        %649 = vmatpush1.msra.mxu0 %v340
        %650 = vmatprep.subr.mxu0 0.0
        %651 = vmatpush1.msra.mxu0 %v341
        %652 = vmatprep.subr.mxu0 0.0
        %653 = vmatpush1.msra.mxu0 %v342
        %654 = vmatprep.subr.mxu0 0.0
        %655 = vmatpush1.msra.mxu0 %v343
        %656 = vmatprep.subr.mxu0 0.0
        %657 = vmatpush1.msra.mxu0 %v344
        %658 = vmatprep.subr.mxu0 0.0
        %659 = vmatpush1.msra.mxu0 %v345
        %660 = vmatprep.subr.mxu0 0.0
        %661 = vmatpush1.msra.mxu0 %v346
        %662 = vmatprep.subr.mxu0 0.0
        %663 = vmatpush1.msra.mxu0 %v347
        %664 = vmatprep.subr.mxu0 0.0
        %665 = vmatpush1.msra.mxu0 %v348
        %666 = vmatprep.subr.mxu0 0.0
        %667 = vmatpush1.msra.mxu0 %v349
        %668 = vmatprep.subr.mxu0 0.0
        %669 = vmatpush1.msra.mxu0 %v350
        %670 = vmatprep.subr.mxu0 0.0
        %671 = vmatpush1.msra.mxu0 %v351
        %672 = vmatprep.subr.mxu0 0.0
        %673 = vmatpush1.msra.mxu0 %v352
        %674 = vmatprep.subr.mxu0 0.0
        %675 = vmatpush1.msra.mxu0 %v353
        %676 = vmatprep.mubr.f32.mxu0 %v249
        %677 = vmatmul.mubr.f32.gmra.mrb[0].mxu0 %v213
        %v678 = vpop.f32.mrb[0].mxu0
        %v679 = vadd.f32 %v454, %v678
        %v680 = vpop.f32.mrb[0].mxu0
        %681 = vmatprep.mubr.f32.mxu0 %v250
        %682 = vmatmul.mubr.f32.gmra.mrb[0].mxu0 %v214
        %v683 = vpop.f32.mrb[0].mxu0
        %v684 = vadd.f32 %v459, %v683
        %v685 = vpop.f32.mrb[0].mxu0
        %686 = vmatprep.mubr.f32.mxu0 %v251
        %687 = vmatmul.mubr.f32.gmra.mrb[0].mxu0 %v215
        %v688 = vpop.f32.mrb[0].mxu0
        %v689 = vadd.f32 %v464, %v688
        %v690 = vpop.f32.mrb[0].mxu0
        %691 = vmatprep.mubr.f32.mxu0 %v252
        %692 = vmatmul.mubr.f32.gmra.mrb[0].mxu0 %v216
        %v693 = vpop.f32.mrb[0].mxu0
        %v694 = vadd.f32 %v469, %v693
        %v695 = vpop.f32.mrb[0].mxu0
        %696 = vmatprep.mubr.f32.mxu0 %v253
        %697 = vmatmul.mubr.f32.gmra.mrb[0].mxu0 %v217
        %v698 = vpop.f32.mrb[0].mxu0
        %v699 = vadd.f32 %v474, %v698
        %v700 = vpop.f32.mrb[0].mxu0
        %701 = vmatprep.mubr.f32.mxu0 %v254
        %702 = vmatmul.mubr.f32.gmra.mrb[0].mxu0 %v218
        %v703 = vpop.f32.mrb[0].mxu0
        %v704 = vadd.f32 %v479, %v703
        %v705 = vpop.f32.mrb[0].mxu0
        %706 = vmatprep.mubr.f32.mxu0 %v255
        %707 = vmatmul.mubr.f32.gmra.mrb[0].mxu0 %v219
        %v708 = vpop.f32.mrb[0].mxu0
        %v709 = vadd.f32 %v484, %v708
        %v710 = vpop.f32.mrb[0].mxu0
        %711 = vmatprep.mubr.f32.mxu0 %v256
        %712 = vmatmul.mubr.f32.gmra.mrb[0].mxu0 %v220
        %v713 = vpop.f32.mrb[0].mxu0
        %v714 = vadd.f32 %v489, %v713
        %v715 = vpop.f32.mrb[0].mxu0
        %716 = vmatprep.mubr.f32.mxu0 %v257
        %717 = vmatmul.mubr.f32.gmra.mrb[0].mxu0 %v221
        %v718 = vpop.f32.mrb[0].mxu0
        %v719 = vadd.f32 %v494, %v718
        %v720 = vpop.f32.mrb[0].mxu0
        %721 = vmatprep.mubr.f32.mxu0 %v258
        %722 = vmatmul.mubr.f32.gmra.mrb[0].mxu0 %v222
        %v723 = vpop.f32.mrb[0].mxu0
        %v724 = vadd.f32 %v499, %v723
        %v725 = vpop.f32.mrb[0].mxu0
        %726 = vmatprep.mubr.f32.mxu0 %v259
        %727 = vmatmul.mubr.f32.gmra.mrb[0].mxu0 %v223
        %v728 = vpop.f32.mrb[0].mxu0
        %v729 = vadd.f32 %v504, %v728
        %v730 = vpop.f32.mrb[0].mxu0
        %731 = vmatprep.mubr.f32.mxu0 %v260
        %732 = vmatmul.mubr.f32.gmra.mrb[0].mxu0 %v224
        %v733 = vpop.f32.mrb[0].mxu0
        %v734 = vadd.f32 %v509, %v733
        %v735 = vpop.f32.mrb[0].mxu0
        %736 = vmatprep.mubr.f32.mxu0 %v261
        %737 = vmatmul.mubr.f32.gmra.mrb[0].mxu0 %v225
        %v738 = vpop.f32.mrb[0].mxu0
        %v739 = vadd.f32 %v514, %v738
        %v740 = vpop.f32.mrb[0].mxu0
        %741 = vmatprep.mubr.f32.mxu0 %v262
        %742 = vmatmul.mubr.f32.gmra.mrb[0].mxu0 %v226
        %v743 = vpop.f32.mrb[0].mxu0
        %v744 = vadd.f32 %v519, %v743
        %v745 = vpop.f32.mrb[0].mxu0
        %746 = vmatprep.mubr.f32.mxu0 %v263
        %747 = vmatmul.mubr.f32.gmra.mrb[0].mxu0 %v227
        %v748 = vpop.f32.mrb[0].mxu0
        %v749 = vadd.f32 %v524, %v748
        %v750 = vpop.f32.mrb[0].mxu0
        %751 = vmatprep.mubr.f32.mxu0 %v264
        %752 = vmatmul.mubr.f32.gmra.mrb[0].mxu0 %v228
        %v753 = vpop.f32.mrb[0].mxu0
        %v754 = vadd.f32 %v529, %v753
        %v755 = vpop.f32.mrb[0].mxu0
        %756 = vmatprep.mubr.f32.mxu0 %v265
        %757 = vmatmul.mubr.f32.gmra.mrb[0].mxu0 %v229
        %v758 = vpop.f32.mrb[0].mxu0
        %v759 = vadd.f32 %v534, %v758
        %v760 = vpop.f32.mrb[0].mxu0
        %761 = vmatprep.mubr.f32.mxu0 %v266
        %762 = vmatmul.mubr.f32.gmra.mrb[0].mxu0 %v230
        %v763 = vpop.f32.mrb[0].mxu0
        %v764 = vadd.f32 %v539, %v763
        %v765 = vpop.f32.mrb[0].mxu0
        %766 = vmatprep.mubr.f32.mxu0 %v267
        %767 = vmatmul.mubr.f32.gmra.mrb[0].mxu0 %v231
        %v768 = vpop.f32.mrb[0].mxu0
        %v769 = vadd.f32 %v544, %v768
        %v770 = vpop.f32.mrb[0].mxu0
        %771 = vmatprep.mubr.f32.mxu0 %v268
        %772 = vmatmul.mubr.f32.gmra.mrb[0].mxu0 %v232
        %v773 = vpop.f32.mrb[0].mxu0
        %v774 = vadd.f32 %v549, %v773
        %v775 = vpop.f32.mrb[0].mxu0
        %776 = vmatprep.mubr.f32.mxu0 %v269
        %777 = vmatmul.mubr.f32.gmra.mrb[0].mxu0 %v233
        %v778 = vpop.f32.mrb[0].mxu0
        %v779 = vadd.f32 %v554, %v778
        %v780 = vpop.f32.mrb[0].mxu0
        %781 = vmatprep.mubr.f32.mxu0 %v270
        %782 = vmatmul.mubr.f32.gmra.mrb[0].mxu0 %v234
        %v783 = vpop.f32.mrb[0].mxu0
        %v784 = vadd.f32 %v559, %v783
        %v785 = vpop.f32.mrb[0].mxu0
        %786 = vmatprep.mubr.f32.mxu0 %v271
        %787 = vmatmul.mubr.f32.gmra.mrb[0].mxu0 %v235
        %v788 = vpop.f32.mrb[0].mxu0
        %v789 = vadd.f32 %v564, %v788
        %v790 = vpop.f32.mrb[0].mxu0
        %791 = vmatprep.mubr.f32.mxu0 %v272
        %792 = vmatmul.mubr.f32.gmra.mrb[0].mxu0 %v236
        %v793 = vpop.f32.mrb[0].mxu0
        %v794 = vadd.f32 %v569, %v793
        %v795 = vpop.f32.mrb[0].mxu0
        %796 = vmatprep.mubr.f32.mxu0 %v273
        %797 = vmatmul.mubr.f32.gmra.mrb[0].mxu0 %v237
        %v798 = vpop.f32.mrb[0].mxu0
        %v799 = vadd.f32 %v574, %v798
        %v800 = vpop.f32.mrb[0].mxu0
        %801 = vmatprep.mubr.f32.mxu0 %v274
        %802 = vmatmul.mubr.f32.gmra.mrb[0].mxu0 %v238
        %v803 = vpop.f32.mrb[0].mxu0
        %v804 = vadd.f32 %v579, %v803
        %v805 = vpop.f32.mrb[0].mxu0
        %806 = vmatprep.mubr.f32.mxu0 %v275
        %807 = vmatmul.mubr.f32.gmra.mrb[0].mxu0 %v239
        %v808 = vpop.f32.mrb[0].mxu0
        %v809 = vadd.f32 %v584, %v808
        %v810 = vpop.f32.mrb[0].mxu0
        %811 = vmatprep.mubr.f32.mxu0 %v276
        %812 = vmatmul.mubr.f32.gmra.mrb[0].mxu0 %v240
        %v813 = vpop.f32.mrb[0].mxu0
        %v814 = vadd.f32 %v589, %v813
        %v815 = vpop.f32.mrb[0].mxu0
        %816 = vmatprep.mubr.f32.mxu0 %v277
        %817 = vmatmul.mubr.f32.gmra.mrb[0].mxu0 %v241
        %v818 = vpop.f32.mrb[0].mxu0
        %v819 = vadd.f32 %v594, %v818
        %v820 = vpop.f32.mrb[0].mxu0
        %821 = vmatprep.mubr.f32.mxu0 %v278
        %822 = vmatmul.mubr.f32.gmra.mrb[0].mxu0 %v242
        %v823 = vpop.f32.mrb[0].mxu0
        %v824 = vadd.f32 %v599, %v823
        %v825 = vpop.f32.mrb[0].mxu0
        %826 = vmatprep.mubr.f32.mxu0 %v279
        %827 = vmatmul.mubr.f32.gmra.mrb[0].mxu0 %v243
        %v828 = vpop.f32.mrb[0].mxu0
        %v829 = vadd.f32 %v604, %v828
        %v830 = vpop.f32.mrb[0].mxu0
        %831 = vmatprep.mubr.f32.mxu0 %v280
        %832 = vmatmul.mubr.f32.gmra.mrb[0].mxu0 %v244
        %v833 = vpop.f32.mrb[0].mxu0
        %v834 = vadd.f32 %v609, %v833
        %v835 = vpop.f32.mrb[0].mxu0
        %836 = vdwg.mxu0
        %v838 = vlaneseq
        %v839 = vshrl.u32 %v838, 7
        %v840 = vsub.s32 0, %v839
        %v841 = vrot.slane %v321, %v840
        %v843 = vadd.f32 %v679, %v841
        %v844 = vadd.f32 %v684, %v841
        %v845 = vadd.f32 %v689, %v841
        %v846 = vadd.f32 %v694, %v841
        %v847 = vadd.f32 %v699, %v841
        %v848 = vadd.f32 %v704, %v841
        %v849 = vadd.f32 %v709, %v841
        %v850 = vadd.f32 %v714, %v841
        %v851 = vadd.f32 %v719, %v841
        %v852 = vadd.f32 %v724, %v841
        %v853 = vadd.f32 %v729, %v841
        %v854 = vadd.f32 %v734, %v841
        %v855 = vadd.f32 %v739, %v841
        %v856 = vadd.f32 %v744, %v841
        %v857 = vadd.f32 %v749, %v841
        %v858 = vadd.f32 %v754, %v841
        %v859 = vadd.f32 %v759, %v841
        %v860 = vadd.f32 %v764, %v841
        %v861 = vadd.f32 %v769, %v841
        %v862 = vadd.f32 %v774, %v841
        %v863 = vadd.f32 %v779, %v841
        %v864 = vadd.f32 %v784, %v841
        %v865 = vadd.f32 %v789, %v841
        %v866 = vadd.f32 %v794, %v841
        %v867 = vadd.f32 %v799, %v841
        %v868 = vadd.f32 %v804, %v841
        %v869 = vadd.f32 %v809, %v841
        %v870 = vadd.f32 %v814, %v841
        %v871 = vadd.f32 %v819, %v841
        %v872 = vadd.f32 %v824, %v841
        %v873 = vadd.f32 %v829, %v841
        %v874 = vadd.f32 %v834, %v841
        %875 = vst [vmem:[%s202] sm:$0xff] %v843
        %876 = vst [vmem:[%s202 + $0x8] sm:$0xff] %v844
        %877 = vst [vmem:[%s202 + $0x40] sm:$0xff] %v845
        %878 = vst [vmem:[%s202 + $0x48] sm:$0xff] %v846
        %879 = vst [vmem:[%s202 + $0x80] sm:$0xff] %v847
        %880 = vst [vmem:[%s202 + $0x88] sm:$0xff] %v848
        %881 = vst [vmem:[%s202 + $0xc0] sm:$0xff] %v849
        %882 = vst [vmem:[%s202 + $0xc8] sm:$0xff] %v850
        %883 = vst [vmem:[%s202 + $0x100] sm:$0xff] %v851
        %884 = vst [vmem:[%s202 + $0x108] sm:$0xff] %v852
        %885 = vst [vmem:[%s202 + $0x140] sm:$0xff] %v853
        %886 = vst [vmem:[%s202 + $0x148] sm:$0xff] %v854
        %887 = vst [vmem:[%s202 + $0x180] sm:$0xff] %v855
        %888 = vst [vmem:[%s202 + $0x188] sm:$0xff] %v856
        %889 = vst [vmem:[%s202 + $0x1c0] sm:$0xff] %v857
        %890 = vst [vmem:[%s202 + $0x1c8] sm:$0xff] %v858
        %891 = vst [vmem:[%s202 + $0x200] sm:$0xff] %v859
        %892 = vst [vmem:[%s202 + $0x208] sm:$0xff] %v860
        %893 = vst [vmem:[%s202 + $0x240] sm:$0xff] %v861
        %894 = vst [vmem:[%s202 + $0x248] sm:$0xff] %v862
        %895 = vst [vmem:[%s202 + $0x280] sm:$0xff] %v863
        %896 = vst [vmem:[%s202 + $0x288] sm:$0xff] %v864
        %897 = vst [vmem:[%s202 + $0x2c0] sm:$0xff] %v865
        %898 = vst [vmem:[%s202 + $0x2c8] sm:$0xff] %v866
        %899 = vst [vmem:[%s202 + $0x300] sm:$0xff] %v867
        %900 = vst [vmem:[%s202 + $0x308] sm:$0xff] %v868
        %901 = vst [vmem:[%s202 + $0x340] sm:$0xff] %v869
        %902 = vst [vmem:[%s202 + $0x348] sm:$0xff] %v870
        %903 = vst [vmem:[%s202 + $0x380] sm:$0xff] %v871
        %904 = vst [vmem:[%s202 + $0x388] sm:$0xff] %v872
        %905 = vst [vmem:[%s202 + $0x3c0] sm:$0xff] %v873
        %906 = vst [vmem:[%s202 + $0x3c8] sm:$0xff] %v874
        %s907 = scalar_lea.vmem [#allocation2], 512
        %v908 = vld [vmem:[%s907] sm:$0xff]
        %v909 = vld [vmem:[%s907 + $0x8] sm:$0xff]
        %v910 = vld [vmem:[%s907 + $0x10] sm:$0xff]
        %v911 = vld [vmem:[%s907 + $0x18] sm:$0xff]
        %v912 = vld [vmem:[%s907 + $0x20] sm:$0xff]
        %v913 = vld [vmem:[%s907 + $0x28] sm:$0xff]
        %v914 = vld [vmem:[%s907 + $0x30] sm:$0xff]
        %v915 = vld [vmem:[%s907 + $0x38] sm:$0xff]
        %v916 = vld [vmem:[%s907 + $0x40] sm:$0xff]
        %v917 = vld [vmem:[%s907 + $0x48] sm:$0xff]
        %v918 = vld [vmem:[%s907 + $0x50] sm:$0xff]
        %v919 = vld [vmem:[%s907 + $0x58] sm:$0xff]
        %v920 = vld [vmem:[%s907 + $0x60] sm:$0xff]
        %v921 = vld [vmem:[%s907 + $0x68] sm:$0xff]
        %v922 = vld [vmem:[%s907 + $0x70] sm:$0xff]
        %v923 = vld [vmem:[%s907 + $0x78] sm:$0xff]
        %v924 = vld [vmem:[%s907 + $0x80] sm:$0xff]
        %v925 = vld [vmem:[%s907 + $0x88] sm:$0xff]
        %v926 = vld [vmem:[%s907 + $0x90] sm:$0xff]
        %v927 = vld [vmem:[%s907 + $0x98] sm:$0xff]
        %v928 = vld [vmem:[%s907 + $0xa0] sm:$0xff]
        %v929 = vld [vmem:[%s907 + $0xa8] sm:$0xff]
        %v930 = vld [vmem:[%s907 + $0xb0] sm:$0xff]
        %v931 = vld [vmem:[%s907 + $0xb8] sm:$0xff]
        %v932 = vld [vmem:[%s907 + $0xc0] sm:$0xff]
        %v933 = vld [vmem:[%s907 + $0xc8] sm:$0xff]
        %v934 = vld [vmem:[%s907 + $0xd0] sm:$0xff]
        %v935 = vld [vmem:[%s907 + $0xd8] sm:$0xff]
        %v936 = vld [vmem:[%s907 + $0xe0] sm:$0xff]
        %v937 = vld [vmem:[%s907 + $0xe8] sm:$0xff]
        %v938 = vld [vmem:[%s907 + $0xf0] sm:$0xff]
        %v939 = vld [vmem:[%s907 + $0xf8] sm:$0xff]
        %s940 = scalar_lea.vmem [#allocation2], 768
        %v941 = vld [vmem:[%s940] sm:$0xff]
        %v942 = vld [vmem:[%s940 + $0x8] sm:$0xff]
        %v943 = vld [vmem:[%s940 + $0x10] sm:$0xff]
        %v944 = vld [vmem:[%s940 + $0x18] sm:$0xff]
        %v945 = vld [vmem:[%s940 + $0x20] sm:$0xff]
        %v946 = vld [vmem:[%s940 + $0x28] sm:$0xff]
        %v947 = vld [vmem:[%s940 + $0x30] sm:$0xff]
        %v948 = vld [vmem:[%s940 + $0x38] sm:$0xff]
        %v949 = vld [vmem:[%s940 + $0x40] sm:$0xff]
        %v950 = vld [vmem:[%s940 + $0x48] sm:$0xff]
        %v951 = vld [vmem:[%s940 + $0x50] sm:$0xff]
        %v952 = vld [vmem:[%s940 + $0x58] sm:$0xff]
        %v953 = vld [vmem:[%s940 + $0x60] sm:$0xff]
        %v954 = vld [vmem:[%s940 + $0x68] sm:$0xff]
        %v955 = vld [vmem:[%s940 + $0x70] sm:$0xff]
        %v956 = vld [vmem:[%s940 + $0x78] sm:$0xff]
        %v957 = vld [vmem:[%s940 + $0x80] sm:$0xff]
        %v958 = vld [vmem:[%s940 + $0x88] sm:$0xff]
        %v959 = vld [vmem:[%s940 + $0x90] sm:$0xff]
        %v960 = vld [vmem:[%s940 + $0x98] sm:$0xff]
        %v961 = vld [vmem:[%s940 + $0xa0] sm:$0xff]
        %v962 = vld [vmem:[%s940 + $0xa8] sm:$0xff]
        %v963 = vld [vmem:[%s940 + $0xb0] sm:$0xff]
        %v964 = vld [vmem:[%s940 + $0xb8] sm:$0xff]
        %v965 = vld [vmem:[%s940 + $0xc0] sm:$0xff]
        %v966 = vld [vmem:[%s940 + $0xc8] sm:$0xff]
        %v967 = vld [vmem:[%s940 + $0xd0] sm:$0xff]
        %v968 = vld [vmem:[%s940 + $0xd8] sm:$0xff]
        %v969 = vld [vmem:[%s940 + $0xe0] sm:$0xff]
        %v970 = vld [vmem:[%s940 + $0xe8] sm:$0xff]
        %v971 = vld [vmem:[%s940 + $0xf0] sm:$0xff]
        %v972 = vld [vmem:[%s940 + $0xf8] sm:$0xff]
        %973 = vmatprep.subr.mxu0 0.0
        %974 = vmatpush1.msra.mxu0 %v941
        %975 = vmatprep.subr.mxu0 0.0
        %976 = vmatpush1.msra.mxu0 %v942
        %977 = vmatprep.subr.mxu0 0.0
        %978 = vmatpush1.msra.mxu0 %v943
        %979 = vmatprep.subr.mxu0 0.0
        %980 = vmatpush1.msra.mxu0 %v944
        %981 = vmatprep.subr.mxu0 0.0
        %982 = vmatpush1.msra.mxu0 %v945
        %983 = vmatprep.subr.mxu0 0.0
        %984 = vmatpush1.msra.mxu0 %v946
        %985 = vmatprep.subr.mxu0 0.0
        %986 = vmatpush1.msra.mxu0 %v947
        %987 = vmatprep.subr.mxu0 0.0
        %988 = vmatpush1.msra.mxu0 %v948
        %989 = vmatprep.subr.mxu0 0.0
        %990 = vmatpush1.msra.mxu0 %v949
        %991 = vmatprep.subr.mxu0 0.0
        %992 = vmatpush1.msra.mxu0 %v950
        %993 = vmatprep.subr.mxu0 0.0
        %994 = vmatpush1.msra.mxu0 %v951
        %995 = vmatprep.subr.mxu0 0.0
        %996 = vmatpush1.msra.mxu0 %v952
        %997 = vmatprep.subr.mxu0 0.0
        %998 = vmatpush1.msra.mxu0 %v953
        %999 = vmatprep.subr.mxu0 0.0
        %1000 = vmatpush1.msra.mxu0 %v954
        %1001 = vmatprep.subr.mxu0 0.0
        %1002 = vmatpush1.msra.mxu0 %v955
        %1003 = vmatprep.subr.mxu0 0.0
        %1004 = vmatpush1.msra.mxu0 %v956
        %1005 = vmatprep.subr.mxu0 0.0
        %1006 = vmatpush1.msra.mxu0 %v957
        %1007 = vmatprep.subr.mxu0 0.0
        %1008 = vmatpush1.msra.mxu0 %v958
        %1009 = vmatprep.subr.mxu0 0.0
        %1010 = vmatpush1.msra.mxu0 %v959
        %1011 = vmatprep.subr.mxu0 0.0
        %1012 = vmatpush1.msra.mxu0 %v960
        %1013 = vmatprep.subr.mxu0 0.0
        %1014 = vmatpush1.msra.mxu0 %v961
        %1015 = vmatprep.subr.mxu0 0.0
        %1016 = vmatpush1.msra.mxu0 %v962
        %1017 = vmatprep.subr.mxu0 0.0
        %1018 = vmatpush1.msra.mxu0 %v963
        %1019 = vmatprep.subr.mxu0 0.0
        %1020 = vmatpush1.msra.mxu0 %v964
        %1021 = vmatprep.subr.mxu0 0.0
        %1022 = vmatpush1.msra.mxu0 %v965
        %1023 = vmatprep.subr.mxu0 0.0
        %1024 = vmatpush1.msra.mxu0 %v966
        %1025 = vmatprep.subr.mxu0 0.0
        %1026 = vmatpush1.msra.mxu0 %v967
        %1027 = vmatprep.subr.mxu0 0.0
        %1028 = vmatpush1.msra.mxu0 %v968
        %1029 = vmatprep.subr.mxu0 0.0
        %1030 = vmatpush1.msra.mxu0 %v969
        %1031 = vmatprep.subr.mxu0 0.0
        %1032 = vmatpush1.msra.mxu0 %v970
        %1033 = vmatprep.subr.mxu0 0.0
        %1034 = vmatpush1.msra.mxu0 %v971
        %1035 = vmatprep.subr.mxu0 0.0
        %1036 = vmatpush1.msra.mxu0 %v972
        %1037 = vmatprep.mubr.f32.mxu0 %v287
        %1038 = vmatmul.mubr.f32.gmra.mrb[0].mxu0 %v251
        %v1039 = vpop.f32.mrb[0].mxu0
        %v1040 = vadd.f32 0.0, %v1039
        %v1041 = vpop.f32.mrb[0].mxu0
        %1042 = vmatprep.mubr.f32.mxu0 %v288
        %1043 = vmatmul.mubr.f32.gmra.mrb[0].mxu0 %v252
        %v1044 = vpop.f32.mrb[0].mxu0
        %v1045 = vadd.f32 0.0, %v1044
        %v1046 = vpop.f32.mrb[0].mxu0
        %1047 = vmatprep.mubr.f32.mxu0 %v289
        %1048 = vmatmul.mubr.f32.gmra.mrb[0].mxu0 %v253
        %v1049 = vpop.f32.mrb[0].mxu0
        %v1050 = vadd.f32 0.0, %v1049
        %v1051 = vpop.f32.mrb[0].mxu0
        %1052 = vmatprep.mubr.f32.mxu0 %v290
        %1053 = vmatmul.mubr.f32.gmra.mrb[0].mxu0 %v254
        %v1054 = vpop.f32.mrb[0].mxu0
        %v1055 = vadd.f32 0.0, %v1054
        %v1056 = vpop.f32.mrb[0].mxu0
        %1057 = vmatprep.mubr.f32.mxu0 %v291
        %1058 = vmatmul.mubr.f32.gmra.mrb[0].mxu0 %v255
        %v1059 = vpop.f32.mrb[0].mxu0
        %v1060 = vadd.f32 0.0, %v1059
        %v1061 = vpop.f32.mrb[0].mxu0
        %1062 = vmatprep.mubr.f32.mxu0 %v292
        %1063 = vmatmul.mubr.f32.gmra.mrb[0].mxu0 %v256
        %v1064 = vpop.f32.mrb[0].mxu0
        %v1065 = vadd.f32 0.0, %v1064
        %v1066 = vpop.f32.mrb[0].mxu0
        %1067 = vmatprep.mubr.f32.mxu0 %v293
        %1068 = vmatmul.mubr.f32.gmra.mrb[0].mxu0 %v257
        %v1069 = vpop.f32.mrb[0].mxu0
        %v1070 = vadd.f32 0.0, %v1069
        %v1071 = vpop.f32.mrb[0].mxu0
        %1072 = vmatprep.mubr.f32.mxu0 %v294
        %1073 = vmatmul.mubr.f32.gmra.mrb[0].mxu0 %v258
        %v1074 = vpop.f32.mrb[0].mxu0
        %v1075 = vadd.f32 0.0, %v1074
        %v1076 = vpop.f32.mrb[0].mxu0
        %1077 = vmatprep.mubr.f32.mxu0 %v295
        %1078 = vmatmul.mubr.f32.gmra.mrb[0].mxu0 %v259
        %v1079 = vpop.f32.mrb[0].mxu0
        %v1080 = vadd.f32 0.0, %v1079
        %v1081 = vpop.f32.mrb[0].mxu0
        %1082 = vmatprep.mubr.f32.mxu0 %v296
        %1083 = vmatmul.mubr.f32.gmra.mrb[0].mxu0 %v260
        %v1084 = vpop.f32.mrb[0].mxu0
        %v1085 = vadd.f32 0.0, %v1084
        %v1086 = vpop.f32.mrb[0].mxu0
        %1087 = vmatprep.mubr.f32.mxu0 %v297
        %1088 = vmatmul.mubr.f32.gmra.mrb[0].mxu0 %v261
        %v1089 = vpop.f32.mrb[0].mxu0
        %v1090 = vadd.f32 0.0, %v1089
        %v1091 = vpop.f32.mrb[0].mxu0
        %1092 = vmatprep.mubr.f32.mxu0 %v298
        %1093 = vmatmul.mubr.f32.gmra.mrb[0].mxu0 %v262
        %v1094 = vpop.f32.mrb[0].mxu0
        %v1095 = vadd.f32 0.0, %v1094
        %v1096 = vpop.f32.mrb[0].mxu0
        %1097 = vmatprep.mubr.f32.mxu0 %v299
        %1098 = vmatmul.mubr.f32.gmra.mrb[0].mxu0 %v263
        %v1099 = vpop.f32.mrb[0].mxu0
        %v1100 = vadd.f32 0.0, %v1099
        %v1101 = vpop.f32.mrb[0].mxu0
        %1102 = vmatprep.mubr.f32.mxu0 %v300
        %1103 = vmatmul.mubr.f32.gmra.mrb[0].mxu0 %v264
        %v1104 = vpop.f32.mrb[0].mxu0
        %v1105 = vadd.f32 0.0, %v1104
        %v1106 = vpop.f32.mrb[0].mxu0
        %1107 = vmatprep.mubr.f32.mxu0 %v301
        %1108 = vmatmul.mubr.f32.gmra.mrb[0].mxu0 %v265
        %v1109 = vpop.f32.mrb[0].mxu0
        %v1110 = vadd.f32 0.0, %v1109
        %v1111 = vpop.f32.mrb[0].mxu0
        %1112 = vmatprep.mubr.f32.mxu0 %v302
        %1113 = vmatmul.mubr.f32.gmra.mrb[0].mxu0 %v266
        %v1114 = vpop.f32.mrb[0].mxu0
        %v1115 = vadd.f32 0.0, %v1114
        %v1116 = vpop.f32.mrb[0].mxu0
        %1117 = vmatprep.mubr.f32.mxu0 %v303
        %1118 = vmatmul.mubr.f32.gmra.mrb[0].mxu0 %v267
        %v1119 = vpop.f32.mrb[0].mxu0
        %v1120 = vadd.f32 0.0, %v1119
        %v1121 = vpop.f32.mrb[0].mxu0
        %1122 = vmatprep.mubr.f32.mxu0 %v304
        %1123 = vmatmul.mubr.f32.gmra.mrb[0].mxu0 %v268
        %v1124 = vpop.f32.mrb[0].mxu0
        %v1125 = vadd.f32 0.0, %v1124
        %v1126 = vpop.f32.mrb[0].mxu0
        %1127 = vmatprep.mubr.f32.mxu0 %v305
        %1128 = vmatmul.mubr.f32.gmra.mrb[0].mxu0 %v269
        %v1129 = vpop.f32.mrb[0].mxu0
        %v1130 = vadd.f32 0.0, %v1129
        %v1131 = vpop.f32.mrb[0].mxu0
        %1132 = vmatprep.mubr.f32.mxu0 %v306
        %1133 = vmatmul.mubr.f32.gmra.mrb[0].mxu0 %v270
        %v1134 = vpop.f32.mrb[0].mxu0
        %v1135 = vadd.f32 0.0, %v1134
        %v1136 = vpop.f32.mrb[0].mxu0
        %1137 = vmatprep.mubr.f32.mxu0 %v307
        %1138 = vmatmul.mubr.f32.gmra.mrb[0].mxu0 %v271
        %v1139 = vpop.f32.mrb[0].mxu0
        %v1140 = vadd.f32 0.0, %v1139
        %v1141 = vpop.f32.mrb[0].mxu0
        %1142 = vmatprep.mubr.f32.mxu0 %v308
        %1143 = vmatmul.mubr.f32.gmra.mrb[0].mxu0 %v272
        %v1144 = vpop.f32.mrb[0].mxu0
        %v1145 = vadd.f32 0.0, %v1144
        %v1146 = vpop.f32.mrb[0].mxu0
        %1147 = vmatprep.mubr.f32.mxu0 %v309
        %1148 = vmatmul.mubr.f32.gmra.mrb[0].mxu0 %v273
        %v1149 = vpop.f32.mrb[0].mxu0
        %v1150 = vadd.f32 0.0, %v1149
        %v1151 = vpop.f32.mrb[0].mxu0
        %1152 = vmatprep.mubr.f32.mxu0 %v310
        %1153 = vmatmul.mubr.f32.gmra.mrb[0].mxu0 %v274
        %v1154 = vpop.f32.mrb[0].mxu0
        %v1155 = vadd.f32 0.0, %v1154
        %v1156 = vpop.f32.mrb[0].mxu0
        %1157 = vmatprep.mubr.f32.mxu0 %v311
        %1158 = vmatmul.mubr.f32.gmra.mrb[0].mxu0 %v275
        %v1159 = vpop.f32.mrb[0].mxu0
        %v1160 = vadd.f32 0.0, %v1159
        %v1161 = vpop.f32.mrb[0].mxu0
        %1162 = vmatprep.mubr.f32.mxu0 %v312
        %1163 = vmatmul.mubr.f32.gmra.mrb[0].mxu0 %v276
        %v1164 = vpop.f32.mrb[0].mxu0
        %v1165 = vadd.f32 0.0, %v1164
        %v1166 = vpop.f32.mrb[0].mxu0
        %1167 = vmatprep.mubr.f32.mxu0 %v313
        %1168 = vmatmul.mubr.f32.gmra.mrb[0].mxu0 %v277
        %v1169 = vpop.f32.mrb[0].mxu0
        %v1170 = vadd.f32 0.0, %v1169
        %v1171 = vpop.f32.mrb[0].mxu0
        %1172 = vmatprep.mubr.f32.mxu0 %v314
        %1173 = vmatmul.mubr.f32.gmra.mrb[0].mxu0 %v278
        %v1174 = vpop.f32.mrb[0].mxu0
        %v1175 = vadd.f32 0.0, %v1174
        %v1176 = vpop.f32.mrb[0].mxu0
        %1177 = vmatprep.mubr.f32.mxu0 %v315
        %1178 = vmatmul.mubr.f32.gmra.mrb[0].mxu0 %v279
        %v1179 = vpop.f32.mrb[0].mxu0
        %v1180 = vadd.f32 0.0, %v1179
        %v1181 = vpop.f32.mrb[0].mxu0
        %1182 = vmatprep.mubr.f32.mxu0 %v316
        %1183 = vmatmul.mubr.f32.gmra.mrb[0].mxu0 %v280
        %v1184 = vpop.f32.mrb[0].mxu0
        %v1185 = vadd.f32 0.0, %v1184
        %v1186 = vpop.f32.mrb[0].mxu0
        %1187 = vmatprep.mubr.f32.mxu0 %v317
        %1188 = vmatmul.mubr.f32.gmra.mrb[0].mxu0 %v281
        %v1189 = vpop.f32.mrb[0].mxu0
        %v1190 = vadd.f32 0.0, %v1189
        %v1191 = vpop.f32.mrb[0].mxu0
        %1192 = vmatprep.mubr.f32.mxu0 %v318
        %1193 = vmatmul.mubr.f32.gmra.mrb[0].mxu0 %v282
        %v1194 = vpop.f32.mrb[0].mxu0
        %v1195 = vadd.f32 0.0, %v1194
        %v1196 = vpop.f32.mrb[0].mxu0
        %1197 = vdwg.mxu0
        %1198 = vmatprep.subr.mxu0 0.0
        %1199 = vmatpush1.msra.mxu0 %v908
        %1200 = vmatprep.subr.mxu0 0.0
        %1201 = vmatpush1.msra.mxu0 %v909
        %1202 = vmatprep.subr.mxu0 0.0
        %1203 = vmatpush1.msra.mxu0 %v910
        %1204 = vmatprep.subr.mxu0 0.0
        %1205 = vmatpush1.msra.mxu0 %v911
        %1206 = vmatprep.subr.mxu0 0.0
        %1207 = vmatpush1.msra.mxu0 %v912
        %1208 = vmatprep.subr.mxu0 0.0
        %1209 = vmatpush1.msra.mxu0 %v913
        %1210 = vmatprep.subr.mxu0 0.0
        %1211 = vmatpush1.msra.mxu0 %v914
        %1212 = vmatprep.subr.mxu0 0.0
        %1213 = vmatpush1.msra.mxu0 %v915
        %1214 = vmatprep.subr.mxu0 0.0
        %1215 = vmatpush1.msra.mxu0 %v916
        %1216 = vmatprep.subr.mxu0 0.0
        %1217 = vmatpush1.msra.mxu0 %v917
        %1218 = vmatprep.subr.mxu0 0.0
        %1219 = vmatpush1.msra.mxu0 %v918
        %1220 = vmatprep.subr.mxu0 0.0
        %1221 = vmatpush1.msra.mxu0 %v919
        %1222 = vmatprep.subr.mxu0 0.0
        %1223 = vmatpush1.msra.mxu0 %v920
        %1224 = vmatprep.subr.mxu0 0.0
        %1225 = vmatpush1.msra.mxu0 %v921
        %1226 = vmatprep.subr.mxu0 0.0
        %1227 = vmatpush1.msra.mxu0 %v922
        %1228 = vmatprep.subr.mxu0 0.0
        %1229 = vmatpush1.msra.mxu0 %v923
        %1230 = vmatprep.subr.mxu0 0.0
        %1231 = vmatpush1.msra.mxu0 %v924
        %1232 = vmatprep.subr.mxu0 0.0
        %1233 = vmatpush1.msra.mxu0 %v925
        %1234 = vmatprep.subr.mxu0 0.0
        %1235 = vmatpush1.msra.mxu0 %v926
        %1236 = vmatprep.subr.mxu0 0.0
        %1237 = vmatpush1.msra.mxu0 %v927
        %1238 = vmatprep.subr.mxu0 0.0
        %1239 = vmatpush1.msra.mxu0 %v928
        %1240 = vmatprep.subr.mxu0 0.0
        %1241 = vmatpush1.msra.mxu0 %v929
        %1242 = vmatprep.subr.mxu0 0.0
        %1243 = vmatpush1.msra.mxu0 %v930
        %1244 = vmatprep.subr.mxu0 0.0
        %1245 = vmatpush1.msra.mxu0 %v931
        %1246 = vmatprep.subr.mxu0 0.0
        %1247 = vmatpush1.msra.mxu0 %v932
        %1248 = vmatprep.subr.mxu0 0.0
        %1249 = vmatpush1.msra.mxu0 %v933
        %1250 = vmatprep.subr.mxu0 0.0
        %1251 = vmatpush1.msra.mxu0 %v934
        %1252 = vmatprep.subr.mxu0 0.0
        %1253 = vmatpush1.msra.mxu0 %v935
        %1254 = vmatprep.subr.mxu0 0.0
        %1255 = vmatpush1.msra.mxu0 %v936
        %1256 = vmatprep.subr.mxu0 0.0
        %1257 = vmatpush1.msra.mxu0 %v937
        %1258 = vmatprep.subr.mxu0 0.0
        %1259 = vmatpush1.msra.mxu0 %v938
        %1260 = vmatprep.subr.mxu0 0.0
        %1261 = vmatpush1.msra.mxu0 %v939
        %1262 = vmatprep.mubr.f32.mxu0 %v285
        %1263 = vmatmul.mubr.f32.gmra.mrb[0].mxu0 %v249
        %v1264 = vpop.f32.mrb[0].mxu0
        %v1265 = vadd.f32 %v1040, %v1264
        %v1266 = vpop.f32.mrb[0].mxu0
        %1267 = vmatprep.mubr.f32.mxu0 %v286
        %1268 = vmatmul.mubr.f32.gmra.mrb[0].mxu0 %v250
        %v1269 = vpop.f32.mrb[0].mxu0
        %v1270 = vadd.f32 %v1045, %v1269
        %v1271 = vpop.f32.mrb[0].mxu0
        %1272 = vmatprep.mubr.f32.mxu0 %v287
        %1273 = vmatmul.mubr.f32.gmra.mrb[0].mxu0 %v251
        %v1274 = vpop.f32.mrb[0].mxu0
        %v1275 = vadd.f32 %v1050, %v1274
        %v1276 = vpop.f32.mrb[0].mxu0
        %1277 = vmatprep.mubr.f32.mxu0 %v288
        %1278 = vmatmul.mubr.f32.gmra.mrb[0].mxu0 %v252
        %v1279 = vpop.f32.mrb[0].mxu0
        %v1280 = vadd.f32 %v1055, %v1279
        %v1281 = vpop.f32.mrb[0].mxu0
        %1282 = vmatprep.mubr.f32.mxu0 %v289
        %1283 = vmatmul.mubr.f32.gmra.mrb[0].mxu0 %v253
        %v1284 = vpop.f32.mrb[0].mxu0
        %v1285 = vadd.f32 %v1060, %v1284
        %v1286 = vpop.f32.mrb[0].mxu0
        %1287 = vmatprep.mubr.f32.mxu0 %v290
        %1288 = vmatmul.mubr.f32.gmra.mrb[0].mxu0 %v254
        %v1289 = vpop.f32.mrb[0].mxu0
        %v1290 = vadd.f32 %v1065, %v1289
        %v1291 = vpop.f32.mrb[0].mxu0
        %1292 = vmatprep.mubr.f32.mxu0 %v291
        %1293 = vmatmul.mubr.f32.gmra.mrb[0].mxu0 %v255
        %v1294 = vpop.f32.mrb[0].mxu0
        %v1295 = vadd.f32 %v1070, %v1294
        %v1296 = vpop.f32.mrb[0].mxu0
        %1297 = vmatprep.mubr.f32.mxu0 %v292
        %1298 = vmatmul.mubr.f32.gmra.mrb[0].mxu0 %v256
        %v1299 = vpop.f32.mrb[0].mxu0
        %v1300 = vadd.f32 %v1075, %v1299
        %v1301 = vpop.f32.mrb[0].mxu0
        %1302 = vmatprep.mubr.f32.mxu0 %v293
        %1303 = vmatmul.mubr.f32.gmra.mrb[0].mxu0 %v257
        %v1304 = vpop.f32.mrb[0].mxu0
        %v1305 = vadd.f32 %v1080, %v1304
        %v1306 = vpop.f32.mrb[0].mxu0
        %1307 = vmatprep.mubr.f32.mxu0 %v294
        %1308 = vmatmul.mubr.f32.gmra.mrb[0].mxu0 %v258
        %v1309 = vpop.f32.mrb[0].mxu0
        %v1310 = vadd.f32 %v1085, %v1309
        %v1311 = vpop.f32.mrb[0].mxu0
        %1312 = vmatprep.mubr.f32.mxu0 %v295
        %1313 = vmatmul.mubr.f32.gmra.mrb[0].mxu0 %v259
        %v1314 = vpop.f32.mrb[0].mxu0
        %v1315 = vadd.f32 %v1090, %v1314
        %v1316 = vpop.f32.mrb[0].mxu0
        %1317 = vmatprep.mubr.f32.mxu0 %v296
        %1318 = vmatmul.mubr.f32.gmra.mrb[0].mxu0 %v260
        %v1319 = vpop.f32.mrb[0].mxu0
        %v1320 = vadd.f32 %v1095, %v1319
        %v1321 = vpop.f32.mrb[0].mxu0
        %1322 = vmatprep.mubr.f32.mxu0 %v297
        %1323 = vmatmul.mubr.f32.gmra.mrb[0].mxu0 %v261
        %v1324 = vpop.f32.mrb[0].mxu0
        %v1325 = vadd.f32 %v1100, %v1324
        %v1326 = vpop.f32.mrb[0].mxu0
        %1327 = vmatprep.mubr.f32.mxu0 %v298
        %1328 = vmatmul.mubr.f32.gmra.mrb[0].mxu0 %v262
        %v1329 = vpop.f32.mrb[0].mxu0
        %v1330 = vadd.f32 %v1105, %v1329
        %v1331 = vpop.f32.mrb[0].mxu0
        %1332 = vmatprep.mubr.f32.mxu0 %v299
        %1333 = vmatmul.mubr.f32.gmra.mrb[0].mxu0 %v263
        %v1334 = vpop.f32.mrb[0].mxu0
        %v1335 = vadd.f32 %v1110, %v1334
        %v1336 = vpop.f32.mrb[0].mxu0
        %1337 = vmatprep.mubr.f32.mxu0 %v300
        %1338 = vmatmul.mubr.f32.gmra.mrb[0].mxu0 %v264
        %v1339 = vpop.f32.mrb[0].mxu0
        %v1340 = vadd.f32 %v1115, %v1339
        %v1341 = vpop.f32.mrb[0].mxu0
        %1342 = vmatprep.mubr.f32.mxu0 %v301
        %1343 = vmatmul.mubr.f32.gmra.mrb[0].mxu0 %v265
        %v1344 = vpop.f32.mrb[0].mxu0
        %v1345 = vadd.f32 %v1120, %v1344
        %v1346 = vpop.f32.mrb[0].mxu0
        %1347 = vmatprep.mubr.f32.mxu0 %v302
        %1348 = vmatmul.mubr.f32.gmra.mrb[0].mxu0 %v266
        %v1349 = vpop.f32.mrb[0].mxu0
        %v1350 = vadd.f32 %v1125, %v1349
        %v1351 = vpop.f32.mrb[0].mxu0
        %1352 = vmatprep.mubr.f32.mxu0 %v303
        %1353 = vmatmul.mubr.f32.gmra.mrb[0].mxu0 %v267
        %v1354 = vpop.f32.mrb[0].mxu0
        %v1355 = vadd.f32 %v1130, %v1354
        %v1356 = vpop.f32.mrb[0].mxu0
        %1357 = vmatprep.mubr.f32.mxu0 %v304
        %1358 = vmatmul.mubr.f32.gmra.mrb[0].mxu0 %v268
        %v1359 = vpop.f32.mrb[0].mxu0
        %v1360 = vadd.f32 %v1135, %v1359
        %v1361 = vpop.f32.mrb[0].mxu0
        %1362 = vmatprep.mubr.f32.mxu0 %v305
        %1363 = vmatmul.mubr.f32.gmra.mrb[0].mxu0 %v269
        %v1364 = vpop.f32.mrb[0].mxu0
        %v1365 = vadd.f32 %v1140, %v1364
        %v1366 = vpop.f32.mrb[0].mxu0
        %1367 = vmatprep.mubr.f32.mxu0 %v306
        %1368 = vmatmul.mubr.f32.gmra.mrb[0].mxu0 %v270
        %v1369 = vpop.f32.mrb[0].mxu0
        %v1370 = vadd.f32 %v1145, %v1369
        %v1371 = vpop.f32.mrb[0].mxu0
        %1372 = vmatprep.mubr.f32.mxu0 %v307
        %1373 = vmatmul.mubr.f32.gmra.mrb[0].mxu0 %v271
        %v1374 = vpop.f32.mrb[0].mxu0
        %v1375 = vadd.f32 %v1150, %v1374
        %v1376 = vpop.f32.mrb[0].mxu0
        %1377 = vmatprep.mubr.f32.mxu0 %v308
        %1378 = vmatmul.mubr.f32.gmra.mrb[0].mxu0 %v272
        %v1379 = vpop.f32.mrb[0].mxu0
        %v1380 = vadd.f32 %v1155, %v1379
        %v1381 = vpop.f32.mrb[0].mxu0
        %1382 = vmatprep.mubr.f32.mxu0 %v309
        %1383 = vmatmul.mubr.f32.gmra.mrb[0].mxu0 %v273
        %v1384 = vpop.f32.mrb[0].mxu0
        %v1385 = vadd.f32 %v1160, %v1384
        %v1386 = vpop.f32.mrb[0].mxu0
        %1387 = vmatprep.mubr.f32.mxu0 %v310
        %1388 = vmatmul.mubr.f32.gmra.mrb[0].mxu0 %v274
        %v1389 = vpop.f32.mrb[0].mxu0
        %v1390 = vadd.f32 %v1165, %v1389
        %v1391 = vpop.f32.mrb[0].mxu0
        %1392 = vmatprep.mubr.f32.mxu0 %v311
        %1393 = vmatmul.mubr.f32.gmra.mrb[0].mxu0 %v275
        %v1394 = vpop.f32.mrb[0].mxu0
        %v1395 = vadd.f32 %v1170, %v1394
        %v1396 = vpop.f32.mrb[0].mxu0
        %1397 = vmatprep.mubr.f32.mxu0 %v312
        %1398 = vmatmul.mubr.f32.gmra.mrb[0].mxu0 %v276
        %v1399 = vpop.f32.mrb[0].mxu0
        %v1400 = vadd.f32 %v1175, %v1399
        %v1401 = vpop.f32.mrb[0].mxu0
        %1402 = vmatprep.mubr.f32.mxu0 %v313
        %1403 = vmatmul.mubr.f32.gmra.mrb[0].mxu0 %v277
        %v1404 = vpop.f32.mrb[0].mxu0
        %v1405 = vadd.f32 %v1180, %v1404
        %v1406 = vpop.f32.mrb[0].mxu0
        %1407 = vmatprep.mubr.f32.mxu0 %v314
        %1408 = vmatmul.mubr.f32.gmra.mrb[0].mxu0 %v278
        %v1409 = vpop.f32.mrb[0].mxu0
        %v1410 = vadd.f32 %v1185, %v1409
        %v1411 = vpop.f32.mrb[0].mxu0
        %1412 = vmatprep.mubr.f32.mxu0 %v315
        %1413 = vmatmul.mubr.f32.gmra.mrb[0].mxu0 %v279
        %v1414 = vpop.f32.mrb[0].mxu0
        %v1415 = vadd.f32 %v1190, %v1414
        %v1416 = vpop.f32.mrb[0].mxu0
        %1417 = vmatprep.mubr.f32.mxu0 %v316
        %1418 = vmatmul.mubr.f32.gmra.mrb[0].mxu0 %v280
        %v1419 = vpop.f32.mrb[0].mxu0
        %v1420 = vadd.f32 %v1195, %v1419
        %v1421 = vpop.f32.mrb[0].mxu0
        %1422 = vdwg.mxu0
        %v1423 = vadd.f32 %v1265, %v841
        %v1424 = vadd.f32 %v1270, %v841
        %v1425 = vadd.f32 %v1275, %v841
        %v1426 = vadd.f32 %v1280, %v841
        %v1427 = vadd.f32 %v1285, %v841
        %v1428 = vadd.f32 %v1290, %v841
        %v1429 = vadd.f32 %v1295, %v841
        %v1430 = vadd.f32 %v1300, %v841
        %v1431 = vadd.f32 %v1305, %v841
        %v1432 = vadd.f32 %v1310, %v841
        %v1433 = vadd.f32 %v1315, %v841
        %v1434 = vadd.f32 %v1320, %v841
        %v1435 = vadd.f32 %v1325, %v841
        %v1436 = vadd.f32 %v1330, %v841
        %v1437 = vadd.f32 %v1335, %v841
        %v1438 = vadd.f32 %v1340, %v841
        %v1439 = vadd.f32 %v1345, %v841
        %v1440 = vadd.f32 %v1350, %v841
        %v1441 = vadd.f32 %v1355, %v841
        %v1442 = vadd.f32 %v1360, %v841
        %v1443 = vadd.f32 %v1365, %v841
        %v1444 = vadd.f32 %v1370, %v841
        %v1445 = vadd.f32 %v1375, %v841
        %v1446 = vadd.f32 %v1380, %v841
        %v1447 = vadd.f32 %v1385, %v841
        %v1448 = vadd.f32 %v1390, %v841
        %v1449 = vadd.f32 %v1395, %v841
        %v1450 = vadd.f32 %v1400, %v841
        %v1451 = vadd.f32 %v1405, %v841
        %v1452 = vadd.f32 %v1410, %v841
        %v1453 = vadd.f32 %v1415, %v841
        %v1454 = vadd.f32 %v1420, %v841
        %s1455 = scalar_lea.vmem %s202, 16 [#allocation5]
        %1456 = vst [vmem:[%s1455] sm:$0xff] %v1423
        %1457 = vst [vmem:[%s1455 + $0x8] sm:$0xff] %v1424
        %1458 = vst [vmem:[%s1455 + $0x40] sm:$0xff] %v1425
        %1459 = vst [vmem:[%s1455 + $0x48] sm:$0xff] %v1426
        %1460 = vst [vmem:[%s1455 + $0x80] sm:$0xff] %v1427
        %1461 = vst [vmem:[%s1455 + $0x88] sm:$0xff] %v1428
        %1462 = vst [vmem:[%s1455 + $0xc0] sm:$0xff] %v1429
        %1463 = vst [vmem:[%s1455 + $0xc8] sm:$0xff] %v1430
        %1464 = vst [vmem:[%s1455 + $0x100] sm:$0xff] %v1431
        %1465 = vst [vmem:[%s1455 + $0x108] sm:$0xff] %v1432
        %1466 = vst [vmem:[%s1455 + $0x140] sm:$0xff] %v1433
        %1467 = vst [vmem:[%s1455 + $0x148] sm:$0xff] %v1434
        %1468 = vst [vmem:[%s1455 + $0x180] sm:$0xff] %v1435
        %1469 = vst [vmem:[%s1455 + $0x188] sm:$0xff] %v1436
        %1470 = vst [vmem:[%s1455 + $0x1c0] sm:$0xff] %v1437
        %1471 = vst [vmem:[%s1455 + $0x1c8] sm:$0xff] %v1438
        %1472 = vst [vmem:[%s1455 + $0x200] sm:$0xff] %v1439
        %1473 = vst [vmem:[%s1455 + $0x208] sm:$0xff] %v1440
        %1474 = vst [vmem:[%s1455 + $0x240] sm:$0xff] %v1441
        %1475 = vst [vmem:[%s1455 + $0x248] sm:$0xff] %v1442
        %1476 = vst [vmem:[%s1455 + $0x280] sm:$0xff] %v1443
        %1477 = vst [vmem:[%s1455 + $0x288] sm:$0xff] %v1444
        %1478 = vst [vmem:[%s1455 + $0x2c0] sm:$0xff] %v1445
        %1479 = vst [vmem:[%s1455 + $0x2c8] sm:$0xff] %v1446
        %1480 = vst [vmem:[%s1455 + $0x300] sm:$0xff] %v1447
        %1481 = vst [vmem:[%s1455 + $0x308] sm:$0xff] %v1448
        %1482 = vst [vmem:[%s1455 + $0x340] sm:$0xff] %v1449
        %1483 = vst [vmem:[%s1455 + $0x348] sm:$0xff] %v1450
        %1484 = vst [vmem:[%s1455 + $0x380] sm:$0xff] %v1451
        %1485 = vst [vmem:[%s1455 + $0x388] sm:$0xff] %v1452
        %1486 = vst [vmem:[%s1455 + $0x3c0] sm:$0xff] %v1453
        %1487 = vst [vmem:[%s1455 + $0x3c8] sm:$0xff] %v1454
        %s1488 = scalar_lea.vmem [#allocation2], 1024
        %v1489 = vld [vmem:[%s1488] sm:$0xff]
        %v1490 = vld [vmem:[%s1488 + $0x8] sm:$0xff]
        %v1491 = vld [vmem:[%s1488 + $0x10] sm:$0xff]
        %v1492 = vld [vmem:[%s1488 + $0x18] sm:$0xff]
        %v1493 = vld [vmem:[%s1488 + $0x20] sm:$0xff]
        %v1494 = vld [vmem:[%s1488 + $0x28] sm:$0xff]
        %v1495 = vld [vmem:[%s1488 + $0x30] sm:$0xff]
        %v1496 = vld [vmem:[%s1488 + $0x38] sm:$0xff]
        %v1497 = vld [vmem:[%s1488 + $0x40] sm:$0xff]
        %v1498 = vld [vmem:[%s1488 + $0x48] sm:$0xff]
        %v1499 = vld [vmem:[%s1488 + $0x50] sm:$0xff]
        %v1500 = vld [vmem:[%s1488 + $0x58] sm:$0xff]
        %v1501 = vld [vmem:[%s1488 + $0x60] sm:$0xff]
        %v1502 = vld [vmem:[%s1488 + $0x68] sm:$0xff]
        %v1503 = vld [vmem:[%s1488 + $0x70] sm:$0xff]
        %v1504 = vld [vmem:[%s1488 + $0x78] sm:$0xff]
        %v1505 = vld [vmem:[%s1488 + $0x80] sm:$0xff]
        %v1506 = vld [vmem:[%s1488 + $0x88] sm:$0xff]
        %v1507 = vld [vmem:[%s1488 + $0x90] sm:$0xff]
        %v1508 = vld [vmem:[%s1488 + $0x98] sm:$0xff]
        %v1509 = vld [vmem:[%s1488 + $0xa0] sm:$0xff]
        %v1510 = vld [vmem:[%s1488 + $0xa8] sm:$0xff]
        %v1511 = vld [vmem:[%s1488 + $0xb0] sm:$0xff]
        %v1512 = vld [vmem:[%s1488 + $0xb8] sm:$0xff]
        %v1513 = vld [vmem:[%s1488 + $0xc0] sm:$0xff]
        %v1514 = vld [vmem:[%s1488 + $0xc8] sm:$0xff]
        %v1515 = vld [vmem:[%s1488 + $0xd0] sm:$0xff]
        %v1516 = vld [vmem:[%s1488 + $0xd8] sm:$0xff]
        %v1517 = vld [vmem:[%s1488 + $0xe0] sm:$0xff]
        %v1518 = vld [vmem:[%s1488 + $0xe8] sm:$0xff]
        %v1519 = vld [vmem:[%s1488 + $0xf0] sm:$0xff]
        %v1520 = vld [vmem:[%s1488 + $0xf8] sm:$0xff]
        %s1521 = scalar_lea.vmem [#allocation2], 1280
        %v1522 = vld [vmem:[%s1521] sm:$0xff]
        %v1523 = vld [vmem:[%s1521 + $0x8] sm:$0xff]
        %v1524 = vld [vmem:[%s1521 + $0x10] sm:$0xff]
        %v1525 = vld [vmem:[%s1521 + $0x18] sm:$0xff]
        %v1526 = vld [vmem:[%s1521 + $0x20] sm:$0xff]
        %v1527 = vld [vmem:[%s1521 + $0x28] sm:$0xff]
        %v1528 = vld [vmem:[%s1521 + $0x30] sm:$0xff]
        %v1529 = vld [vmem:[%s1521 + $0x38] sm:$0xff]
        %v1530 = vld [vmem:[%s1521 + $0x40] sm:$0xff]
        %v1531 = vld [vmem:[%s1521 + $0x48] sm:$0xff]
        %v1532 = vld [vmem:[%s1521 + $0x50] sm:$0xff]
        %v1533 = vld [vmem:[%s1521 + $0x58] sm:$0xff]
        %v1534 = vld [vmem:[%s1521 + $0x60] sm:$0xff]
        %v1535 = vld [vmem:[%s1521 + $0x68] sm:$0xff]
        %v1536 = vld [vmem:[%s1521 + $0x70] sm:$0xff]
        %v1537 = vld [vmem:[%s1521 + $0x78] sm:$0xff]
        %v1538 = vld [vmem:[%s1521 + $0x80] sm:$0xff]
        %v1539 = vld [vmem:[%s1521 + $0x88] sm:$0xff]
        %v1540 = vld [vmem:[%s1521 + $0x90] sm:$0xff]
        %v1541 = vld [vmem:[%s1521 + $0x98] sm:$0xff]
        %v1542 = vld [vmem:[%s1521 + $0xa0] sm:$0xff]
        %v1543 = vld [vmem:[%s1521 + $0xa8] sm:$0xff]
        %v1544 = vld [vmem:[%s1521 + $0xb0] sm:$0xff]
        %v1545 = vld [vmem:[%s1521 + $0xb8] sm:$0xff]
        %v1546 = vld [vmem:[%s1521 + $0xc0] sm:$0xff]
        %v1547 = vld [vmem:[%s1521 + $0xc8] sm:$0xff]
        %v1548 = vld [vmem:[%s1521 + $0xd0] sm:$0xff]
        %v1549 = vld [vmem:[%s1521 + $0xd8] sm:$0xff]
        %v1550 = vld [vmem:[%s1521 + $0xe0] sm:$0xff]
        %v1551 = vld [vmem:[%s1521 + $0xe8] sm:$0xff]
        %v1552 = vld [vmem:[%s1521 + $0xf0] sm:$0xff]
        %v1553 = vld [vmem:[%s1521 + $0xf8] sm:$0xff]
        %1554 = vmatprep.subr.mxu0 0.0
        %1555 = vmatpush1.msra.mxu0 %v1522
        %1556 = vmatprep.subr.mxu0 0.0
        %1557 = vmatpush1.msra.mxu0 %v1523
        %1558 = vmatprep.subr.mxu0 0.0
        %1559 = vmatpush1.msra.mxu0 %v1524
        %1560 = vmatprep.subr.mxu0 0.0
        %1561 = vmatpush1.msra.mxu0 %v1525
        %1562 = vmatprep.subr.mxu0 0.0
        %1563 = vmatpush1.msra.mxu0 %v1526
        %1564 = vmatprep.subr.mxu0 0.0
        %1565 = vmatpush1.msra.mxu0 %v1527
        %1566 = vmatprep.subr.mxu0 0.0
        %1567 = vmatpush1.msra.mxu0 %v1528
        %1568 = vmatprep.subr.mxu0 0.0
        %1569 = vmatpush1.msra.mxu0 %v1529
        %1570 = vmatprep.subr.mxu0 0.0
        %1571 = vmatpush1.msra.mxu0 %v1530
        %1572 = vmatprep.subr.mxu0 0.0
        %1573 = vmatpush1.msra.mxu0 %v1531
        %1574 = vmatprep.subr.mxu0 0.0
        %1575 = vmatpush1.msra.mxu0 %v1532
        %1576 = vmatprep.subr.mxu0 0.0
        %1577 = vmatpush1.msra.mxu0 %v1533
        %1578 = vmatprep.subr.mxu0 0.0
        %1579 = vmatpush1.msra.mxu0 %v1534
        %1580 = vmatprep.subr.mxu0 0.0
        %1581 = vmatpush1.msra.mxu0 %v1535
        %1582 = vmatprep.subr.mxu0 0.0
        %1583 = vmatpush1.msra.mxu0 %v1536
        %1584 = vmatprep.subr.mxu0 0.0
        %1585 = vmatpush1.msra.mxu0 %v1537
        %1586 = vmatprep.subr.mxu0 0.0
        %1587 = vmatpush1.msra.mxu0 %v1538
        %1588 = vmatprep.subr.mxu0 0.0
        %1589 = vmatpush1.msra.mxu0 %v1539
        %1590 = vmatprep.subr.mxu0 0.0
        %1591 = vmatpush1.msra.mxu0 %v1540
        %1592 = vmatprep.subr.mxu0 0.0
        %1593 = vmatpush1.msra.mxu0 %v1541
        %1594 = vmatprep.subr.mxu0 0.0
        %1595 = vmatpush1.msra.mxu0 %v1542
        %1596 = vmatprep.subr.mxu0 0.0
        %1597 = vmatpush1.msra.mxu0 %v1543
        %1598 = vmatprep.subr.mxu0 0.0
        %1599 = vmatpush1.msra.mxu0 %v1544
        %1600 = vmatprep.subr.mxu0 0.0
        %1601 = vmatpush1.msra.mxu0 %v1545
        %1602 = vmatprep.subr.mxu0 0.0
        %1603 = vmatpush1.msra.mxu0 %v1546
        %1604 = vmatprep.subr.mxu0 0.0
        %1605 = vmatpush1.msra.mxu0 %v1547
        %1606 = vmatprep.subr.mxu0 0.0
        %1607 = vmatpush1.msra.mxu0 %v1548
        %1608 = vmatprep.subr.mxu0 0.0
        %1609 = vmatpush1.msra.mxu0 %v1549
        %1610 = vmatprep.subr.mxu0 0.0
        %1611 = vmatpush1.msra.mxu0 %v1550
        %1612 = vmatprep.subr.mxu0 0.0
        %1613 = vmatpush1.msra.mxu0 %v1551
        %1614 = vmatprep.subr.mxu0 0.0
        %1615 = vmatpush1.msra.mxu0 %v1552
        %1616 = vmatprep.subr.mxu0 0.0
        %1617 = vmatpush1.msra.mxu0 %v1553
        %1618 = vmatprep.mubr.f32.mxu0 %v253
        %1619 = vmatmul.mubr.f32.gmra.mrb[0].mxu0 %v217
        %v1620 = vpop.f32.mrb[0].mxu0
        %v1621 = vadd.f32 0.0, %v1620
        %v1622 = vpop.f32.mrb[0].mxu0
        %1623 = vmatprep.mubr.f32.mxu0 %v254
        %1624 = vmatmul.mubr.f32.gmra.mrb[0].mxu0 %v218
        %v1625 = vpop.f32.mrb[0].mxu0
        %v1626 = vadd.f32 0.0, %v1625
        %v1627 = vpop.f32.mrb[0].mxu0
        %1628 = vmatprep.mubr.f32.mxu0 %v255
        %1629 = vmatmul.mubr.f32.gmra.mrb[0].mxu0 %v219
        %v1630 = vpop.f32.mrb[0].mxu0
        %v1631 = vadd.f32 0.0, %v1630
        %v1632 = vpop.f32.mrb[0].mxu0
        %1633 = vmatprep.mubr.f32.mxu0 %v256
        %1634 = vmatmul.mubr.f32.gmra.mrb[0].mxu0 %v220
        %v1635 = vpop.f32.mrb[0].mxu0
        %v1636 = vadd.f32 0.0, %v1635
        %v1637 = vpop.f32.mrb[0].mxu0
        %1638 = vmatprep.mubr.f32.mxu0 %v257
        %1639 = vmatmul.mubr.f32.gmra.mrb[0].mxu0 %v221
        %v1640 = vpop.f32.mrb[0].mxu0
        %v1641 = vadd.f32 0.0, %v1640
        %v1642 = vpop.f32.mrb[0].mxu0
        %1643 = vmatprep.mubr.f32.mxu0 %v258
        %1644 = vmatmul.mubr.f32.gmra.mrb[0].mxu0 %v222
        %v1645 = vpop.f32.mrb[0].mxu0
        %v1646 = vadd.f32 0.0, %v1645
        %v1647 = vpop.f32.mrb[0].mxu0
        %1648 = vmatprep.mubr.f32.mxu0 %v259
        %1649 = vmatmul.mubr.f32.gmra.mrb[0].mxu0 %v223
        %v1650 = vpop.f32.mrb[0].mxu0
        %v1651 = vadd.f32 0.0, %v1650
        %v1652 = vpop.f32.mrb[0].mxu0
        %1653 = vmatprep.mubr.f32.mxu0 %v260
        %1654 = vmatmul.mubr.f32.gmra.mrb[0].mxu0 %v224
        %v1655 = vpop.f32.mrb[0].mxu0
        %v1656 = vadd.f32 0.0, %v1655
        %v1657 = vpop.f32.mrb[0].mxu0
        %1658 = vmatprep.mubr.f32.mxu0 %v261
        %1659 = vmatmul.mubr.f32.gmra.mrb[0].mxu0 %v225
        %v1660 = vpop.f32.mrb[0].mxu0
        %v1661 = vadd.f32 0.0, %v1660
        %v1662 = vpop.f32.mrb[0].mxu0
        %1663 = vmatprep.mubr.f32.mxu0 %v262
        %1664 = vmatmul.mubr.f32.gmra.mrb[0].mxu0 %v226
        %v1665 = vpop.f32.mrb[0].mxu0
        %v1666 = vadd.f32 0.0, %v1665
        %v1667 = vpop.f32.mrb[0].mxu0
        %1668 = vmatprep.mubr.f32.mxu0 %v263
        %1669 = vmatmul.mubr.f32.gmra.mrb[0].mxu0 %v227
        %v1670 = vpop.f32.mrb[0].mxu0
        %v1671 = vadd.f32 0.0, %v1670
        %v1672 = vpop.f32.mrb[0].mxu0
        %1673 = vmatprep.mubr.f32.mxu0 %v264
        %1674 = vmatmul.mubr.f32.gmra.mrb[0].mxu0 %v228
        %v1675 = vpop.f32.mrb[0].mxu0
        %v1676 = vadd.f32 0.0, %v1675
        %v1677 = vpop.f32.mrb[0].mxu0
        %1678 = vmatprep.mubr.f32.mxu0 %v265
        %1679 = vmatmul.mubr.f32.gmra.mrb[0].mxu0 %v229
        %v1680 = vpop.f32.mrb[0].mxu0
        %v1681 = vadd.f32 0.0, %v1680
        %v1682 = vpop.f32.mrb[0].mxu0
        %1683 = vmatprep.mubr.f32.mxu0 %v266
        %1684 = vmatmul.mubr.f32.gmra.mrb[0].mxu0 %v230
        %v1685 = vpop.f32.mrb[0].mxu0
        %v1686 = vadd.f32 0.0, %v1685
        %v1687 = vpop.f32.mrb[0].mxu0
        %1688 = vmatprep.mubr.f32.mxu0 %v267
        %1689 = vmatmul.mubr.f32.gmra.mrb[0].mxu0 %v231
        %v1690 = vpop.f32.mrb[0].mxu0
        %v1691 = vadd.f32 0.0, %v1690
        %v1692 = vpop.f32.mrb[0].mxu0
        %1693 = vmatprep.mubr.f32.mxu0 %v268
        %1694 = vmatmul.mubr.f32.gmra.mrb[0].mxu0 %v232
        %v1695 = vpop.f32.mrb[0].mxu0
        %v1696 = vadd.f32 0.0, %v1695
        %v1697 = vpop.f32.mrb[0].mxu0
        %1698 = vmatprep.mubr.f32.mxu0 %v269
        %1699 = vmatmul.mubr.f32.gmra.mrb[0].mxu0 %v233
        %v1700 = vpop.f32.mrb[0].mxu0
        %v1701 = vadd.f32 0.0, %v1700
        %v1702 = vpop.f32.mrb[0].mxu0
        %1703 = vmatprep.mubr.f32.mxu0 %v270
        %1704 = vmatmul.mubr.f32.gmra.mrb[0].mxu0 %v234
        %v1705 = vpop.f32.mrb[0].mxu0
        %v1706 = vadd.f32 0.0, %v1705
        %v1707 = vpop.f32.mrb[0].mxu0
        %1708 = vmatprep.mubr.f32.mxu0 %v271
        %1709 = vmatmul.mubr.f32.gmra.mrb[0].mxu0 %v235
        %v1710 = vpop.f32.mrb[0].mxu0
        %v1711 = vadd.f32 0.0, %v1710
        %v1712 = vpop.f32.mrb[0].mxu0
        %1713 = vmatprep.mubr.f32.mxu0 %v272
        %1714 = vmatmul.mubr.f32.gmra.mrb[0].mxu0 %v236
        %v1715 = vpop.f32.mrb[0].mxu0
        %v1716 = vadd.f32 0.0, %v1715
        %v1717 = vpop.f32.mrb[0].mxu0
        %1718 = vmatprep.mubr.f32.mxu0 %v273
        %1719 = vmatmul.mubr.f32.gmra.mrb[0].mxu0 %v237
        %v1720 = vpop.f32.mrb[0].mxu0
        %v1721 = vadd.f32 0.0, %v1720
        %v1722 = vpop.f32.mrb[0].mxu0
        %1723 = vmatprep.mubr.f32.mxu0 %v274
        %1724 = vmatmul.mubr.f32.gmra.mrb[0].mxu0 %v238
        %v1725 = vpop.f32.mrb[0].mxu0
        %v1726 = vadd.f32 0.0, %v1725
        %v1727 = vpop.f32.mrb[0].mxu0
        %1728 = vmatprep.mubr.f32.mxu0 %v275
        %1729 = vmatmul.mubr.f32.gmra.mrb[0].mxu0 %v239
        %v1730 = vpop.f32.mrb[0].mxu0
        %v1731 = vadd.f32 0.0, %v1730
        %v1732 = vpop.f32.mrb[0].mxu0
        %1733 = vmatprep.mubr.f32.mxu0 %v276
        %1734 = vmatmul.mubr.f32.gmra.mrb[0].mxu0 %v240
        %v1735 = vpop.f32.mrb[0].mxu0
        %v1736 = vadd.f32 0.0, %v1735
        %v1737 = vpop.f32.mrb[0].mxu0
        %1738 = vmatprep.mubr.f32.mxu0 %v277
        %1739 = vmatmul.mubr.f32.gmra.mrb[0].mxu0 %v241
        %v1740 = vpop.f32.mrb[0].mxu0
        %v1741 = vadd.f32 0.0, %v1740
        %v1742 = vpop.f32.mrb[0].mxu0
        %1743 = vmatprep.mubr.f32.mxu0 %v278
        %1744 = vmatmul.mubr.f32.gmra.mrb[0].mxu0 %v242
        %v1745 = vpop.f32.mrb[0].mxu0
        %v1746 = vadd.f32 0.0, %v1745
        %v1747 = vpop.f32.mrb[0].mxu0
        %1748 = vmatprep.mubr.f32.mxu0 %v279
        %1749 = vmatmul.mubr.f32.gmra.mrb[0].mxu0 %v243
        %v1750 = vpop.f32.mrb[0].mxu0
        %v1751 = vadd.f32 0.0, %v1750
        %v1752 = vpop.f32.mrb[0].mxu0
        %1753 = vmatprep.mubr.f32.mxu0 %v280
        %1754 = vmatmul.mubr.f32.gmra.mrb[0].mxu0 %v244
        %v1755 = vpop.f32.mrb[0].mxu0
        %v1756 = vadd.f32 0.0, %v1755
        %v1757 = vpop.f32.mrb[0].mxu0
        %1758 = vmatprep.mubr.f32.mxu0 %v281
        %1759 = vmatmul.mubr.f32.gmra.mrb[0].mxu0 %v245
        %v1760 = vpop.f32.mrb[0].mxu0
        %v1761 = vadd.f32 0.0, %v1760
        %v1762 = vpop.f32.mrb[0].mxu0
        %1763 = vmatprep.mubr.f32.mxu0 %v282
        %1764 = vmatmul.mubr.f32.gmra.mrb[0].mxu0 %v246
        %v1765 = vpop.f32.mrb[0].mxu0
        %v1766 = vadd.f32 0.0, %v1765
        %v1767 = vpop.f32.mrb[0].mxu0
        %1768 = vmatprep.mubr.f32.mxu0 %v283
        %1769 = vmatmul.mubr.f32.gmra.mrb[0].mxu0 %v247
        %v1770 = vpop.f32.mrb[0].mxu0
        %v1771 = vadd.f32 0.0, %v1770
        %v1772 = vpop.f32.mrb[0].mxu0
        %1773 = vmatprep.mubr.f32.mxu0 %v284
        %1774 = vmatmul.mubr.f32.gmra.mrb[0].mxu0 %v248
        %v1775 = vpop.f32.mrb[0].mxu0
        %v1776 = vadd.f32 0.0, %v1775
        %v1777 = vpop.f32.mrb[0].mxu0
        %1778 = vdwg.mxu0
        %1779 = vmatprep.subr.mxu0 0.0
        %1780 = vmatpush1.msra.mxu0 %v1489
        %1781 = vmatprep.subr.mxu0 0.0
        %1782 = vmatpush1.msra.mxu0 %v1490
        %1783 = vmatprep.subr.mxu0 0.0
        %1784 = vmatpush1.msra.mxu0 %v1491
        %1785 = vmatprep.subr.mxu0 0.0
        %1786 = vmatpush1.msra.mxu0 %v1492
        %1787 = vmatprep.subr.mxu0 0.0
        %1788 = vmatpush1.msra.mxu0 %v1493
        %1789 = vmatprep.subr.mxu0 0.0
        %1790 = vmatpush1.msra.mxu0 %v1494
        %1791 = vmatprep.subr.mxu0 0.0
        %1792 = vmatpush1.msra.mxu0 %v1495
        %1793 = vmatprep.subr.mxu0 0.0
        %1794 = vmatpush1.msra.mxu0 %v1496
        %1795 = vmatprep.subr.mxu0 0.0
        %1796 = vmatpush1.msra.mxu0 %v1497
        %1797 = vmatprep.subr.mxu0 0.0
        %1798 = vmatpush1.msra.mxu0 %v1498
        %1799 = vmatprep.subr.mxu0 0.0
        %1800 = vmatpush1.msra.mxu0 %v1499
        %1801 = vmatprep.subr.mxu0 0.0
        %1802 = vmatpush1.msra.mxu0 %v1500
        %1803 = vmatprep.subr.mxu0 0.0
        %1804 = vmatpush1.msra.mxu0 %v1501
        %1805 = vmatprep.subr.mxu0 0.0
        %1806 = vmatpush1.msra.mxu0 %v1502
        %1807 = vmatprep.subr.mxu0 0.0
        %1808 = vmatpush1.msra.mxu0 %v1503
        %1809 = vmatprep.subr.mxu0 0.0
        %1810 = vmatpush1.msra.mxu0 %v1504
        %1811 = vmatprep.subr.mxu0 0.0
        %1812 = vmatpush1.msra.mxu0 %v1505
        %1813 = vmatprep.subr.mxu0 0.0
        %1814 = vmatpush1.msra.mxu0 %v1506
        %1815 = vmatprep.subr.mxu0 0.0
        %1816 = vmatpush1.msra.mxu0 %v1507
        %1817 = vmatprep.subr.mxu0 0.0
        %1818 = vmatpush1.msra.mxu0 %v1508
        %1819 = vmatprep.subr.mxu0 0.0
        %1820 = vmatpush1.msra.mxu0 %v1509
        %1821 = vmatprep.subr.mxu0 0.0
        %1822 = vmatpush1.msra.mxu0 %v1510
        %1823 = vmatprep.subr.mxu0 0.0
        %1824 = vmatpush1.msra.mxu0 %v1511
        %1825 = vmatprep.subr.mxu0 0.0
        %1826 = vmatpush1.msra.mxu0 %v1512
        %1827 = vmatprep.subr.mxu0 0.0
        %1828 = vmatpush1.msra.mxu0 %v1513
        %1829 = vmatprep.subr.mxu0 0.0
        %1830 = vmatpush1.msra.mxu0 %v1514
        %1831 = vmatprep.subr.mxu0 0.0
        %1832 = vmatpush1.msra.mxu0 %v1515
        %1833 = vmatprep.subr.mxu0 0.0
        %1834 = vmatpush1.msra.mxu0 %v1516
        %1835 = vmatprep.subr.mxu0 0.0
        %1836 = vmatpush1.msra.mxu0 %v1517
        %1837 = vmatprep.subr.mxu0 0.0
        %1838 = vmatpush1.msra.mxu0 %v1518
        %1839 = vmatprep.subr.mxu0 0.0
        %1840 = vmatpush1.msra.mxu0 %v1519
        %1841 = vmatprep.subr.mxu0 0.0
        %1842 = vmatpush1.msra.mxu0 %v1520
        %1843 = vmatprep.mubr.f32.mxu0 %v251
        %1844 = vmatmul.mubr.f32.gmra.mrb[0].mxu0 %v215
        %v1845 = vpop.f32.mrb[0].mxu0
        %v1846 = vadd.f32 %v1621, %v1845
        %v1847 = vpop.f32.mrb[0].mxu0
        %1848 = vmatprep.mubr.f32.mxu0 %v252
        %1849 = vmatmul.mubr.f32.gmra.mrb[0].mxu0 %v216
        %v1850 = vpop.f32.mrb[0].mxu0
        %v1851 = vadd.f32 %v1626, %v1850
        %v1852 = vpop.f32.mrb[0].mxu0
        %1853 = vmatprep.mubr.f32.mxu0 %v253
        %1854 = vmatmul.mubr.f32.gmra.mrb[0].mxu0 %v217
        %v1855 = vpop.f32.mrb[0].mxu0
        %v1856 = vadd.f32 %v1631, %v1855
        %v1857 = vpop.f32.mrb[0].mxu0
        %1858 = vmatprep.mubr.f32.mxu0 %v254
        %1859 = vmatmul.mubr.f32.gmra.mrb[0].mxu0 %v218
        %v1860 = vpop.f32.mrb[0].mxu0
        %v1861 = vadd.f32 %v1636, %v1860
        %v1862 = vpop.f32.mrb[0].mxu0
        %1863 = vmatprep.mubr.f32.mxu0 %v255
        %1864 = vmatmul.mubr.f32.gmra.mrb[0].mxu0 %v219
        %v1865 = vpop.f32.mrb[0].mxu0
        %v1866 = vadd.f32 %v1641, %v1865
        %v1867 = vpop.f32.mrb[0].mxu0
        %1868 = vmatprep.mubr.f32.mxu0 %v256
        %1869 = vmatmul.mubr.f32.gmra.mrb[0].mxu0 %v220
        %v1870 = vpop.f32.mrb[0].mxu0
        %v1871 = vadd.f32 %v1646, %v1870
        %v1872 = vpop.f32.mrb[0].mxu0
        %1873 = vmatprep.mubr.f32.mxu0 %v257
        %1874 = vmatmul.mubr.f32.gmra.mrb[0].mxu0 %v221
        %v1875 = vpop.f32.mrb[0].mxu0
        %v1876 = vadd.f32 %v1651, %v1875
        %v1877 = vpop.f32.mrb[0].mxu0
        %1878 = vmatprep.mubr.f32.mxu0 %v258
        %1879 = vmatmul.mubr.f32.gmra.mrb[0].mxu0 %v222
        %v1880 = vpop.f32.mrb[0].mxu0
        %v1881 = vadd.f32 %v1656, %v1880
        %v1882 = vpop.f32.mrb[0].mxu0
        %1883 = vmatprep.mubr.f32.mxu0 %v259
        %1884 = vmatmul.mubr.f32.gmra.mrb[0].mxu0 %v223
        %v1885 = vpop.f32.mrb[0].mxu0
        %v1886 = vadd.f32 %v1661, %v1885
        %v1887 = vpop.f32.mrb[0].mxu0
        %1888 = vmatprep.mubr.f32.mxu0 %v260
        %1889 = vmatmul.mubr.f32.gmra.mrb[0].mxu0 %v224
        %v1890 = vpop.f32.mrb[0].mxu0
        %v1891 = vadd.f32 %v1666, %v1890
        %v1892 = vpop.f32.mrb[0].mxu0
        %1893 = vmatprep.mubr.f32.mxu0 %v261
        %1894 = vmatmul.mubr.f32.gmra.mrb[0].mxu0 %v225
        %v1895 = vpop.f32.mrb[0].mxu0
        %v1896 = vadd.f32 %v1671, %v1895
        %v1897 = vpop.f32.mrb[0].mxu0
        %1898 = vmatprep.mubr.f32.mxu0 %v262
        %1899 = vmatmul.mubr.f32.gmra.mrb[0].mxu0 %v226
        %v1900 = vpop.f32.mrb[0].mxu0
        %v1901 = vadd.f32 %v1676, %v1900
        %v1902 = vpop.f32.mrb[0].mxu0
        %1903 = vmatprep.mubr.f32.mxu0 %v263
        %1904 = vmatmul.mubr.f32.gmra.mrb[0].mxu0 %v227
        %v1905 = vpop.f32.mrb[0].mxu0
        %v1906 = vadd.f32 %v1681, %v1905
        %v1907 = vpop.f32.mrb[0].mxu0
        %1908 = vmatprep.mubr.f32.mxu0 %v264
        %1909 = vmatmul.mubr.f32.gmra.mrb[0].mxu0 %v228
        %v1910 = vpop.f32.mrb[0].mxu0
        %v1911 = vadd.f32 %v1686, %v1910
        %v1912 = vpop.f32.mrb[0].mxu0
        %1913 = vmatprep.mubr.f32.mxu0 %v265
        %1914 = vmatmul.mubr.f32.gmra.mrb[0].mxu0 %v229
        %v1915 = vpop.f32.mrb[0].mxu0
        %v1916 = vadd.f32 %v1691, %v1915
        %v1917 = vpop.f32.mrb[0].mxu0
        %1918 = vmatprep.mubr.f32.mxu0 %v266
        %1919 = vmatmul.mubr.f32.gmra.mrb[0].mxu0 %v230
        %v1920 = vpop.f32.mrb[0].mxu0
        %v1921 = vadd.f32 %v1696, %v1920
        %v1922 = vpop.f32.mrb[0].mxu0
        %1923 = vmatprep.mubr.f32.mxu0 %v267
        %1924 = vmatmul.mubr.f32.gmra.mrb[0].mxu0 %v231
        %v1925 = vpop.f32.mrb[0].mxu0
        %v1926 = vadd.f32 %v1701, %v1925
        %v1927 = vpop.f32.mrb[0].mxu0
        %1928 = vmatprep.mubr.f32.mxu0 %v268
        %1929 = vmatmul.mubr.f32.gmra.mrb[0].mxu0 %v232
        %v1930 = vpop.f32.mrb[0].mxu0
        %v1931 = vadd.f32 %v1706, %v1930
        %v1932 = vpop.f32.mrb[0].mxu0
        %1933 = vmatprep.mubr.f32.mxu0 %v269
        %1934 = vmatmul.mubr.f32.gmra.mrb[0].mxu0 %v233
        %v1935 = vpop.f32.mrb[0].mxu0
        %v1936 = vadd.f32 %v1711, %v1935
        %v1937 = vpop.f32.mrb[0].mxu0
        %1938 = vmatprep.mubr.f32.mxu0 %v270
        %1939 = vmatmul.mubr.f32.gmra.mrb[0].mxu0 %v234
        %v1940 = vpop.f32.mrb[0].mxu0
        %v1941 = vadd.f32 %v1716, %v1940
        %v1942 = vpop.f32.mrb[0].mxu0
        %1943 = vmatprep.mubr.f32.mxu0 %v271
        %1944 = vmatmul.mubr.f32.gmra.mrb[0].mxu0 %v235
        %v1945 = vpop.f32.mrb[0].mxu0
        %v1946 = vadd.f32 %v1721, %v1945
        %v1947 = vpop.f32.mrb[0].mxu0
        %1948 = vmatprep.mubr.f32.mxu0 %v272
        %1949 = vmatmul.mubr.f32.gmra.mrb[0].mxu0 %v236
        %v1950 = vpop.f32.mrb[0].mxu0
        %v1951 = vadd.f32 %v1726, %v1950
        %v1952 = vpop.f32.mrb[0].mxu0
        %1953 = vmatprep.mubr.f32.mxu0 %v273
        %1954 = vmatmul.mubr.f32.gmra.mrb[0].mxu0 %v237
        %v1955 = vpop.f32.mrb[0].mxu0
        %v1956 = vadd.f32 %v1731, %v1955
        %v1957 = vpop.f32.mrb[0].mxu0
        %1958 = vmatprep.mubr.f32.mxu0 %v274
        %1959 = vmatmul.mubr.f32.gmra.mrb[0].mxu0 %v238
        %v1960 = vpop.f32.mrb[0].mxu0
        %v1961 = vadd.f32 %v1736, %v1960
        %v1962 = vpop.f32.mrb[0].mxu0
        %1963 = vmatprep.mubr.f32.mxu0 %v275
        %1964 = vmatmul.mubr.f32.gmra.mrb[0].mxu0 %v239
        %v1965 = vpop.f32.mrb[0].mxu0
        %v1966 = vadd.f32 %v1741, %v1965
        %v1967 = vpop.f32.mrb[0].mxu0
        %1968 = vmatprep.mubr.f32.mxu0 %v276
        %1969 = vmatmul.mubr.f32.gmra.mrb[0].mxu0 %v240
        %v1970 = vpop.f32.mrb[0].mxu0
        %v1971 = vadd.f32 %v1746, %v1970
        %v1972 = vpop.f32.mrb[0].mxu0
        %1973 = vmatprep.mubr.f32.mxu0 %v277
        %1974 = vmatmul.mubr.f32.gmra.mrb[0].mxu0 %v241
        %v1975 = vpop.f32.mrb[0].mxu0
        %v1976 = vadd.f32 %v1751, %v1975
        %v1977 = vpop.f32.mrb[0].mxu0
        %1978 = vmatprep.mubr.f32.mxu0 %v278
        %1979 = vmatmul.mubr.f32.gmra.mrb[0].mxu0 %v242
        %v1980 = vpop.f32.mrb[0].mxu0
        %v1981 = vadd.f32 %v1756, %v1980
        %v1982 = vpop.f32.mrb[0].mxu0
        %1983 = vmatprep.mubr.f32.mxu0 %v279
        %1984 = vmatmul.mubr.f32.gmra.mrb[0].mxu0 %v243
        %v1985 = vpop.f32.mrb[0].mxu0
        %v1986 = vadd.f32 %v1761, %v1985
        %v1987 = vpop.f32.mrb[0].mxu0
        %1988 = vmatprep.mubr.f32.mxu0 %v280
        %1989 = vmatmul.mubr.f32.gmra.mrb[0].mxu0 %v244
        %v1990 = vpop.f32.mrb[0].mxu0
        %v1991 = vadd.f32 %v1766, %v1990
        %v1992 = vpop.f32.mrb[0].mxu0
        %1993 = vmatprep.mubr.f32.mxu0 %v281
        %1994 = vmatmul.mubr.f32.gmra.mrb[0].mxu0 %v245
        %v1995 = vpop.f32.mrb[0].mxu0
        %v1996 = vadd.f32 %v1771, %v1995
        %v1997 = vpop.f32.mrb[0].mxu0
        %1998 = vmatprep.mubr.f32.mxu0 %v282
        %1999 = vmatmul.mubr.f32.gmra.mrb[0].mxu0 %v246
        %v2000 = vpop.f32.mrb[0].mxu0
        %v2001 = vadd.f32 %v1776, %v2000
        %v2002 = vpop.f32.mrb[0].mxu0
        %2003 = vdwg.mxu0
        %v2004 = vadd.f32 %v1846, %v841
        %v2005 = vadd.f32 %v1851, %v841
        %v2006 = vadd.f32 %v1856, %v841
        %v2007 = vadd.f32 %v1861, %v841
        %v2008 = vadd.f32 %v1866, %v841
        %v2009 = vadd.f32 %v1871, %v841
        %v2010 = vadd.f32 %v1876, %v841
        %v2011 = vadd.f32 %v1881, %v841
        %v2012 = vadd.f32 %v1886, %v841
        %v2013 = vadd.f32 %v1891, %v841
        %v2014 = vadd.f32 %v1896, %v841
        %v2015 = vadd.f32 %v1901, %v841
        %v2016 = vadd.f32 %v1906, %v841
        %v2017 = vadd.f32 %v1911, %v841
        %v2018 = vadd.f32 %v1916, %v841
        %v2019 = vadd.f32 %v1921, %v841
        %v2020 = vadd.f32 %v1926, %v841
        %v2021 = vadd.f32 %v1931, %v841
        %v2022 = vadd.f32 %v1936, %v841
        %v2023 = vadd.f32 %v1941, %v841
        %v2024 = vadd.f32 %v1946, %v841
        %v2025 = vadd.f32 %v1951, %v841
        %v2026 = vadd.f32 %v1956, %v841
        %v2027 = vadd.f32 %v1961, %v841
        %v2028 = vadd.f32 %v1966, %v841
        %v2029 = vadd.f32 %v1971, %v841
        %v2030 = vadd.f32 %v1976, %v841
        %v2031 = vadd.f32 %v1981, %v841
        %v2032 = vadd.f32 %v1986, %v841
        %v2033 = vadd.f32 %v1991, %v841
        %v2034 = vadd.f32 %v1996, %v841
        %v2035 = vadd.f32 %v2001, %v841
        %s2036 = scalar_lea.vmem %s202, 32 [#allocation5]
        %2037 = vst [vmem:[%s2036] sm:$0xff] %v2004
        %2038 = vst [vmem:[%s2036 + $0x8] sm:$0xff] %v2005
        %2039 = vst [vmem:[%s2036 + $0x40] sm:$0xff] %v2006
        %2040 = vst [vmem:[%s2036 + $0x48] sm:$0xff] %v2007
        %2041 = vst [vmem:[%s2036 + $0x80] sm:$0xff] %v2008
        %2042 = vst [vmem:[%s2036 + $0x88] sm:$0xff] %v2009
        %2043 = vst [vmem:[%s2036 + $0xc0] sm:$0xff] %v2010
        %2044 = vst [vmem:[%s2036 + $0xc8] sm:$0xff] %v2011
        %2045 = vst [vmem:[%s2036 + $0x100] sm:$0xff] %v2012
        %2046 = vst [vmem:[%s2036 + $0x108] sm:$0xff] %v2013
        %2047 = vst [vmem:[%s2036 + $0x140] sm:$0xff] %v2014
        %2048 = vst [vmem:[%s2036 + $0x148] sm:$0xff] %v2015
        %2049 = vst [vmem:[%s2036 + $0x180] sm:$0xff] %v2016
        %2050 = vst [vmem:[%s2036 + $0x188] sm:$0xff] %v2017
        %2051 = vst [vmem:[%s2036 + $0x1c0] sm:$0xff] %v2018
        %2052 = vst [vmem:[%s2036 + $0x1c8] sm:$0xff] %v2019
        %2053 = vst [vmem:[%s2036 + $0x200] sm:$0xff] %v2020
        %2054 = vst [vmem:[%s2036 + $0x208] sm:$0xff] %v2021
        %2055 = vst [vmem:[%s2036 + $0x240] sm:$0xff] %v2022
        %2056 = vst [vmem:[%s2036 + $0x248] sm:$0xff] %v2023
        %2057 = vst [vmem:[%s2036 + $0x280] sm:$0xff] %v2024
        %2058 = vst [vmem:[%s2036 + $0x288] sm:$0xff] %v2025
        %2059 = vst [vmem:[%s2036 + $0x2c0] sm:$0xff] %v2026
        %2060 = vst [vmem:[%s2036 + $0x2c8] sm:$0xff] %v2027
        %2061 = vst [vmem:[%s2036 + $0x300] sm:$0xff] %v2028
        %2062 = vst [vmem:[%s2036 + $0x308] sm:$0xff] %v2029
        %2063 = vst [vmem:[%s2036 + $0x340] sm:$0xff] %v2030
        %2064 = vst [vmem:[%s2036 + $0x348] sm:$0xff] %v2031
        %2065 = vst [vmem:[%s2036 + $0x380] sm:$0xff] %v2032
        %2066 = vst [vmem:[%s2036 + $0x388] sm:$0xff] %v2033
        %2067 = vst [vmem:[%s2036 + $0x3c0] sm:$0xff] %v2034
        %2068 = vst [vmem:[%s2036 + $0x3c8] sm:$0xff] %v2035
        %s2069 = scalar_lea.vmem [#allocation2], 1536
        %v2070 = vld [vmem:[%s2069] sm:$0xff]
        %v2071 = vld [vmem:[%s2069 + $0x8] sm:$0xff]
        %v2072 = vld [vmem:[%s2069 + $0x10] sm:$0xff]
        %v2073 = vld [vmem:[%s2069 + $0x18] sm:$0xff]
        %v2074 = vld [vmem:[%s2069 + $0x20] sm:$0xff]
        %v2075 = vld [vmem:[%s2069 + $0x28] sm:$0xff]
        %v2076 = vld [vmem:[%s2069 + $0x30] sm:$0xff]
        %v2077 = vld [vmem:[%s2069 + $0x38] sm:$0xff]
        %v2078 = vld [vmem:[%s2069 + $0x40] sm:$0xff]
        %v2079 = vld [vmem:[%s2069 + $0x48] sm:$0xff]
        %v2080 = vld [vmem:[%s2069 + $0x50] sm:$0xff]
        %v2081 = vld [vmem:[%s2069 + $0x58] sm:$0xff]
        %v2082 = vld [vmem:[%s2069 + $0x60] sm:$0xff]
        %v2083 = vld [vmem:[%s2069 + $0x68] sm:$0xff]
        %v2084 = vld [vmem:[%s2069 + $0x70] sm:$0xff]
        %v2085 = vld [vmem:[%s2069 + $0x78] sm:$0xff]
        %v2086 = vld [vmem:[%s2069 + $0x80] sm:$0xff]
        %v2087 = vld [vmem:[%s2069 + $0x88] sm:$0xff]
        %v2088 = vld [vmem:[%s2069 + $0x90] sm:$0xff]
        %v2089 = vld [vmem:[%s2069 + $0x98] sm:$0xff]
        %v2090 = vld [vmem:[%s2069 + $0xa0] sm:$0xff]
        %v2091 = vld [vmem:[%s2069 + $0xa8] sm:$0xff]
        %v2092 = vld [vmem:[%s2069 + $0xb0] sm:$0xff]
        %v2093 = vld [vmem:[%s2069 + $0xb8] sm:$0xff]
        %v2094 = vld [vmem:[%s2069 + $0xc0] sm:$0xff]
        %v2095 = vld [vmem:[%s2069 + $0xc8] sm:$0xff]
        %v2096 = vld [vmem:[%s2069 + $0xd0] sm:$0xff]
        %v2097 = vld [vmem:[%s2069 + $0xd8] sm:$0xff]
        %v2098 = vld [vmem:[%s2069 + $0xe0] sm:$0xff]
        %v2099 = vld [vmem:[%s2069 + $0xe8] sm:$0xff]
        %v2100 = vld [vmem:[%s2069 + $0xf0] sm:$0xff]
        %v2101 = vld [vmem:[%s2069 + $0xf8] sm:$0xff]
        %s2102 = scalar_lea.vmem [#allocation2], 1792
        %v2103 = vld [vmem:[%s2102] sm:$0xff]
        %v2104 = vld [vmem:[%s2102 + $0x8] sm:$0xff]
        %v2105 = vld [vmem:[%s2102 + $0x10] sm:$0xff]
        %v2106 = vld [vmem:[%s2102 + $0x18] sm:$0xff]
        %v2107 = vld [vmem:[%s2102 + $0x20] sm:$0xff]
        %v2108 = vld [vmem:[%s2102 + $0x28] sm:$0xff]
        %v2109 = vld [vmem:[%s2102 + $0x30] sm:$0xff]
        %v2110 = vld [vmem:[%s2102 + $0x38] sm:$0xff]
        %v2111 = vld [vmem:[%s2102 + $0x40] sm:$0xff]
        %v2112 = vld [vmem:[%s2102 + $0x48] sm:$0xff]
        %v2113 = vld [vmem:[%s2102 + $0x50] sm:$0xff]
        %v2114 = vld [vmem:[%s2102 + $0x58] sm:$0xff]
        %v2115 = vld [vmem:[%s2102 + $0x60] sm:$0xff]
        %v2116 = vld [vmem:[%s2102 + $0x68] sm:$0xff]
        %v2117 = vld [vmem:[%s2102 + $0x70] sm:$0xff]
        %v2118 = vld [vmem:[%s2102 + $0x78] sm:$0xff]
        %v2119 = vld [vmem:[%s2102 + $0x80] sm:$0xff]
        %v2120 = vld [vmem:[%s2102 + $0x88] sm:$0xff]
        %v2121 = vld [vmem:[%s2102 + $0x90] sm:$0xff]
        %v2122 = vld [vmem:[%s2102 + $0x98] sm:$0xff]
        %v2123 = vld [vmem:[%s2102 + $0xa0] sm:$0xff]
        %v2124 = vld [vmem:[%s2102 + $0xa8] sm:$0xff]
        %v2125 = vld [vmem:[%s2102 + $0xb0] sm:$0xff]
        %v2126 = vld [vmem:[%s2102 + $0xb8] sm:$0xff]
        %v2127 = vld [vmem:[%s2102 + $0xc0] sm:$0xff]
        %v2128 = vld [vmem:[%s2102 + $0xc8] sm:$0xff]
        %v2129 = vld [vmem:[%s2102 + $0xd0] sm:$0xff]
        %v2130 = vld [vmem:[%s2102 + $0xd8] sm:$0xff]
        %v2131 = vld [vmem:[%s2102 + $0xe0] sm:$0xff]
        %v2132 = vld [vmem:[%s2102 + $0xe8] sm:$0xff]
        %v2133 = vld [vmem:[%s2102 + $0xf0] sm:$0xff]
        %v2134 = vld [vmem:[%s2102 + $0xf8] sm:$0xff]
        %2135 = vmatprep.subr.mxu0 0.0
        %2136 = vmatpush1.msra.mxu0 %v2103
        %2137 = vmatprep.subr.mxu0 0.0
        %2138 = vmatpush1.msra.mxu0 %v2104
        %2139 = vmatprep.subr.mxu0 0.0
        %2140 = vmatpush1.msra.mxu0 %v2105
        %2141 = vmatprep.subr.mxu0 0.0
        %2142 = vmatpush1.msra.mxu0 %v2106
        %2143 = vmatprep.subr.mxu0 0.0
        %2144 = vmatpush1.msra.mxu0 %v2107
        %2145 = vmatprep.subr.mxu0 0.0
        %2146 = vmatpush1.msra.mxu0 %v2108
        %2147 = vmatprep.subr.mxu0 0.0
        %2148 = vmatpush1.msra.mxu0 %v2109
        %2149 = vmatprep.subr.mxu0 0.0
        %2150 = vmatpush1.msra.mxu0 %v2110
        %2151 = vmatprep.subr.mxu0 0.0
        %2152 = vmatpush1.msra.mxu0 %v2111
        %2153 = vmatprep.subr.mxu0 0.0
        %2154 = vmatpush1.msra.mxu0 %v2112
        %2155 = vmatprep.subr.mxu0 0.0
        %2156 = vmatpush1.msra.mxu0 %v2113
        %2157 = vmatprep.subr.mxu0 0.0
        %2158 = vmatpush1.msra.mxu0 %v2114
        %2159 = vmatprep.subr.mxu0 0.0
        %2160 = vmatpush1.msra.mxu0 %v2115
        %2161 = vmatprep.subr.mxu0 0.0
        %2162 = vmatpush1.msra.mxu0 %v2116
        %2163 = vmatprep.subr.mxu0 0.0
        %2164 = vmatpush1.msra.mxu0 %v2117
        %2165 = vmatprep.subr.mxu0 0.0
        %2166 = vmatpush1.msra.mxu0 %v2118
        %2167 = vmatprep.subr.mxu0 0.0
        %2168 = vmatpush1.msra.mxu0 %v2119
        %2169 = vmatprep.subr.mxu0 0.0
        %2170 = vmatpush1.msra.mxu0 %v2120
        %2171 = vmatprep.subr.mxu0 0.0
        %2172 = vmatpush1.msra.mxu0 %v2121
        %2173 = vmatprep.subr.mxu0 0.0
        %2174 = vmatpush1.msra.mxu0 %v2122
        %2175 = vmatprep.subr.mxu0 0.0
        %2176 = vmatpush1.msra.mxu0 %v2123
        %2177 = vmatprep.subr.mxu0 0.0
        %2178 = vmatpush1.msra.mxu0 %v2124
        %2179 = vmatprep.subr.mxu0 0.0
        %2180 = vmatpush1.msra.mxu0 %v2125
        %2181 = vmatprep.subr.mxu0 0.0
        %2182 = vmatpush1.msra.mxu0 %v2126
        %2183 = vmatprep.subr.mxu0 0.0
        %2184 = vmatpush1.msra.mxu0 %v2127
        %2185 = vmatprep.subr.mxu0 0.0
        %2186 = vmatpush1.msra.mxu0 %v2128
        %2187 = vmatprep.subr.mxu0 0.0
        %2188 = vmatpush1.msra.mxu0 %v2129
        %2189 = vmatprep.subr.mxu0 0.0
        %2190 = vmatpush1.msra.mxu0 %v2130
        %2191 = vmatprep.subr.mxu0 0.0
        %2192 = vmatpush1.msra.mxu0 %v2131
        %2193 = vmatprep.subr.mxu0 0.0
        %2194 = vmatpush1.msra.mxu0 %v2132
        %2195 = vmatprep.subr.mxu0 0.0
        %2196 = vmatpush1.msra.mxu0 %v2133
        %2197 = vmatprep.subr.mxu0 0.0
        %2198 = vmatpush1.msra.mxu0 %v2134
        %2199 = vmatprep.mubr.f32.mxu0 %v289
        %2200 = vmatmul.mubr.f32.gmra.mrb[0].mxu0 %v253
        %v2201 = vpop.f32.mrb[0].mxu0
        %v2202 = vadd.f32 0.0, %v2201
        %v2203 = vpop.f32.mrb[0].mxu0
        %2204 = vmatprep.mubr.f32.mxu0 %v290
        %2205 = vmatmul.mubr.f32.gmra.mrb[0].mxu0 %v254
        %v2206 = vpop.f32.mrb[0].mxu0
        %v2207 = vadd.f32 0.0, %v2206
        %v2208 = vpop.f32.mrb[0].mxu0
        %2209 = vmatprep.mubr.f32.mxu0 %v291
        %2210 = vmatmul.mubr.f32.gmra.mrb[0].mxu0 %v255
        %v2211 = vpop.f32.mrb[0].mxu0
        %v2212 = vadd.f32 0.0, %v2211
        %v2213 = vpop.f32.mrb[0].mxu0
        %2214 = vmatprep.mubr.f32.mxu0 %v292
        %2215 = vmatmul.mubr.f32.gmra.mrb[0].mxu0 %v256
        %v2216 = vpop.f32.mrb[0].mxu0
        %v2217 = vadd.f32 0.0, %v2216
        %v2218 = vpop.f32.mrb[0].mxu0
        %2219 = vmatprep.mubr.f32.mxu0 %v293
        %2220 = vmatmul.mubr.f32.gmra.mrb[0].mxu0 %v257
        %v2221 = vpop.f32.mrb[0].mxu0
        %v2222 = vadd.f32 0.0, %v2221
        %v2223 = vpop.f32.mrb[0].mxu0
        %2224 = vmatprep.mubr.f32.mxu0 %v294
        %2225 = vmatmul.mubr.f32.gmra.mrb[0].mxu0 %v258
        %v2226 = vpop.f32.mrb[0].mxu0
        %v2227 = vadd.f32 0.0, %v2226
        %v2228 = vpop.f32.mrb[0].mxu0
        %2229 = vmatprep.mubr.f32.mxu0 %v295
        %2230 = vmatmul.mubr.f32.gmra.mrb[0].mxu0 %v259
        %v2231 = vpop.f32.mrb[0].mxu0
        %v2232 = vadd.f32 0.0, %v2231
        %v2233 = vpop.f32.mrb[0].mxu0
        %2234 = vmatprep.mubr.f32.mxu0 %v296
        %2235 = vmatmul.mubr.f32.gmra.mrb[0].mxu0 %v260
        %v2236 = vpop.f32.mrb[0].mxu0
        %v2237 = vadd.f32 0.0, %v2236
        %v2238 = vpop.f32.mrb[0].mxu0
        %2239 = vmatprep.mubr.f32.mxu0 %v297
        %2240 = vmatmul.mubr.f32.gmra.mrb[0].mxu0 %v261
        %v2241 = vpop.f32.mrb[0].mxu0
        %v2242 = vadd.f32 0.0, %v2241
        %v2243 = vpop.f32.mrb[0].mxu0
        %2244 = vmatprep.mubr.f32.mxu0 %v298
        %2245 = vmatmul.mubr.f32.gmra.mrb[0].mxu0 %v262
        %v2246 = vpop.f32.mrb[0].mxu0
        %v2247 = vadd.f32 0.0, %v2246
        %v2248 = vpop.f32.mrb[0].mxu0
        %2249 = vmatprep.mubr.f32.mxu0 %v299
        %2250 = vmatmul.mubr.f32.gmra.mrb[0].mxu0 %v263
        %v2251 = vpop.f32.mrb[0].mxu0
        %v2252 = vadd.f32 0.0, %v2251
        %v2253 = vpop.f32.mrb[0].mxu0
        %2254 = vmatprep.mubr.f32.mxu0 %v300
        %2255 = vmatmul.mubr.f32.gmra.mrb[0].mxu0 %v264
        %v2256 = vpop.f32.mrb[0].mxu0
        %v2257 = vadd.f32 0.0, %v2256
        %v2258 = vpop.f32.mrb[0].mxu0
        %2259 = vmatprep.mubr.f32.mxu0 %v301
        %2260 = vmatmul.mubr.f32.gmra.mrb[0].mxu0 %v265
        %v2261 = vpop.f32.mrb[0].mxu0
        %v2262 = vadd.f32 0.0, %v2261
        %v2263 = vpop.f32.mrb[0].mxu0
        %2264 = vmatprep.mubr.f32.mxu0 %v302
        %2265 = vmatmul.mubr.f32.gmra.mrb[0].mxu0 %v266
        %v2266 = vpop.f32.mrb[0].mxu0
        %v2267 = vadd.f32 0.0, %v2266
        %v2268 = vpop.f32.mrb[0].mxu0
        %2269 = vmatprep.mubr.f32.mxu0 %v303
        %2270 = vmatmul.mubr.f32.gmra.mrb[0].mxu0 %v267
        %v2271 = vpop.f32.mrb[0].mxu0
        %v2272 = vadd.f32 0.0, %v2271
        %v2273 = vpop.f32.mrb[0].mxu0
        %2274 = vmatprep.mubr.f32.mxu0 %v304
        %2275 = vmatmul.mubr.f32.gmra.mrb[0].mxu0 %v268
        %v2276 = vpop.f32.mrb[0].mxu0
        %v2277 = vadd.f32 0.0, %v2276
        %v2278 = vpop.f32.mrb[0].mxu0
        %2279 = vmatprep.mubr.f32.mxu0 %v305
        %2280 = vmatmul.mubr.f32.gmra.mrb[0].mxu0 %v269
        %v2281 = vpop.f32.mrb[0].mxu0
        %v2282 = vadd.f32 0.0, %v2281
        %v2283 = vpop.f32.mrb[0].mxu0
        %2284 = vmatprep.mubr.f32.mxu0 %v306
        %2285 = vmatmul.mubr.f32.gmra.mrb[0].mxu0 %v270
        %v2286 = vpop.f32.mrb[0].mxu0
        %v2287 = vadd.f32 0.0, %v2286
        %v2288 = vpop.f32.mrb[0].mxu0
        %2289 = vmatprep.mubr.f32.mxu0 %v307
        %2290 = vmatmul.mubr.f32.gmra.mrb[0].mxu0 %v271
        %v2291 = vpop.f32.mrb[0].mxu0
        %v2292 = vadd.f32 0.0, %v2291
        %v2293 = vpop.f32.mrb[0].mxu0
        %2294 = vmatprep.mubr.f32.mxu0 %v308
        %2295 = vmatmul.mubr.f32.gmra.mrb[0].mxu0 %v272
        %v2296 = vpop.f32.mrb[0].mxu0
        %v2297 = vadd.f32 0.0, %v2296
        %v2298 = vpop.f32.mrb[0].mxu0
        %2299 = vmatprep.mubr.f32.mxu0 %v309
        %2300 = vmatmul.mubr.f32.gmra.mrb[0].mxu0 %v273
        %v2301 = vpop.f32.mrb[0].mxu0
        %v2302 = vadd.f32 0.0, %v2301
        %v2303 = vpop.f32.mrb[0].mxu0
        %2304 = vmatprep.mubr.f32.mxu0 %v310
        %2305 = vmatmul.mubr.f32.gmra.mrb[0].mxu0 %v274
        %v2306 = vpop.f32.mrb[0].mxu0
        %v2307 = vadd.f32 0.0, %v2306
        %v2308 = vpop.f32.mrb[0].mxu0
        %2309 = vmatprep.mubr.f32.mxu0 %v311
        %2310 = vmatmul.mubr.f32.gmra.mrb[0].mxu0 %v275
        %v2311 = vpop.f32.mrb[0].mxu0
        %v2312 = vadd.f32 0.0, %v2311
        %v2313 = vpop.f32.mrb[0].mxu0
        %2314 = vmatprep.mubr.f32.mxu0 %v312
        %2315 = vmatmul.mubr.f32.gmra.mrb[0].mxu0 %v276
        %v2316 = vpop.f32.mrb[0].mxu0
        %v2317 = vadd.f32 0.0, %v2316
        %v2318 = vpop.f32.mrb[0].mxu0
        %2319 = vmatprep.mubr.f32.mxu0 %v313
        %2320 = vmatmul.mubr.f32.gmra.mrb[0].mxu0 %v277
        %v2321 = vpop.f32.mrb[0].mxu0
        %v2322 = vadd.f32 0.0, %v2321
        %v2323 = vpop.f32.mrb[0].mxu0
        %2324 = vmatprep.mubr.f32.mxu0 %v314
        %2325 = vmatmul.mubr.f32.gmra.mrb[0].mxu0 %v278
        %v2326 = vpop.f32.mrb[0].mxu0
        %v2327 = vadd.f32 0.0, %v2326
        %v2328 = vpop.f32.mrb[0].mxu0
        %2329 = vmatprep.mubr.f32.mxu0 %v315
        %2330 = vmatmul.mubr.f32.gmra.mrb[0].mxu0 %v279
        %v2331 = vpop.f32.mrb[0].mxu0
        %v2332 = vadd.f32 0.0, %v2331
        %v2333 = vpop.f32.mrb[0].mxu0
        %2334 = vmatprep.mubr.f32.mxu0 %v316
        %2335 = vmatmul.mubr.f32.gmra.mrb[0].mxu0 %v280
        %v2336 = vpop.f32.mrb[0].mxu0
        %v2337 = vadd.f32 0.0, %v2336
        %v2338 = vpop.f32.mrb[0].mxu0
        %2339 = vmatprep.mubr.f32.mxu0 %v317
        %2340 = vmatmul.mubr.f32.gmra.mrb[0].mxu0 %v281
        %v2341 = vpop.f32.mrb[0].mxu0
        %v2342 = vadd.f32 0.0, %v2341
        %v2343 = vpop.f32.mrb[0].mxu0
        %2344 = vmatprep.mubr.f32.mxu0 %v318
        %2345 = vmatmul.mubr.f32.gmra.mrb[0].mxu0 %v282
        %v2346 = vpop.f32.mrb[0].mxu0
        %v2347 = vadd.f32 0.0, %v2346
        %v2348 = vpop.f32.mrb[0].mxu0
        %2349 = vmatprep.mubr.f32.mxu0 %v319
        %2350 = vmatmul.mubr.f32.gmra.mrb[0].mxu0 %v283
        %v2351 = vpop.f32.mrb[0].mxu0
        %v2352 = vadd.f32 0.0, %v2351
        %v2353 = vpop.f32.mrb[0].mxu0
        %2354 = vmatprep.mubr.f32.mxu0 %v320
        %2355 = vmatmul.mubr.f32.gmra.mrb[0].mxu0 %v284
        %v2356 = vpop.f32.mrb[0].mxu0
        %v2357 = vadd.f32 0.0, %v2356
        %v2358 = vpop.f32.mrb[0].mxu0
        %2359 = vdwg.mxu0
        %2360 = vmatprep.subr.mxu0 0.0
        %2361 = vmatpush1.msra.mxu0 %v2070
        %2362 = vmatprep.subr.mxu0 0.0
        %2363 = vmatpush1.msra.mxu0 %v2071
        %2364 = vmatprep.subr.mxu0 0.0
        %2365 = vmatpush1.msra.mxu0 %v2072
        %2366 = vmatprep.subr.mxu0 0.0
        %2367 = vmatpush1.msra.mxu0 %v2073
        %2368 = vmatprep.subr.mxu0 0.0
        %2369 = vmatpush1.msra.mxu0 %v2074
        %2370 = vmatprep.subr.mxu0 0.0
        %2371 = vmatpush1.msra.mxu0 %v2075
        %2372 = vmatprep.subr.mxu0 0.0
        %2373 = vmatpush1.msra.mxu0 %v2076
        %2374 = vmatprep.subr.mxu0 0.0
        %2375 = vmatpush1.msra.mxu0 %v2077
        %2376 = vmatprep.subr.mxu0 0.0
        %2377 = vmatpush1.msra.mxu0 %v2078
        %2378 = vmatprep.subr.mxu0 0.0
        %2379 = vmatpush1.msra.mxu0 %v2079
        %2380 = vmatprep.subr.mxu0 0.0
        %2381 = vmatpush1.msra.mxu0 %v2080
        %2382 = vmatprep.subr.mxu0 0.0
        %2383 = vmatpush1.msra.mxu0 %v2081
        %2384 = vmatprep.subr.mxu0 0.0
        %2385 = vmatpush1.msra.mxu0 %v2082
        %2386 = vmatprep.subr.mxu0 0.0
        %2387 = vmatpush1.msra.mxu0 %v2083
        %2388 = vmatprep.subr.mxu0 0.0
        %2389 = vmatpush1.msra.mxu0 %v2084
        %2390 = vmatprep.subr.mxu0 0.0
        %2391 = vmatpush1.msra.mxu0 %v2085
        %2392 = vmatprep.subr.mxu0 0.0
        %2393 = vmatpush1.msra.mxu0 %v2086
        %2394 = vmatprep.subr.mxu0 0.0
        %2395 = vmatpush1.msra.mxu0 %v2087
        %2396 = vmatprep.subr.mxu0 0.0
        %2397 = vmatpush1.msra.mxu0 %v2088
        %2398 = vmatprep.subr.mxu0 0.0
        %2399 = vmatpush1.msra.mxu0 %v2089
        %2400 = vmatprep.subr.mxu0 0.0
        %2401 = vmatpush1.msra.mxu0 %v2090
        %2402 = vmatprep.subr.mxu0 0.0
        %2403 = vmatpush1.msra.mxu0 %v2091
        %2404 = vmatprep.subr.mxu0 0.0
        %2405 = vmatpush1.msra.mxu0 %v2092
        %2406 = vmatprep.subr.mxu0 0.0
        %2407 = vmatpush1.msra.mxu0 %v2093
        %2408 = vmatprep.subr.mxu0 0.0
        %2409 = vmatpush1.msra.mxu0 %v2094
        %2410 = vmatprep.subr.mxu0 0.0
        %2411 = vmatpush1.msra.mxu0 %v2095
        %2412 = vmatprep.subr.mxu0 0.0
        %2413 = vmatpush1.msra.mxu0 %v2096
        %2414 = vmatprep.subr.mxu0 0.0
        %2415 = vmatpush1.msra.mxu0 %v2097
        %2416 = vmatprep.subr.mxu0 0.0
        %2417 = vmatpush1.msra.mxu0 %v2098
        %2418 = vmatprep.subr.mxu0 0.0
        %2419 = vmatpush1.msra.mxu0 %v2099
        %2420 = vmatprep.subr.mxu0 0.0
        %2421 = vmatpush1.msra.mxu0 %v2100
        %2422 = vmatprep.subr.mxu0 0.0
        %2423 = vmatpush1.msra.mxu0 %v2101
        %2424 = vmatprep.mubr.f32.mxu0 %v287
        %2425 = vmatmul.mubr.f32.gmra.mrb[0].mxu0 %v251
        %v2426 = vpop.f32.mrb[0].mxu0
        %v2427 = vadd.f32 %v2202, %v2426
        %v2428 = vpop.f32.mrb[0].mxu0
        %2429 = vmatprep.mubr.f32.mxu0 %v288
        %2430 = vmatmul.mubr.f32.gmra.mrb[0].mxu0 %v252
        %v2431 = vpop.f32.mrb[0].mxu0
        %v2432 = vadd.f32 %v2207, %v2431
        %v2433 = vpop.f32.mrb[0].mxu0
        %2434 = vmatprep.mubr.f32.mxu0 %v289
        %2435 = vmatmul.mubr.f32.gmra.mrb[0].mxu0 %v253
        %v2436 = vpop.f32.mrb[0].mxu0
        %v2437 = vadd.f32 %v2212, %v2436
        %v2438 = vpop.f32.mrb[0].mxu0
        %2439 = vmatprep.mubr.f32.mxu0 %v290
        %2440 = vmatmul.mubr.f32.gmra.mrb[0].mxu0 %v254
        %v2441 = vpop.f32.mrb[0].mxu0
        %v2442 = vadd.f32 %v2217, %v2441
        %v2443 = vpop.f32.mrb[0].mxu0
        %2444 = vmatprep.mubr.f32.mxu0 %v291
        %2445 = vmatmul.mubr.f32.gmra.mrb[0].mxu0 %v255
        %v2446 = vpop.f32.mrb[0].mxu0
        %v2447 = vadd.f32 %v2222, %v2446
        %v2448 = vpop.f32.mrb[0].mxu0
        %2449 = vmatprep.mubr.f32.mxu0 %v292
        %2450 = vmatmul.mubr.f32.gmra.mrb[0].mxu0 %v256
        %v2451 = vpop.f32.mrb[0].mxu0
        %v2452 = vadd.f32 %v2227, %v2451
        %v2453 = vpop.f32.mrb[0].mxu0
        %2454 = vmatprep.mubr.f32.mxu0 %v293
        %2455 = vmatmul.mubr.f32.gmra.mrb[0].mxu0 %v257
        %v2456 = vpop.f32.mrb[0].mxu0
        %v2457 = vadd.f32 %v2232, %v2456
        %v2458 = vpop.f32.mrb[0].mxu0
        %2459 = vmatprep.mubr.f32.mxu0 %v294
        %2460 = vmatmul.mubr.f32.gmra.mrb[0].mxu0 %v258
        %v2461 = vpop.f32.mrb[0].mxu0
        %v2462 = vadd.f32 %v2237, %v2461
        %v2463 = vpop.f32.mrb[0].mxu0
        %2464 = vmatprep.mubr.f32.mxu0 %v295
        %2465 = vmatmul.mubr.f32.gmra.mrb[0].mxu0 %v259
        %v2466 = vpop.f32.mrb[0].mxu0
        %v2467 = vadd.f32 %v2242, %v2466
        %v2468 = vpop.f32.mrb[0].mxu0
        %2469 = vmatprep.mubr.f32.mxu0 %v296
        %2470 = vmatmul.mubr.f32.gmra.mrb[0].mxu0 %v260
        %v2471 = vpop.f32.mrb[0].mxu0
        %v2472 = vadd.f32 %v2247, %v2471
        %v2473 = vpop.f32.mrb[0].mxu0
        %2474 = vmatprep.mubr.f32.mxu0 %v297
        %2475 = vmatmul.mubr.f32.gmra.mrb[0].mxu0 %v261
        %v2476 = vpop.f32.mrb[0].mxu0
        %v2477 = vadd.f32 %v2252, %v2476
        %v2478 = vpop.f32.mrb[0].mxu0
        %2479 = vmatprep.mubr.f32.mxu0 %v298
        %2480 = vmatmul.mubr.f32.gmra.mrb[0].mxu0 %v262
        %v2481 = vpop.f32.mrb[0].mxu0
        %v2482 = vadd.f32 %v2257, %v2481
        %v2483 = vpop.f32.mrb[0].mxu0
        %2484 = vmatprep.mubr.f32.mxu0 %v299
        %2485 = vmatmul.mubr.f32.gmra.mrb[0].mxu0 %v263
        %v2486 = vpop.f32.mrb[0].mxu0
        %v2487 = vadd.f32 %v2262, %v2486
        %v2488 = vpop.f32.mrb[0].mxu0
        %2489 = vmatprep.mubr.f32.mxu0 %v300
        %2490 = vmatmul.mubr.f32.gmra.mrb[0].mxu0 %v264
        %v2491 = vpop.f32.mrb[0].mxu0
        %v2492 = vadd.f32 %v2267, %v2491
        %v2493 = vpop.f32.mrb[0].mxu0
        %2494 = vmatprep.mubr.f32.mxu0 %v301
        %2495 = vmatmul.mubr.f32.gmra.mrb[0].mxu0 %v265
        %v2496 = vpop.f32.mrb[0].mxu0
        %v2497 = vadd.f32 %v2272, %v2496
        %v2498 = vpop.f32.mrb[0].mxu0
        %2499 = vmatprep.mubr.f32.mxu0 %v302
        %2500 = vmatmul.mubr.f32.gmra.mrb[0].mxu0 %v266
        %v2501 = vpop.f32.mrb[0].mxu0
        %v2502 = vadd.f32 %v2277, %v2501
        %v2503 = vpop.f32.mrb[0].mxu0
        %2504 = vmatprep.mubr.f32.mxu0 %v303
        %2505 = vmatmul.mubr.f32.gmra.mrb[0].mxu0 %v267
        %v2506 = vpop.f32.mrb[0].mxu0
        %v2507 = vadd.f32 %v2282, %v2506
        %v2508 = vpop.f32.mrb[0].mxu0
        %2509 = vmatprep.mubr.f32.mxu0 %v304
        %2510 = vmatmul.mubr.f32.gmra.mrb[0].mxu0 %v268
        %v2511 = vpop.f32.mrb[0].mxu0
        %v2512 = vadd.f32 %v2287, %v2511
        %v2513 = vpop.f32.mrb[0].mxu0
        %2514 = vmatprep.mubr.f32.mxu0 %v305
        %2515 = vmatmul.mubr.f32.gmra.mrb[0].mxu0 %v269
        %v2516 = vpop.f32.mrb[0].mxu0
        %v2517 = vadd.f32 %v2292, %v2516
        %v2518 = vpop.f32.mrb[0].mxu0
        %2519 = vmatprep.mubr.f32.mxu0 %v306
        %2520 = vmatmul.mubr.f32.gmra.mrb[0].mxu0 %v270
        %v2521 = vpop.f32.mrb[0].mxu0
        %v2522 = vadd.f32 %v2297, %v2521
        %v2523 = vpop.f32.mrb[0].mxu0
        %2524 = vmatprep.mubr.f32.mxu0 %v307
        %2525 = vmatmul.mubr.f32.gmra.mrb[0].mxu0 %v271
        %v2526 = vpop.f32.mrb[0].mxu0
        %v2527 = vadd.f32 %v2302, %v2526
        %v2528 = vpop.f32.mrb[0].mxu0
        %2529 = vmatprep.mubr.f32.mxu0 %v308
        %2530 = vmatmul.mubr.f32.gmra.mrb[0].mxu0 %v272
        %v2531 = vpop.f32.mrb[0].mxu0
        %v2532 = vadd.f32 %v2307, %v2531
        %v2533 = vpop.f32.mrb[0].mxu0
        %2534 = vmatprep.mubr.f32.mxu0 %v309
        %2535 = vmatmul.mubr.f32.gmra.mrb[0].mxu0 %v273
        %v2536 = vpop.f32.mrb[0].mxu0
        %v2537 = vadd.f32 %v2312, %v2536
        %v2538 = vpop.f32.mrb[0].mxu0
        %2539 = vmatprep.mubr.f32.mxu0 %v310
        %2540 = vmatmul.mubr.f32.gmra.mrb[0].mxu0 %v274
        %v2541 = vpop.f32.mrb[0].mxu0
        %v2542 = vadd.f32 %v2317, %v2541
        %v2543 = vpop.f32.mrb[0].mxu0
        %2544 = vmatprep.mubr.f32.mxu0 %v311
        %2545 = vmatmul.mubr.f32.gmra.mrb[0].mxu0 %v275
        %v2546 = vpop.f32.mrb[0].mxu0
        %v2547 = vadd.f32 %v2322, %v2546
        %v2548 = vpop.f32.mrb[0].mxu0
        %2549 = vmatprep.mubr.f32.mxu0 %v312
        %2550 = vmatmul.mubr.f32.gmra.mrb[0].mxu0 %v276
        %v2551 = vpop.f32.mrb[0].mxu0
        %v2552 = vadd.f32 %v2327, %v2551
        %v2553 = vpop.f32.mrb[0].mxu0
        %2554 = vmatprep.mubr.f32.mxu0 %v313
        %2555 = vmatmul.mubr.f32.gmra.mrb[0].mxu0 %v277
        %v2556 = vpop.f32.mrb[0].mxu0
        %v2557 = vadd.f32 %v2332, %v2556
        %v2558 = vpop.f32.mrb[0].mxu0
        %2559 = vmatprep.mubr.f32.mxu0 %v314
        %2560 = vmatmul.mubr.f32.gmra.mrb[0].mxu0 %v278
        %v2561 = vpop.f32.mrb[0].mxu0
        %v2562 = vadd.f32 %v2337, %v2561
        %v2563 = vpop.f32.mrb[0].mxu0
        %2564 = vmatprep.mubr.f32.mxu0 %v315
        %2565 = vmatmul.mubr.f32.gmra.mrb[0].mxu0 %v279
        %v2566 = vpop.f32.mrb[0].mxu0
        %v2567 = vadd.f32 %v2342, %v2566
        %v2568 = vpop.f32.mrb[0].mxu0
        %2569 = vmatprep.mubr.f32.mxu0 %v316
        %2570 = vmatmul.mubr.f32.gmra.mrb[0].mxu0 %v280
        %v2571 = vpop.f32.mrb[0].mxu0
        %v2572 = vadd.f32 %v2347, %v2571
        %v2573 = vpop.f32.mrb[0].mxu0
        %2574 = vmatprep.mubr.f32.mxu0 %v317
        %2575 = vmatmul.mubr.f32.gmra.mrb[0].mxu0 %v281
        %v2576 = vpop.f32.mrb[0].mxu0
        %v2577 = vadd.f32 %v2352, %v2576
        %v2578 = vpop.f32.mrb[0].mxu0
        %2579 = vmatprep.mubr.f32.mxu0 %v318
        %2580 = vmatmul.mubr.f32.gmra.mrb[0].mxu0 %v282
        %v2581 = vpop.f32.mrb[0].mxu0
        %v2582 = vadd.f32 %v2357, %v2581
        %v2583 = vpop.f32.mrb[0].mxu0
        %2584 = vdwg.mxu0
        %v2585 = vadd.f32 %v2427, %v841
        %v2586 = vadd.f32 %v2432, %v841
        %v2587 = vadd.f32 %v2437, %v841
        %v2588 = vadd.f32 %v2442, %v841
        %v2589 = vadd.f32 %v2447, %v841
        %v2590 = vadd.f32 %v2452, %v841
        %v2591 = vadd.f32 %v2457, %v841
        %v2592 = vadd.f32 %v2462, %v841
        %v2593 = vadd.f32 %v2467, %v841
        %v2594 = vadd.f32 %v2472, %v841
        %v2595 = vadd.f32 %v2477, %v841
        %v2596 = vadd.f32 %v2482, %v841
        %v2597 = vadd.f32 %v2487, %v841
        %v2598 = vadd.f32 %v2492, %v841
        %v2599 = vadd.f32 %v2497, %v841
        %v2600 = vadd.f32 %v2502, %v841
        %v2601 = vadd.f32 %v2507, %v841
        %v2602 = vadd.f32 %v2512, %v841
        %v2603 = vadd.f32 %v2517, %v841
        %v2604 = vadd.f32 %v2522, %v841
        %v2605 = vadd.f32 %v2527, %v841
        %v2606 = vadd.f32 %v2532, %v841
        %v2607 = vadd.f32 %v2537, %v841
        %v2608 = vadd.f32 %v2542, %v841
        %v2609 = vadd.f32 %v2547, %v841
        %v2610 = vadd.f32 %v2552, %v841
        %v2611 = vadd.f32 %v2557, %v841
        %v2612 = vadd.f32 %v2562, %v841
        %v2613 = vadd.f32 %v2567, %v841
        %v2614 = vadd.f32 %v2572, %v841
        %v2615 = vadd.f32 %v2577, %v841
        %v2616 = vadd.f32 %v2582, %v841
        %s2617 = scalar_lea.vmem %s202, 48 [#allocation5]
        %2618 = vst [vmem:[%s2617] sm:$0xff] %v2585
        %2619 = vst [vmem:[%s2617 + $0x8] sm:$0xff] %v2586
        %2620 = vst [vmem:[%s2617 + $0x40] sm:$0xff] %v2587
        %2621 = vst [vmem:[%s2617 + $0x48] sm:$0xff] %v2588
        %2622 = vst [vmem:[%s2617 + $0x80] sm:$0xff] %v2589
        %2623 = vst [vmem:[%s2617 + $0x88] sm:$0xff] %v2590
        %2624 = vst [vmem:[%s2617 + $0xc0] sm:$0xff] %v2591
        %2625 = vst [vmem:[%s2617 + $0xc8] sm:$0xff] %v2592
        %2626 = vst [vmem:[%s2617 + $0x100] sm:$0xff] %v2593
        %2627 = vst [vmem:[%s2617 + $0x108] sm:$0xff] %v2594
        %2628 = vst [vmem:[%s2617 + $0x140] sm:$0xff] %v2595
        %2629 = vst [vmem:[%s2617 + $0x148] sm:$0xff] %v2596
        %2630 = vst [vmem:[%s2617 + $0x180] sm:$0xff] %v2597
        %2631 = vst [vmem:[%s2617 + $0x188] sm:$0xff] %v2598
        %2632 = vst [vmem:[%s2617 + $0x1c0] sm:$0xff] %v2599
        %2633 = vst [vmem:[%s2617 + $0x1c8] sm:$0xff] %v2600
        %2634 = vst [vmem:[%s2617 + $0x200] sm:$0xff] %v2601
        %2635 = vst [vmem:[%s2617 + $0x208] sm:$0xff] %v2602
        %2636 = vst [vmem:[%s2617 + $0x240] sm:$0xff] %v2603
        %2637 = vst [vmem:[%s2617 + $0x248] sm:$0xff] %v2604
        %2638 = vst [vmem:[%s2617 + $0x280] sm:$0xff] %v2605
        %2639 = vst [vmem:[%s2617 + $0x288] sm:$0xff] %v2606
        %2640 = vst [vmem:[%s2617 + $0x2c0] sm:$0xff] %v2607
        %2641 = vst [vmem:[%s2617 + $0x2c8] sm:$0xff] %v2608
        %2642 = vst [vmem:[%s2617 + $0x300] sm:$0xff] %v2609
        %2643 = vst [vmem:[%s2617 + $0x308] sm:$0xff] %v2610
        %2644 = vst [vmem:[%s2617 + $0x340] sm:$0xff] %v2611
        %2645 = vst [vmem:[%s2617 + $0x348] sm:$0xff] %v2612
        %2646 = vst [vmem:[%s2617 + $0x380] sm:$0xff] %v2613
        %2647 = vst [vmem:[%s2617 + $0x388] sm:$0xff] %v2614
        %2648 = vst [vmem:[%s2617 + $0x3c0] sm:$0xff] %v2615
        %2649 = vst [vmem:[%s2617 + $0x3c8] sm:$0xff] %v2616
        %s2650 = sand.u32 %s110, 1
        %s2651 = scalar_lea.sflag [#allocation4], %s2650
        %s2652 = sand.u32 %s110, 1
        %s2653 = smul.addr %s2652, 1024
        %s2654 = scalar_lea.vmem [#allocation5], %s2653
        // Predicated region
        $region37: #{tpu_custom_call.1} parent=31 // pred_check
          %p2655 = pneg %p120
        $region38: #{tpu_custom_call.1} parent=31 // pred_check_branch
          %2657 = sbr.rel (%p2655) target = $region40
        $region39: #{tpu_custom_call.1} parent=31 // pred_region
          %s2658 = smul.u32 16, %s23
          %s2660 = ssub.s32 16384, 16384
          %2661 = vsyncadd %s2651, %s2660
          %s2662 = smul.addr %s2658, 8
          %s2663 = smul.addr %s22, 128
          %s2664 = sadd.s32 %s2662, %s2663
          %s2665 = smul.addr %s2664, 128
          %s2666 = scalar_lea.hbm %s3, %s2665
          %s2667 = sshll.u32 %s2654, 4
          %s2668 = int_to_ptr.vmem [resolvable:$true] %s2667
          %2673 = dma.vmem_to_hbm [thread:$0]  %s2668, 16384, %s2666, %s2651, 128, 128, 8
        $region40: #{tpu_custom_call.1} parent=31 // pred_fallthru
          _
      $region32: #{tpu_custom_call.1} parent=5 // pred_fallthru
        _
      %p2674 = scmp.le.s32.totalorder 2, %s13
      // Predicated region
      $region41: #{tpu_custom_call.1} parent=5 // pred_check
        %p2675 = pneg %p2674
      $region42: #{tpu_custom_call.1} parent=5 // pred_check_branch
        %2677 = sbr.rel (%p2675) target = $region44
      $region43: #{tpu_custom_call.1} parent=5 // pred_region
        %s2678 = ssub.s32 %s13, 2
        // Predicated region
        $region45: #{tpu_custom_call.1} parent=43 // pred_check
          %p2679 = pneg %p126
        $region46: #{tpu_custom_call.1} parent=43 // pred_check_branch
          %2681 = sbr.rel (%p2679) target = $region48
        $region47: #{tpu_custom_call.1} parent=43 // pred_region
          %s2682 = sand.u32 %s111, 1
          %s2683 = scalar_lea.sflag [#allocation4], %s2682
          %s2684 = sand.u32 %s111, 1
          %s2685 = smul.addr %s2684, 1024
          %s2686 = scalar_lea.vmem [#allocation5], %s2685
          %2687 = dma.done %s2683, 16384
        $region48: #{tpu_custom_call.1} parent=43 // pred_fallthru
          _
      $region44: #{tpu_custom_call.1} parent=5 // pred_fallthru
        _
    $region6: #{tpu_custom_call.1} parent=1 // loop_footer
      %s17 = sadd.s32 1, %s13
    $region7: #{tpu_custom_call.1} parent=1 // loop_footer_branch
      %12 = sbr.rel target = $region3
    $region8: #{tpu_custom_call.1} parent=1 // loop_exit
      _
    %2688 = vsyncpa [#allocation3], 1
    %s2689 = scalar_lea.sflag [#allocation3], 1
    %2690 = vsyncpa %s2689, 1
    %2691 = vsyncpa [#allocation4], 1
    %s2692 = scalar_lea.sflag [#allocation4], 1
    %2693 = vsyncpa %s2692, 1

</llo_original>
